<compile_context>
chip_gen: v7x
topology: tpu7x:2x2x1
jax: 0.10.0
libtpu: 0.0.40
codegen_flags: <defaults>
</compile_context>

<pallas_src>
import random

import jax
import jax.numpy as jnp
from jax.experimental import pallas as pl
from jax.experimental.pallas import tpu as pltpu

VMEM_SPEC = pl.BlockSpec(memory_space=pltpu.MemorySpace.VMEM)


def _round_up(x, m):
    return (x + m - 1) // m * m


# ------------------------------------------------------------------
# Kernel 1: plain matmul + bias (used once to hoist x @ Wih out of the scan)
# ------------------------------------------------------------------

def _matmul_bias_kernel(x_ref, w_ref, b_ref, o_ref):
    o_ref[...] = (jnp.dot(x_ref[...], w_ref[...],
                          preferred_element_type=jnp.float32) + b_ref[...])


def matmul_bias(x, w, b):
    M = x.shape[0]
    O = w.shape[1]
    return pl.pallas_call(
        _matmul_bias_kernel,
        out_shape=jax.ShapeDtypeStruct((M, O), jnp.float32),
        in_specs=[VMEM_SPEC] * 3,
        out_specs=VMEM_SPEC,
    )(x, w, b)


# ------------------------------------------------------------------
# Kernel 2: fused encoder LSTM recurrence, grid=(T,) ("arbitrary")
# ------------------------------------------------------------------

def _encoder_scan_kernel(ih_ref, whh_ref, out_ref, h_ref, c_ref):
    t = pl.program_id(0)

    @pl.when(t == 0)
    def _():
        h_ref[...] = jnp.zeros_like(h_ref)
        c_ref[...] = jnp.zeros_like(c_ref)

    H = h_ref.shape[1]
    # x@Wih + b was precomputed (hoisted); only the truly recurrent h@Whh here.
    gates = ih_ref[...] + jnp.dot(h_ref[...], whh_ref[...],
                                  preferred_element_type=jnp.float32)
    i = jax.nn.sigmoid(gates[:, 0 * H:1 * H])
    f = jax.nn.sigmoid(gates[:, 1 * H:2 * H])
    g = jnp.tanh(gates[:, 2 * H:3 * H])
    o = jax.nn.sigmoid(gates[:, 3 * H:4 * H])
    c_new = f * c_ref[...] + i * g
    h_new = o * jnp.tanh(c_new)
    c_ref[...] = c_new
    h_ref[...] = h_new
    out_ref[...] = h_new


def encoder_forward(params, data_pad):
    """Listener: single-layer LSTM over time, fused into one pallas_call."""
    # TODO(synk): the reference encoder is an injected module (typically a
    # pyramidal BiLSTM Listener); a single-layer LSTM listener is used here.
    Np, T, D = data_pad.shape
    n_h = params["enc_whh"].shape[0]

    # Hoisted input-to-hidden projection: one big MXU matmul over all timesteps.
    data_t = jnp.transpose(data_pad, (1, 0, 2)).reshape(T * Np, D)
    ih = matmul_bias(data_t, params["enc_wih"], params["enc_b"])
    ih = ih.reshape(T, Np, 4 * n_h)

    enc_t = pl.pallas_call(
        _encoder_scan_kernel,
        out_shape=jax.ShapeDtypeStruct((T, Np, n_h), jnp.float32),
        grid=(T,),
        in_specs=[
            pl.BlockSpec((None, Np, 4 * n_h), lambda t: (t, 0, 0)),
            pl.BlockSpec((n_h, 4 * n_h), lambda t: (0, 0)),   # resident weight
        ],
        out_specs=pl.BlockSpec((None, Np, n_h), lambda t: (t, 0, 0)),
        scratch_shapes=[pltpu.VMEM((Np, n_h), jnp.float32),   # h
                        pltpu.VMEM((Np, n_h), jnp.float32)],  # c
        compiler_params=pltpu.CompilerParams(
            dimension_semantics=("arbitrary",)),
    )(ih, params["enc_whh"])
    return jnp.transpose(enc_t, (1, 0, 2))                    # (Np, T, n_h)


# ------------------------------------------------------------------
# Kernel 3: fused decoder step, grid=(Ty,) ("arbitrary")
# ------------------------------------------------------------------

def _decoder_scan_kernel(
        tf_ref,                        # SMEM (Ty,) int32, scalar-prefetched
        tgt_ref,                       # (Np, 1) int32 : target token for step s
        enc_ref,                       # (Np, T, n_h) : VMEM-resident encoder out
        emb_ref,                       # (Vp, emb_sz)
        wih1e_ref, wih1c_ref, whh1_ref, b1_ref,
        wih2_ref, whh2_ref, b2_ref,
        wq_ref, bq_ref,
        wouth_ref, woutc_ref, bout_ref,
        yout_ref,                      # (Np, Vp) logits for step s
        alphas_ref,                    # (Np, T) attention weights for step s
        h1_ref, c1_ref, h2_ref, c2_ref, ctx_ref, yin_ref):
    s = pl.program_id(0)
    Np = h1_ref.shape[0]
    HID = h1_ref.shape[1]
    Vp = emb_ref.shape[0]

    @pl.when(s == 0)
    def _():
        h1_ref[...] = jnp.zeros_like(h1_ref)
        c1_ref[...] = jnp.zeros_like(c1_ref)
        h2_ref[...] = jnp.zeros_like(h2_ref)
        c2_ref[...] = jnp.zeros_like(c2_ref)
        ctx_ref[...] = jnp.zeros_like(ctx_ref)
        yin_ref[...] = jnp.zeros_like(yin_ref)

    # --- embedding lookup as one-hot @ table (MXU; avoids in-kernel gather) ---
    col = jax.lax.broadcasted_iota(jnp.int32, (Np, Vp), 1)
    one_hot = (col == yin_ref[...]).astype(jnp.float32)               # (Np, Vp)
    emb_x = jnp.dot(one_hot, emb_ref[...],
                    preferred_element_type=jnp.float32)               # (Np, emb)

    # --- LSTM cell 1: input = concat([emb, context]) folded into two dots ---
    gates1 = (jnp.dot(emb_x, wih1e_ref[...], preferred_element_type=jnp.float32)
              + jnp.dot(ctx_ref[...], wih1c_ref[...],
                        preferred_element_type=jnp.float32)
              + jnp.dot(h1_ref[...], whh1_ref[...],
                        preferred_element_type=jnp.float32)
              + b1_ref[...])
    i1 = jax.nn.sigmoid(gates1[:, 0 * HID:1 * HID])
    f1 = jax.nn.sigmoid(gates1[:, 1 * HID:2 * HID])
    g1 = jnp.tanh(gates1[:, 2 * HID:3 * HID])
    o1 = jax.nn.sigmoid(gates1[:, 3 * HID:4 * HID])
    c1 = f1 * c1_ref[...] + i1 * g1
    h1 = o1 * jnp.tanh(c1)
    c1_ref[...] = c1
    h1_ref[...] = h1

    # --- LSTM cell 2 ---
    gates2 = (jnp.dot(h1, wih2_ref[...], preferred_element_type=jnp.float32)
              + jnp.dot(h2_ref[...], whh2_ref[...],
                        preferred_element_type=jnp.float32)
              + b2_ref[...])
    i2 = jax.nn.sigmoid(gates2[:, 0 * HID:1 * HID])
    f2 = jax.nn.sigmoid(gates2[:, 1 * HID:2 * HID])
    g2 = jnp.tanh(gates2[:, 2 * HID:3 * HID])
    o2 = jax.nn.sigmoid(gates2[:, 3 * HID:4 * HID])
    c2 = f2 * c2_ref[...] + i2 * g2
    h2 = o2 * jnp.tanh(c2)
    c2_ref[...] = c2
    h2_ref[...] = h2

    # --- dot-product attention: MXU contractions + EUP reciprocal ---
    query = (jnp.dot(h2, wq_ref[...], preferred_element_type=jnp.float32)
             + bq_ref[...])                                           # (Np, n_h)
    enc = enc_ref[...]                                                # (Np, T, n_h)
    scores = jnp.einsum('nqd,ntd->nqt', query[:, None, :], enc,
                        preferred_element_type=jnp.float32)           # (Np, 1, T)
    m = jnp.max(scores, axis=-1, keepdims=True)
    e = jnp.exp(scores - m)
    denom = jnp.sum(e, axis=-1, keepdims=True)
    alphas = e * pl.reciprocal(denom, approx=True)                    # (Np, 1, T)
    ctx_new = jnp.einsum('nqt,ntd->nqd', alphas, enc,
                         preferred_element_type=jnp.float32)[:, 0, :]  # (Np, n_h)
    alphas_ref[...] = alphas[:, 0, :]
    ctx_ref[...] = ctx_new

    # --- output projection: concat([h2, context]) folded into two dots ---
    y_out = (jnp.dot(h2, wouth_ref[...], preferred_element_type=jnp.float32)
             + jnp.dot(ctx_new, woutc_ref[...],
                       preferred_element_type=jnp.float32)
             + bout_ref[...])                                         # (Np, Vp)
    yout_ref[...] = y_out

    # --- next-step input token: teacher forcing vs. greedy argmax (in-kernel) ---
    row_max = jnp.max(y_out, axis=1, keepdims=True)
    cand = jnp.where(y_out == row_max, col, Vp)
    y_pred = jnp.min(cand, axis=1, keepdims=True).astype(jnp.int32)   # (Np, 1)
    yin_ref[...] = jnp.where(tf_ref[s] == 1, tgt_ref[...], y_pred)


def decoder_forward_fused(params, enc_out, target_pad, tf_mask):
    """Speller: all Ty decode steps fused into one pallas_call."""
    Np, T, n_h = enc_out.shape
    Ty = target_pad.shape[1]
    hid = params["dec_whh1"].shape[0]
    emb_sz = params["emb"].shape[1]
    vocab = params["w_out"].shape[1]
    Vp = _round_up(vocab, 128)

    # Lane-dense vocab padding; padded logits get a huge negative bias so the
    # in-kernel greedy argmax can never pick a padded class.
    emb_p = jnp.zeros((Vp, emb_sz), jnp.float32).at[:vocab].set(params["emb"])
    w_out_p = jnp.zeros((hid + n_h, Vp), jnp.float32).at[:, :vocab].set(params["w_out"])
    b_out_p = jnp.full((1, Vp), -1e9, jnp.float32).at[:, :vocab].set(params["b_out"][0])
    # Split concat-weights so concatenation becomes two matmuls in-kernel.
    wih1_e = params["dec_wih1"][:emb_sz]
    wih1_c = params["dec_wih1"][emb_sz:]
    w_out_h = w_out_p[:hid]
    w_out_c = w_out_p[hid:]

    tgt_t = jnp.transpose(target_pad, (1, 0))[:, :, None].astype(jnp.int32)  # (Ty, Np, 1)

    const2 = lambda s, tf: (0, 0)
    const3 = lambda s, tf: (0, 0, 0)
    step3 = lambda s, tf: (s, 0, 0)

    grid_spec = pltpu.PrefetchScalarGridSpec(
        num_scalar_prefetch=1,
        grid=(Ty,),
        in_specs=[
            pl.BlockSpec((None, Np, 1), step3),          # target token per step
            pl.BlockSpec((Np, T, n_h), const3),          # encoder output (resident)
            pl.BlockSpec((Vp, emb_sz), const2),          # embedding table
            pl.BlockSpec((emb_sz, 4 * hid), const2),     # wih1 (emb part)
            pl.BlockSpec((n_h, 4 * hid), const2),        # wih1 (context part)
            pl.BlockSpec((hid, 4 * hid), const2),        # whh1
            pl.BlockSpec((1, 4 * hid), const2),          # b1
            pl.BlockSpec((hid, 4 * hid), const2),        # wih2
            pl.BlockSpec((hid, 4 * hid), const2),        # whh2
            pl.BlockSpec((1, 4 * hid), const2),          # b2
            pl.BlockSpec((hid, n_h), const2),            # w_q
            pl.BlockSpec((1, n_h), const2),              # b_q
            pl.BlockSpec((hid, Vp), const2),             # w_out (h2 part)
            pl.BlockSpec((n_h, Vp), const2),             # w_out (context part)
            pl.BlockSpec((1, Vp), const2),               # b_out
        ],
        out_specs=(
            pl.BlockSpec((None, Np, Vp), step3),         # logits per step
            pl.BlockSpec((None, Np, T), step3),          # attention weights per step
        ),
        scratch_shapes=[
            pltpu.VMEM((Np, hid), jnp.float32),          # h1
            pltpu.VMEM((Np, hid), jnp.float32),          # c1
            pltpu.VMEM((Np, hid), jnp.float32),          # h2
            pltpu.VMEM((Np, hid), jnp.float32),          # c2
            pltpu.VMEM((Np, n_h), jnp.float32),          # context
            pltpu.VMEM((Np, 1), jnp.int32),              # y_in token state
        ],
    )

    y_out_all, alphas_all = pl.pallas_call(
        _decoder_scan_kernel,
        grid_spec=grid_spec,
        out_shape=(jax.ShapeDtypeStruct((Ty, Np, Vp), jnp.float32),
                   jax.ShapeDtypeStruct((Ty, Np, T), jnp.float32)),
        compiler_params=pltpu.CompilerParams(
            dimension_semantics=("arbitrary",)),
    )(tf_mask, tgt_t, enc_out, emb_p,
      wih1_e, wih1_c, params["dec_whh1"], params["dec_b1"],
      params["dec_wih2"], params["dec_whh2"], params["dec_b2"],
      params["w_q"], params["b_q"], w_out_h, w_out_c, b_out_p)
    return y_out_all, alphas_all, vocab


# ------------------------------------------------------------------
# Seq2Seq forward (glue: batch padding, transposes, output slicing)
# ------------------------------------------------------------------

def seq2seq_forward(params, data, target, tf_mask):
    N, T, D = data.shape
    Ty = target.shape[1]

    Np = max(8, _round_up(N, 8))   # pad batch to a full sublane group
    data_p = jnp.zeros((Np, T, D), jnp.float32).at[:N].set(data)
    target_p = jnp.zeros((Np, Ty), jnp.int32).at[:N].set(target)

    enc_out = encoder_forward(params, data_p)                       # (Np, T, n_h)
    y_out_all, alphas_all, vocab = decoder_forward_fused(
        params, enc_out, target_p, tf_mask)

    out = jnp.transpose(y_out_all, (1, 0, 2))[:N, :, :vocab]        # (N, Ty, vocab)
    attention_vectors = [alphas_all[t, :N, :] for t in range(Ty)]
    return out, attention_vectors


# ------------------------------------------------------------------
# Deterministic parameter construction
# ------------------------------------------------------------------

def make_params(key, d_in, n_h, hid_sz, emb_sz, vocab):
    ks = jax.random.split(key, 12)
    s = 0.1
    return dict(
        # encoder LSTM (d_in -> n_h)
        enc_wih=s * jax.random.normal(ks[0], (d_in, 4 * n_h), jnp.float32),
        enc_whh=s * jax.random.normal(ks[1], (n_h, 4 * n_h), jnp.float32),
        enc_b=s * jax.random.normal(ks[2], (1, 4 * n_h), jnp.float32),
        # decoder embedding
        emb=s * jax.random.normal(ks[3], (vocab, emb_sz), jnp.float32),
        # decoder LSTMCell 1 (emb+n_h -> hid_sz)
        dec_wih1=s * jax.random.normal(ks[4], (emb_sz + n_h, 4 * hid_sz), jnp.float32),
        dec_whh1=s * jax.random.normal(ks[5], (hid_sz, 4 * hid_sz), jnp.float32),
        dec_b1=s * jax.random.normal(ks[6], (1, 4 * hid_sz), jnp.float32),
        # decoder LSTMCell 2 (hid_sz -> hid_sz)
        dec_wih2=s * jax.random.normal(ks[7], (hid_sz, 4 * hid_sz), jnp.float32),
        dec_whh2=s * jax.random.normal(ks[8], (hid_sz, 4 * hid_sz), jnp.float32),
        dec_b2=s * jax.random.normal(ks[9], (1, 4 * hid_sz), jnp.float32),
        # attention query projection (hid_sz -> n_h)
        w_q=s * jax.random.normal(ks[10], (hid_sz, n_h), jnp.float32),
        b_q=jnp.zeros((1, n_h), jnp.float32),
        # output projection (hid_sz + n_h -> vocab)
        w_out=s * jax.random.normal(ks[11], (hid_sz + n_h, vocab), jnp.float32),
        b_out=jnp.zeros((1, vocab), jnp.float32),
    )


if __name__ == "__main__":
    # Small shapes, (8,128)-friendly hidden sizes: batch=2, T_in=8, d_in=16,
    # n_h = hid_sz = 128 (each LSTM gate fills one 128-lane block),
    # emb=32, vocab=10 (padded to 128 inside), Ty=6.
    N, T_in, D_in = 2, 8, 16
    n_h, hid_sz, emb_sz, vocab, Ty = 128, 128, 32, 10, 6
    tf_ratio = 0.5

    # Teacher-forcing coin flips: same host-side random.random() semantics as
    # the PyTorch reference, but materialized as a runtime mask array so the
    # fused decoder kernel (and any jit) is not frozen at trace time.
    random.seed(0)
    tf_mask = jnp.asarray(
        [1 if random.random() < tf_ratio else 0 for _ in range(Ty)], jnp.int32)

    key = jax.random.PRNGKey(0)
    k_data, k_tgt, k_par = jax.random.split(key, 3)
    data = jax.random.normal(k_data, (N, T_in, D_in), jnp.float32)
    target = jax.random.randint(k_tgt, (N, Ty), 0, vocab, jnp.int32)
    params = make_params(k_par, D_in, n_h, hid_sz, emb_sz, vocab)

    fwd = jax.jit(seq2seq_forward)
    out, attention_vectors = fwd(params, data, target, tf_mask)
    out = jax.block_until_ready(out)
    attention_vectors = [jax.block_until_ready(a) for a in attention_vectors]

    assert out.shape == (N, Ty, vocab)
    assert len(attention_vectors) == Ty
    assert attention_vectors[0].shape == (N, T_in)
    assert bool(jnp.all(jnp.isfinite(out)))
    print("KERNEL_OK")
</pallas_src>

<mosaic_0001>
module attributes {stable_mosaic.version = 11 : i64} {
  func.func @_matmul_bias_kernel(%arg0: memref<64x16xf32, #tpu.memory_space<vmem>>, %arg1: memref<16x512xf32, #tpu.memory_space<vmem>>, %arg2: memref<1x512xf32, #tpu.memory_space<vmem>>, %arg3: memref<64x512xf32, #tpu.memory_space<vmem>>) attributes {dimension_semantics = [], scalar_prefetch = 0 : i64, scratch_operands = 0 : i64, tpu.core_type = #tpu.core_type<tc>} {
    %c0 = arith.constant 0 : index
    %c0_0 = arith.constant 0 : index
    %0 = vector.load %arg0[%c0, %c0_0] : memref<64x16xf32, #tpu.memory_space<vmem>>, vector<64x16xf32>
    %c0_1 = arith.constant 0 : index
    %c0_2 = arith.constant 0 : index
    %1 = vector.load %arg1[%c0_1, %c0_2] : memref<16x512xf32, #tpu.memory_space<vmem>>, vector<16x512xf32>
    %cst = arith.constant dense<0.000000e+00> : vector<64x512xf32>
    %2 = tpu.matmul %0, %1, %cst {dimension_numbers = #tpu.dot_dimension_numbers<[1], [0], [0], [1], [0, 0, 1, 1], [], []>} : vector<64x16xf32>, vector<16x512xf32>, vector<64x512xf32> -> vector<64x512xf32>
    %c0_3 = arith.constant 0 : index
    %c0_4 = arith.constant 0 : index
    %3 = vector.load %arg2[%c0_3, %c0_4] : memref<1x512xf32, #tpu.memory_space<vmem>>, vector<1x512xf32>
    %4 = vector.broadcast %3 : vector<1x512xf32> to vector<64x512xf32>
    %5 = arith.addf %2, %4 : vector<64x512xf32>
    %c0_5 = arith.constant 0 : index
    %c0_6 = arith.constant 0 : index
    %6 = vector.load %arg3[%c0_5, %c0_6] : memref<64x512xf32, #tpu.memory_space<vmem>>, vector<64x512xf32>
    tpu.vector_store %arg3[%c0_5, %c0_6], %5 {strides = array<i32>} : memref<64x512xf32, #tpu.memory_space<vmem>>, vector<64x512xf32>,
    return
  }
}

module attributes {stable_mosaic.version = 11 : i64} {
  func.func @_encoder_scan_kernel(%arg0: i32, %arg1: memref<1x8x512xf32, #tpu.memory_space<vmem>>, %arg2: memref<128x512xf32, #tpu.memory_space<vmem>>, %arg3: memref<1x8x128xf32, #tpu.memory_space<vmem>>, %arg4: memref<8x128xf32, #tpu.memory_space<vmem>>, %arg5: memref<8x128xf32, #tpu.memory_space<vmem>>) attributes {dimension_semantics = [#tpu.dimension_semantics<arbitrary>], iteration_bounds = array<i64: 8>, scalar_prefetch = 0 : i64, scratch_operands = 2 : i64, tpu.core_type = #tpu.core_type<tc>, window_params = [{transform_indices = @transform_0, window_bounds = array<i64: 1, 8, 512>}, {pipeline_mode = #tpu.pipeline_mode<synchronous>, transform_indices = @transform_1, window_bounds = array<i64: 128, 512>}, {transform_indices = @transform_2, window_bounds = array<i64: 1, 8, 128>}]} {
    %c0_i32 = arith.constant 0 : i32
    %0 = arith.cmpi eq, %arg0, %c0_i32 : i32
    %1 = arith.extui %0 : i1 to i32
    %c0_i32_0 = arith.constant 0 : i32
    %2 = arith.cmpi ne, %1, %c0_i32_0 : i32
    scf.if %2 {
      %cst_19 = arith.constant 0.000000e+00 : f32
      %40 = vector.broadcast %cst_19 : f32 to vector<8x128xf32>
      %c0_20 = arith.constant 0 : index
      %c0_21 = arith.constant 0 : index
      %41 = vector.load %arg4[%c0_20, %c0_21] : memref<8x128xf32, #tpu.memory_space<vmem>>, vector<8x128xf32>
      tpu.vector_store %arg4[%c0_20, %c0_21], %40 {strides = array<i32>} : memref<8x128xf32, #tpu.memory_space<vmem>>, vector<8x128xf32>,
      %cst_22 = arith.constant 0.000000e+00 : f32
      %42 = vector.broadcast %cst_22 : f32 to vector<8x128xf32>
      %c0_23 = arith.constant 0 : index
      %c0_24 = arith.constant 0 : index
      %43 = vector.load %arg5[%c0_23, %c0_24] : memref<8x128xf32, #tpu.memory_space<vmem>>, vector<8x128xf32>
      tpu.vector_store %arg5[%c0_23, %c0_24], %42 {strides = array<i32>} : memref<8x128xf32, #tpu.memory_space<vmem>>, vector<8x128xf32>,
    } else {
    }
    %c0 = arith.constant 0 : index
    %c0_1 = arith.constant 0 : index
    %c0_2 = arith.constant 0 : index
    %3 = vector.load %arg1[%c0, %c0_1, %c0_2] : memref<1x8x512xf32, #tpu.memory_space<vmem>>, vector<1x8x512xf32>
    %4 = vector.shape_cast %3 : vector<1x8x512xf32> to vector<8x512xf32>
    %c0_3 = arith.constant 0 : index
    %c0_4 = arith.constant 0 : index
    %5 = vector.load %arg4[%c0_3, %c0_4] : memref<8x128xf32, #tpu.memory_space<vmem>>, vector<8x128xf32>
    %c0_5 = arith.constant 0 : index
    %c0_6 = arith.constant 0 : index
    %6 = vector.load %arg2[%c0_5, %c0_6] : memref<128x512xf32, #tpu.memory_space<vmem>>, vector<128x512xf32>
    %cst = arith.constant dense<0.000000e+00> : vector<8x512xf32>
    %7 = tpu.matmul %5, %6, %cst {dimension_numbers = #tpu.dot_dimension_numbers<[1], [0], [0], [1], [0, 0, 1, 1], [], []>} : vector<8x128xf32>, vector<128x512xf32>, vector<8x512xf32> -> vector<8x512xf32>
    %8 = arith.addf %4, %7 : vector<8x512xf32>
    %9 = vector.extract_strided_slice %8 {offsets = [0, 0], sizes = [8, 128], strides = [1, 1]} : vector<8x512xf32> to vector<8x128xf32>
    %10 = arith.negf %9 : vector<8x128xf32>
    %11 = math.exp %10 : vector<8x128xf32>
    %cst_7 = arith.constant 1.000000e+00 : f32
    %12 = vector.broadcast %cst_7 : f32 to vector<8x128xf32>
    %13 = arith.addf %12, %11 : vector<8x128xf32>
    %14 = arith.divf %12, %13 : vector<8x128xf32>
    %15 = vector.extract_strided_slice %8 {offsets = [0, 128], sizes = [8, 128], strides = [1, 1]} : vector<8x512xf32> to vector<8x128xf32>
    %16 = arith.negf %15 : vector<8x128xf32>
    %17 = math.exp %16 : vector<8x128xf32>
    %cst_8 = arith.constant 1.000000e+00 : f32
    %18 = vector.broadcast %cst_8 : f32 to vector<8x128xf32>
    %19 = arith.addf %18, %17 : vector<8x128xf32>
    %20 = arith.divf %18, %19 : vector<8x128xf32>
    %21 = vector.extract_strided_slice %8 {offsets = [0, 256], sizes = [8, 128], strides = [1, 1]} : vector<8x512xf32> to vector<8x128xf32>
    %22 = math.tanh %21 : vector<8x128xf32>
    %23 = vector.extract_strided_slice %8 {offsets = [0, 384], sizes = [8, 128], strides = [1, 1]} : vector<8x512xf32> to vector<8x128xf32>
    %24 = arith.negf %23 : vector<8x128xf32>
    %25 = math.exp %24 : vector<8x128xf32>
    %cst_9 = arith.constant 1.000000e+00 : f32
    %26 = vector.broadcast %cst_9 : f32 to vector<8x128xf32>
    %27 = arith.addf %26, %25 : vector<8x128xf32>
    %28 = arith.divf %26, %27 : vector<8x128xf32>
    %c0_10 = arith.constant 0 : index
    %c0_11 = arith.constant 0 : index
    %29 = vector.load %arg5[%c0_10, %c0_11] : memref<8x128xf32, #tpu.memory_space<vmem>>, vector<8x128xf32>
    %30 = arith.mulf %20, %29 : vector<8x128xf32>
    %31 = arith.mulf %14, %22 : vector<8x128xf32>
    %32 = arith.addf %30, %31 : vector<8x128xf32>
    %33 = math.tanh %32 : vector<8x128xf32>
    %34 = arith.mulf %28, %33 : vector<8x128xf32>
    %c0_12 = arith.constant 0 : index
    %c0_13 = arith.constant 0 : index
    %35 = vector.load %arg5[%c0_12, %c0_13] : memref<8x128xf32, #tpu.memory_space<vmem>>, vector<8x128xf32>
    tpu.vector_store %arg5[%c0_12, %c0_13], %32 {strides = array<i32>} : memref<8x128xf32, #tpu.memory_space<vmem>>, vector<8x128xf32>,
    %c0_14 = arith.constant 0 : index
    %c0_15 = arith.constant 0 : index
    %36 = vector.load %arg4[%c0_14, %c0_15] : memref<8x128xf32, #tpu.memory_space<vmem>>, vector<8x128xf32>
    tpu.vector_store %arg4[%c0_14, %c0_15], %34 {strides = array<i32>} : memref<8x128xf32, #tpu.memory_space<vmem>>, vector<8x128xf32>,
    %c0_16 = arith.constant 0 : index
    %c0_17 = arith.constant 0 : index
    %c0_18 = arith.constant 0 : index
    %37 = vector.load %arg3[%c0_16, %c0_17, %c0_18] : memref<1x8x128xf32, #tpu.memory_space<vmem>>, vector<1x8x128xf32>
    %38 = vector.shape_cast %37 : vector<1x8x128xf32> to vector<8x128xf32>
    %39 = vector.shape_cast %34 : vector<8x128xf32> to vector<1x8x128xf32>
    tpu.vector_store %arg3[%c0_16, %c0_17, %c0_18], %39 {strides = array<i32>} : memref<1x8x128xf32, #tpu.memory_space<vmem>>, vector<1x8x128xf32>,
    return
  }
  func.func @transform_0(%arg0: i32) -> (i32, i32, i32) {
    %c0_i32 = arith.constant 0 : i32
    %c0_i32_0 = arith.constant 0 : i32
    %c0_i32_1 = arith.constant 0 : i32
    return %arg0, %c0_i32, %c0_i32_0 : i32, i32, i32
  }
  func.func @transform_1(%arg0: i32) -> (i32, i32) {
    %c0_i32 = arith.constant 0 : i32
    %c0_i32_0 = arith.constant 0 : i32
    %c0_i32_1 = arith.constant 0 : i32
    return %c0_i32, %c0_i32_0 : i32, i32
  }
  func.func @transform_2(%arg0: i32) -> (i32, i32, i32) {
    %c0_i32 = arith.constant 0 : i32
    %c0_i32_0 = arith.constant 0 : i32
    %c0_i32_1 = arith.constant 0 : i32
    return %arg0, %c0_i32, %c0_i32_0 : i32, i32, i32
  }
}

module attributes {stable_mosaic.version = 11 : i64} {
  func.func @_decoder_scan_kernel(%arg0: i32, %arg1: memref<6xi32, #tpu.memory_space<smem>>, %arg2: memref<1x8x1xi32, #tpu.memory_space<vmem>>, %arg3: memref<8x8x128xf32, #tpu.memory_space<vmem>>, %arg4: memref<128x32xf32, #tpu.memory_space<vmem>>, %arg5: memref<32x512xf32, #tpu.memory_space<vmem>>, %arg6: memref<128x512xf32, #tpu.memory_space<vmem>>, %arg7: memref<128x512xf32, #tpu.memory_space<vmem>>, %arg8: memref<1x512xf32, #tpu.memory_space<vmem>>, %arg9: memref<128x512xf32, #tpu.memory_space<vmem>>, %arg10: memref<128x512xf32, #tpu.memory_space<vmem>>, %arg11: memref<1x512xf32, #tpu.memory_space<vmem>>, %arg12: memref<128x128xf32, #tpu.memory_space<vmem>>, %arg13: memref<1x128xf32, #tpu.memory_space<vmem>>, %arg14: memref<128x128xf32, #tpu.memory_space<vmem>>, %arg15: memref<128x128xf32, #tpu.memory_space<vmem>>, %arg16: memref<1x128xf32, #tpu.memory_space<vmem>>, %arg17: memref<1x8x128xf32, #tpu.memory_space<vmem>>, %arg18: memref<1x8x8xf32, #tpu.memory_space<vmem>>, %arg19: memref<8x128xf32, #tpu.memory_space<vmem>>, %arg20: memref<8x128xf32, #tpu.memory_space<vmem>>, %arg21: memref<8x128xf32, #tpu.memory_space<vmem>>, %arg22: memref<8x128xf32, #tpu.memory_space<vmem>>, %arg23: memref<8x128xf32, #tpu.memory_space<vmem>>, %arg24: memref<8x1xi32, #tpu.memory_space<vmem>>) attributes {dimension_semantics = [#tpu.dimension_semantics<arbitrary>], iteration_bounds = array<i64: 6>, scalar_prefetch = 1 : i64, scratch_operands = 6 : i64, tpu.core_type = #tpu.core_type<tc>, window_params = [{transform_indices = @transform_0, window_bounds = array<i64: 1, 8, 1>}, {pipeline_mode = #tpu.pipeline_mode<synchronous>, transform_indices = @transform_1, window_bounds = array<i64: 8, 8, 128>}, {pipeline_mode = #tpu.pipeline_mode<synchronous>, transform_indices = @transform_2, window_bounds = array<i64: 128, 32>}, {pipeline_mode = #tpu.pipeline_mode<synchronous>, transform_indices = @transform_3, window_bounds = array<i64: 32, 512>}, {pipeline_mode = #tpu.pipeline_mode<synchronous>, transform_indices = @transform_4, window_bounds = array<i64: 128, 512>}, {pipeline_mode = #tpu.pipeline_mode<synchronous>, transform_indices = @transform_5, window_bounds = array<i64: 128, 512>}, {pipeline_mode = #tpu.pipeline_mode<synchronous>, transform_indices = @transform_6, window_bounds = array<i64: 1, 512>}, {pipeline_mode = #tpu.pipeline_mode<synchronous>, transform_indices = @transform_7, window_bounds = array<i64: 128, 512>}, {pipeline_mode = #tpu.pipeline_mode<synchronous>, transform_indices = @transform_8, window_bounds = array<i64: 128, 512>}, {pipeline_mode = #tpu.pipeline_mode<synchronous>, transform_indices = @transform_9, window_bounds = array<i64: 1, 512>}, {pipeline_mode = #tpu.pipeline_mode<synchronous>, transform_indices = @transform_10, window_bounds = array<i64: 128, 128>}, {pipeline_mode = #tpu.pipeline_mode<synchronous>, transform_indices = @transform_11, window_bounds = array<i64: 1, 128>}, {pipeline_mode = #tpu.pipeline_mode<synchronous>, transform_indices = @transform_12, window_bounds = array<i64: 128, 128>}, {pipeline_mode = #tpu.pipeline_mode<synchronous>, transform_indices = @transform_13, window_bounds = array<i64: 128, 128>}, {pipeline_mode = #tpu.pipeline_mode<synchronous>, transform_indices = @transform_14, window_bounds = array<i64: 1, 128>}, {transform_indices = @transform_15, window_bounds = array<i64: 1, 8, 128>}, {transform_indices = @transform_16, window_bounds = array<i64: 1, 8, 8>}]} {
    %c0_i32 = arith.constant 0 : i32
    %0 = arith.cmpi eq, %arg0, %c0_i32 : i32
    %1 = arith.extui %0 : i1 to i32
    %c0_i32_0 = arith.constant 0 : i32
    %2 = arith.cmpi ne, %1, %c0_i32_0 : i32
    scf.if %2 {
      %cst_82 = arith.constant 0.000000e+00 : f32
      %140 = vector.broadcast %cst_82 : f32 to vector<8x128xf32>
      %c0_83 = arith.constant 0 : index
      %c0_84 = arith.constant 0 : index
      %141 = vector.load %arg19[%c0_83, %c0_84] : memref<8x128xf32, #tpu.memory_space<vmem>>, vector<8x128xf32>
      tpu.vector_store %arg19[%c0_83, %c0_84], %140 {strides = array<i32>} : memref<8x128xf32, #tpu.memory_space<vmem>>, vector<8x128xf32>,
      %cst_85 = arith.constant 0.000000e+00 : f32
      %142 = vector.broadcast %cst_85 : f32 to vector<8x128xf32>
      %c0_86 = arith.constant 0 : index
      %c0_87 = arith.constant 0 : index
      %143 = vector.load %arg20[%c0_86, %c0_87] : memref<8x128xf32, #tpu.memory_space<vmem>>, vector<8x128xf32>
      tpu.vector_store %arg20[%c0_86, %c0_87], %142 {strides = array<i32>} : memref<8x128xf32, #tpu.memory_space<vmem>>, vector<8x128xf32>,
      %cst_88 = arith.constant 0.000000e+00 : f32
      %144 = vector.broadcast %cst_88 : f32 to vector<8x128xf32>
      %c0_89 = arith.constant 0 : index
      %c0_90 = arith.constant 0 : index
      %145 = vector.load %arg21[%c0_89, %c0_90] : memref<8x128xf32, #tpu.memory_space<vmem>>, vector<8x128xf32>
      tpu.vector_store %arg21[%c0_89, %c0_90], %144 {strides = array<i32>} : memref<8x128xf32, #tpu.memory_space<vmem>>, vector<8x128xf32>,
      %cst_91 = arith.constant 0.000000e+00 : f32
      %146 = vector.broadcast %cst_91 : f32 to vector<8x128xf32>
      %c0_92 = arith.constant 0 : index
      %c0_93 = arith.constant 0 : index
      %147 = vector.load %arg22[%c0_92, %c0_93] : memref<8x128xf32, #tpu.memory_space<vmem>>, vector<8x128xf32>
      tpu.vector_store %arg22[%c0_92, %c0_93], %146 {strides = array<i32>} : memref<8x128xf32, #tpu.memory_space<vmem>>, vector<8x128xf32>,
      %cst_94 = arith.constant 0.000000e+00 : f32
      %148 = vector.broadcast %cst_94 : f32 to vector<8x128xf32>
      %c0_95 = arith.constant 0 : index
      %c0_96 = arith.constant 0 : index
      %149 = vector.load %arg23[%c0_95, %c0_96] : memref<8x128xf32, #tpu.memory_space<vmem>>, vector<8x128xf32>
      tpu.vector_store %arg23[%c0_95, %c0_96], %148 {strides = array<i32>} : memref<8x128xf32, #tpu.memory_space<vmem>>, vector<8x128xf32>,
      %c0_i32_97 = arith.constant 0 : i32
      %150 = vector.broadcast %c0_i32_97 : i32 to vector<8x1xi32>
      %c0_98 = arith.constant 0 : index
      %c0_99 = arith.constant 0 : index
      %151 = vector.load %arg24[%c0_98, %c0_99] : memref<8x1xi32, #tpu.memory_space<vmem>>, vector<8x1xi32>
      tpu.vector_store %arg24[%c0_98, %c0_99], %150 {strides = array<i32>} : memref<8x1xi32, #tpu.memory_space<vmem>>, vector<8x1xi32>,
    } else {
    }
    %3 = tpu.iota {dimensions = array<i32: 1>} : vector<8x128xi32>
    %c0 = arith.constant 0 : index
    %c0_1 = arith.constant 0 : index
    %4 = vector.load %arg24[%c0, %c0_1] : memref<8x1xi32, #tpu.memory_space<vmem>>, vector<8x1xi32>
    %5 = vector.broadcast %4 : vector<8x1xi32> to vector<8x128xi32>
    %6 = arith.cmpi eq, %3, %5 : vector<8x128xi32>
    %7 = arith.extui %6 : vector<8x128xi1> to vector<8x128xi32>
    %8 = arith.sitofp %7 : vector<8x128xi32> to vector<8x128xf32>
    %c0_2 = arith.constant 0 : index
    %c0_3 = arith.constant 0 : index
    %9 = vector.load %arg4[%c0_2, %c0_3] : memref<128x32xf32, #tpu.memory_space<vmem>>, vector<128x32xf32>
    %cst = arith.constant dense<0.000000e+00> : vector<8x32xf32>
    %10 = tpu.matmul %8, %9, %cst {dimension_numbers = #tpu.dot_dimension_numbers<[1], [0], [0], [1], [0, 0, 1, 1], [], []>} : vector<8x128xf32>, vector<128x32xf32>, vector<8x32xf32> -> vector<8x32xf32>
    %c0_4 = arith.constant 0 : index
    %c0_5 = arith.constant 0 : index
    %11 = vector.load %arg5[%c0_4, %c0_5] : memref<32x512xf32, #tpu.memory_space<vmem>>, vector<32x512xf32>
    %cst_6 = arith.constant dense<0.000000e+00> : vector<8x512xf32>
    %12 = tpu.matmul %10, %11, %cst_6 {dimension_numbers = #tpu.dot_dimension_numbers<[1], [0], [0], [1], [0, 0, 1, 1], [], []>} : vector<8x32xf32>, vector<32x512xf32>, vector<8x512xf32> -> vector<8x512xf32>
    %c0_7 = arith.constant 0 : index
    %c0_8 = arith.constant 0 : index
    %13 = vector.load %arg23[%c0_7, %c0_8] : memref<8x128xf32, #tpu.memory_space<vmem>>, vector<8x128xf32>
    %c0_9 = arith.constant 0 : index
    %c0_10 = arith.constant 0 : index
    %14 = vector.load %arg6[%c0_9, %c0_10] : memref<128x512xf32, #tpu.memory_space<vmem>>, vector<128x512xf32>
    %cst_11 = arith.constant dense<0.000000e+00> : vector<8x512xf32>
    %15 = tpu.matmul %13, %14, %cst_11 {dimension_numbers = #tpu.dot_dimension_numbers<[1], [0], [0], [1], [0, 0, 1, 1], [], []>} : vector<8x128xf32>, vector<128x512xf32>, vector<8x512xf32> -> vector<8x512xf32>
    %16 = arith.addf %12, %15 : vector<8x512xf32>
    %c0_12 = arith.constant 0 : index
    %c0_13 = arith.constant 0 : index
    %17 = vector.load %arg19[%c0_12, %c0_13] : memref<8x128xf32, #tpu.memory_space<vmem>>, vector<8x128xf32>
    %c0_14 = arith.constant 0 : index
    %c0_15 = arith.constant 0 : index
    %18 = vector.load %arg7[%c0_14, %c0_15] : memref<128x512xf32, #tpu.memory_space<vmem>>, vector<128x512xf32>
    %cst_16 = arith.constant dense<0.000000e+00> : vector<8x512xf32>
    %19 = tpu.matmul %17, %18, %cst_16 {dimension_numbers = #tpu.dot_dimension_numbers<[1], [0], [0], [1], [0, 0, 1, 1], [], []>} : vector<8x128xf32>, vector<128x512xf32>, vector<8x512xf32> -> vector<8x512xf32>
    %20 = arith.addf %16, %19 : vector<8x512xf32>
    %c0_17 = arith.constant 0 : index
    %c0_18 = arith.constant 0 : index
    %21 = vector.load %arg8[%c0_17, %c0_18] : memref<1x512xf32, #tpu.memory_space<vmem>>, vector<1x512xf32>
    %22 = vector.broadcast %21 : vector<1x512xf32> to vector<8x512xf32>
    %23 = arith.addf %20, %22 : vector<8x512xf32>
    %24 = vector.extract_strided_slice %23 {offsets = [0, 0], sizes = [8, 128], strides = [1, 1]} : vector<8x512xf32> to vector<8x128xf32>
    %25 = arith.negf %24 : vector<8x128xf32>
    %26 = math.exp %25 : vector<8x128xf32>
    %cst_19 = arith.constant 1.000000e+00 : f32
    %27 = vector.broadcast %cst_19 : f32 to vector<8x128xf32>
    %28 = arith.addf %27, %26 : vector<8x128xf32>
    %29 = arith.divf %27, %28 : vector<8x128xf32>
    %30 = vector.extract_strided_slice %23 {offsets = [0, 128], sizes = [8, 128], strides = [1, 1]} : vector<8x512xf32> to vector<8x128xf32>
    %31 = arith.negf %30 : vector<8x128xf32>
    %32 = math.exp %31 : vector<8x128xf32>
    %cst_20 = arith.constant 1.000000e+00 : f32
    %33 = vector.broadcast %cst_20 : f32 to vector<8x128xf32>
    %34 = arith.addf %33, %32 : vector<8x128xf32>
    %35 = arith.divf %33, %34 : vector<8x128xf32>
    %36 = vector.extract_strided_slice %23 {offsets = [0, 256], sizes = [8, 128], strides = [1, 1]} : vector<8x512xf32> to vector<8x128xf32>
    %37 = math.tanh %36 : vector<8x128xf32>
    %38 = vector.extract_strided_slice %23 {offsets = [0, 384], sizes = [8, 128], strides = [1, 1]} : vector<8x512xf32> to vector<8x128xf32>
    %39 = arith.negf %38 : vector<8x128xf32>
    %40 = math.exp %39 : vector<8x128xf32>
    %cst_21 = arith.constant 1.000000e+00 : f32
    %41 = vector.broadcast %cst_21 : f32 to vector<8x128xf32>
    %42 = arith.addf %41, %40 : vector<8x128xf32>
    %43 = arith.divf %41, %42 : vector<8x128xf32>
    %c0_22 = arith.constant 0 : index
    %c0_23 = arith.constant 0 : index
    %44 = vector.load %arg20[%c0_22, %c0_23] : memref<8x128xf32, #tpu.memory_space<vmem>>, vector<8x128xf32>
    %45 = arith.mulf %35, %44 : vector<8x128xf32>
    %46 = arith.mulf %29, %37 : vector<8x128xf32>
    %47 = arith.addf %45, %46 : vector<8x128xf32>
    %48 = math.tanh %47 : vector<8x128xf32>
    %49 = arith.mulf %43, %48 : vector<8x128xf32>
    %c0_24 = arith.constant 0 : index
    %c0_25 = arith.constant 0 : index
    %50 = vector.load %arg20[%c0_24, %c0_25] : memref<8x128xf32, #tpu.memory_space<vmem>>, vector<8x128xf32>
    tpu.vector_store %arg20[%c0_24, %c0_25], %47 {strides = array<i32>} : memref<8x128xf32, #tpu.memory_space<vmem>>, vector<8x128xf32>,
    %c0_26 = arith.constant 0 : index
    %c0_27 = arith.constant 0 : index
    %51 = vector.load %arg19[%c0_26, %c0_27] : memref<8x128xf32, #tpu.memory_space<vmem>>, vector<8x128xf32>
    tpu.vector_store %arg19[%c0_26, %c0_27], %49 {strides = array<i32>} : memref<8x128xf32, #tpu.memory_space<vmem>>, vector<8x128xf32>,
    %c0_28 = arith.constant 0 : index
    %c0_29 = arith.constant 0 : index
    %52 = vector.load %arg9[%c0_28, %c0_29] : memref<128x512xf32, #tpu.memory_space<vmem>>, vector<128x512xf32>
    %cst_30 = arith.constant dense<0.000000e+00> : vector<8x512xf32>
    %53 = tpu.matmul %49, %52, %cst_30 {dimension_numbers = #tpu.dot_dimension_numbers<[1], [0], [0], [1], [0, 0, 1, 1], [], []>} : vector<8x128xf32>, vector<128x512xf32>, vector<8x512xf32> -> vector<8x512xf32>
    %c0_31 = arith.constant 0 : index
    %c0_32 = arith.constant 0 : index
    %54 = vector.load %arg21[%c0_31, %c0_32] : memref<8x128xf32, #tpu.memory_space<vmem>>, vector<8x128xf32>
    %c0_33 = arith.constant 0 : index
    %c0_34 = arith.constant 0 : index
    %55 = vector.load %arg10[%c0_33, %c0_34] : memref<128x512xf32, #tpu.memory_space<vmem>>, vector<128x512xf32>
    %cst_35 = arith.constant dense<0.000000e+00> : vector<8x512xf32>
    %56 = tpu.matmul %54, %55, %cst_35 {dimension_numbers = #tpu.dot_dimension_numbers<[1], [0], [0], [1], [0, 0, 1, 1], [], []>} : vector<8x128xf32>, vector<128x512xf32>, vector<8x512xf32> -> vector<8x512xf32>
    %57 = arith.addf %53, %56 : vector<8x512xf32>
    %c0_36 = arith.constant 0 : index
    %c0_37 = arith.constant 0 : index
    %58 = vector.load %arg11[%c0_36, %c0_37] : memref<1x512xf32, #tpu.memory_space<vmem>>, vector<1x512xf32>
    %59 = vector.broadcast %58 : vector<1x512xf32> to vector<8x512xf32>
    %60 = arith.addf %57, %59 : vector<8x512xf32>
    %61 = vector.extract_strided_slice %60 {offsets = [0, 0], sizes = [8, 128], strides = [1, 1]} : vector<8x512xf32> to vector<8x128xf32>
    %62 = arith.negf %61 : vector<8x128xf32>
    %63 = math.exp %62 : vector<8x128xf32>
    %cst_38 = arith.constant 1.000000e+00 : f32
    %64 = vector.broadcast %cst_38 : f32 to vector<8x128xf32>
    %65 = arith.addf %64, %63 : vector<8x128xf32>
    %66 = arith.divf %64, %65 : vector<8x128xf32>
    %67 = vector.extract_strided_slice %60 {offsets = [0, 128], sizes = [8, 128], strides = [1, 1]} : vector<8x512xf32> to vector<8x128xf32>
    %68 = arith.negf %67 : vector<8x128xf32>
    %69 = math.exp %68 : vector<8x128xf32>
    %cst_39 = arith.constant 1.000000e+00 : f32
    %70 = vector.broadcast %cst_39 : f32 to vector<8x128xf32>
    %71 = arith.addf %70, %69 : vector<8x128xf32>
    %72 = arith.divf %70, %71 : vector<8x128xf32>
    %73 = vector.extract_strided_slice %60 {offsets = [0, 256], sizes = [8, 128], strides = [1, 1]} : vector<8x512xf32> to vector<8x128xf32>
    %74 = math.tanh %73 : vector<8x128xf32>
    %75 = vector.extract_strided_slice %60 {offsets = [0, 384], sizes = [8, 128], strides = [1, 1]} : vector<8x512xf32> to vector<8x128xf32>
    %76 = arith.negf %75 : vector<8x128xf32>
    %77 = math.exp %76 : vector<8x128xf32>
    %cst_40 = arith.constant 1.000000e+00 : f32
    %78 = vector.broadcast %cst_40 : f32 to vector<8x128xf32>
    %79 = arith.addf %78, %77 : vector<8x128xf32>
    %80 = arith.divf %78, %79 : vector<8x128xf32>
    %c0_41 = arith.constant 0 : index
    %c0_42 = arith.constant 0 : index
    %81 = vector.load %arg22[%c0_41, %c0_42] : memref<8x128xf32, #tpu.memory_space<vmem>>, vector<8x128xf32>
    %82 = arith.mulf %72, %81 : vector<8x128xf32>
    %83 = arith.mulf %66, %74 : vector<8x128xf32>
    %84 = arith.addf %82, %83 : vector<8x128xf32>
    %85 = math.tanh %84 : vector<8x128xf32>
    %86 = arith.mulf %80, %85 : vector<8x128xf32>
    %c0_43 = arith.constant 0 : index
    %c0_44 = arith.constant 0 : index
    %87 = vector.load %arg22[%c0_43, %c0_44] : memref<8x128xf32, #tpu.memory_space<vmem>>, vector<8x128xf32>
    tpu.vector_store %arg22[%c0_43, %c0_44], %84 {strides = array<i32>} : memref<8x128xf32, #tpu.memory_space<vmem>>, vector<8x128xf32>,
    %c0_45 = arith.constant 0 : index
    %c0_46 = arith.constant 0 : index
    %88 = vector.load %arg21[%c0_45, %c0_46] : memref<8x128xf32, #tpu.memory_space<vmem>>, vector<8x128xf32>
    tpu.vector_store %arg21[%c0_45, %c0_46], %86 {strides = array<i32>} : memref<8x128xf32, #tpu.memory_space<vmem>>, vector<8x128xf32>,
    %c0_47 = arith.constant 0 : index
    %c0_48 = arith.constant 0 : index
    %89 = vector.load %arg12[%c0_47, %c0_48] : memref<128x128xf32, #tpu.memory_space<vmem>>, vector<128x128xf32>
    %cst_49 = arith.constant dense<0.000000e+00> : vector<8x128xf32>
    %90 = tpu.matmul %86, %89, %cst_49 {dimension_numbers = #tpu.dot_dimension_numbers<[1], [0], [0], [1], [0, 0, 1, 1], [], []>} : vector<8x128xf32>, vector<128x128xf32>, vector<8x128xf32> -> vector<8x128xf32>
    %c0_50 = arith.constant 0 : index
    %c0_51 = arith.constant 0 : index
    %91 = vector.load %arg13[%c0_50, %c0_51] : memref<1x128xf32, #tpu.memory_space<vmem>>, vector<1x128xf32>
    %92 = vector.broadcast %91 : vector<1x128xf32> to vector<8x128xf32>
    %93 = arith.addf %90, %92 : vector<8x128xf32>
    %c0_52 = arith.constant 0 : index
    %c0_53 = arith.constant 0 : index
    %c0_54 = arith.constant 0 : index
    %94 = vector.load %arg3[%c0_52, %c0_53, %c0_54] : memref<8x8x128xf32, #tpu.memory_space<vmem>>, vector<8x8x128xf32>
    %95 = vector.shape_cast %93 : vector<8x128xf32> to vector<8x1x128xf32>
    "tpu.trace_start"() <{level = 10 : i32, message = "nqd,ntd->nqt"}> : () -> ()
    %cst_55 = arith.constant dense<0.000000e+00> : vector<8x1x8xf32>
    %96 = tpu.matmul %95, %94, %cst_55 {dimension_numbers = #tpu.dot_dimension_numbers<[2], [2], [1], [1], [0, 0, 0, 1, 1, 1], [0], [0]>} : vector<8x1x128xf32>, vector<8x8x128xf32>, vector<8x1x8xf32> -> vector<8x1x8xf32>
    "tpu.trace_stop"() : () -> ()
    %cst_56 = arith.constant dense<0xFF800000> : vector<8x1xf32>
    %97 = vector.multi_reduction <maximumf>, %96, %cst_56 [2] : vector<8x1x8xf32> to vector<8x1xf32>
    %98 = vector.shape_cast %97 : vector<8x1xf32> to vector<8x1x1xf32>
    %99 = vector.broadcast %98 : vector<8x1x1xf32> to vector<8x1x8xf32>
    %100 = arith.subf %96, %99 : vector<8x1x8xf32>
    %101 = math.exp %100 : vector<8x1x8xf32>
    %cst_57 = arith.constant dense<0.000000e+00> : vector<8x1xf32>
    %102 = vector.multi_reduction <add>, %101, %cst_57 [2] : vector<8x1x8xf32> to vector<8x1xf32>
    %103 = vector.shape_cast %102 : vector<8x1xf32> to vector<8x1x1xf32>
    %104 = tpu.reciprocal %103 {approx = true} : vector<8x1x1xf32> -> vector<8x1x1xf32>
    %105 = vector.broadcast %104 : vector<8x1x1xf32> to vector<8x1x8xf32>
    %106 = arith.mulf %101, %105 : vector<8x1x8xf32>
    "tpu.trace_start"() <{level = 10 : i32, message = "nqt,ntd->nqd"}> : () -> ()
    %cst_58 = arith.constant dense<0.000000e+00> : vector<8x1x128xf32>
    %107 = tpu.matmul %106, %94, %cst_58 {dimension_numbers = #tpu.dot_dimension_numbers<[2], [1], [1], [2], [0, 0, 0, 1, 1, 2], [0], [0]>} : vector<8x1x8xf32>, vector<8x8x128xf32>, vector<8x1x128xf32> -> vector<8x1x128xf32>
    "tpu.trace_stop"() : () -> ()
    %108 = vector.shape_cast %107 : vector<8x1x128xf32> to vector<8x128xf32>
    %109 = vector.shape_cast %106 : vector<8x1x8xf32> to vector<8x8xf32>
    %c0_59 = arith.constant 0 : index
    %c0_60 = arith.constant 0 : index
    %c0_61 = arith.constant 0 : index
    %110 = vector.load %arg18[%c0_59, %c0_60, %c0_61] : memref<1x8x8xf32, #tpu.memory_space<vmem>>, vector<1x8x8xf32>
    %111 = vector.shape_cast %110 : vector<1x8x8xf32> to vector<8x8xf32>
    %112 = vector.shape_cast %109 : vector<8x8xf32> to vector<1x8x8xf32>
    tpu.vector_store %arg18[%c0_59, %c0_60, %c0_61], %112 {strides = array<i32>} : memref<1x8x8xf32, #tpu.memory_space<vmem>>, vector<1x8x8xf32>,
    %c0_62 = arith.constant 0 : index
    %c0_63 = arith.constant 0 : index
    %113 = vector.load %arg23[%c0_62, %c0_63] : memref<8x128xf32, #tpu.memory_space<vmem>>, vector<8x128xf32>
    tpu.vector_store %arg23[%c0_62, %c0_63], %108 {strides = array<i32>} : memref<8x128xf32, #tpu.memory_space<vmem>>, vector<8x128xf32>,
    %c0_64 = arith.constant 0 : index
    %c0_65 = arith.constant 0 : index
    %114 = vector.load %arg14[%c0_64, %c0_65] : memref<128x128xf32, #tpu.memory_space<vmem>>, vector<128x128xf32>
    %cst_66 = arith.constant dense<0.000000e+00> : vector<8x128xf32>
    %115 = tpu.matmul %86, %114, %cst_66 {dimension_numbers = #tpu.dot_dimension_numbers<[1], [0], [0], [1], [0, 0, 1, 1], [], []>} : vector<8x128xf32>, vector<128x128xf32>, vector<8x128xf32> -> vector<8x128xf32>
    %c0_67 = arith.constant 0 : index
    %c0_68 = arith.constant 0 : index
    %116 = vector.load %arg15[%c0_67, %c0_68] : memref<128x128xf32, #tpu.memory_space<vmem>>, vector<128x128xf32>
    %cst_69 = arith.constant dense<0.000000e+00> : vector<8x128xf32>
    %117 = tpu.matmul %108, %116, %cst_69 {dimension_numbers = #tpu.dot_dimension_numbers<[1], [0], [0], [1], [0, 0, 1, 1], [], []>} : vector<8x128xf32>, vector<128x128xf32>, vector<8x128xf32> -> vector<8x128xf32>
    %118 = arith.addf %115, %117 : vector<8x128xf32>
    %c0_70 = arith.constant 0 : index
    %c0_71 = arith.constant 0 : index
    %119 = vector.load %arg16[%c0_70, %c0_71] : memref<1x128xf32, #tpu.memory_space<vmem>>, vector<1x128xf32>
    %120 = vector.broadcast %119 : vector<1x128xf32> to vector<8x128xf32>
    %121 = arith.addf %118, %120 : vector<8x128xf32>
    %c0_72 = arith.constant 0 : index
    %c0_73 = arith.constant 0 : index
    %c0_74 = arith.constant 0 : index
    %122 = vector.load %arg17[%c0_72, %c0_73, %c0_74] : memref<1x8x128xf32, #tpu.memory_space<vmem>>, vector<1x8x128xf32>
    %123 = vector.shape_cast %122 : vector<1x8x128xf32> to vector<8x128xf32>
    %124 = vector.shape_cast %121 : vector<8x128xf32> to vector<1x8x128xf32>
    tpu.vector_store %arg17[%c0_72, %c0_73, %c0_74], %124 {strides = array<i32>} : memref<1x8x128xf32, #tpu.memory_space<vmem>>, vector<1x8x128xf32>,
    %cst_75 = arith.constant dense<0xFF800000> : vector<8xf32>
    %125 = vector.multi_reduction <maximumf>, %121, %cst_75 [1] : vector<8x128xf32> to vector<8xf32>
    %126 = vector.shape_cast %125 : vector<8xf32> to vector<8x1xf32>
    %127 = vector.broadcast %126 : vector<8x1xf32> to vector<8x128xf32>
    %128 = arith.cmpf oeq, %121, %127 : vector<8x128xf32>
    %c128_i32 = arith.constant 128 : i32
    %129 = vector.broadcast %c128_i32 : i32 to vector<8x128xi32>
    %130 = arith.select %128, %3, %129 : vector<8x128xi1>, vector<8x128xi32>
    %cst_76 = arith.constant dense<2147483647> : vector<8xi32>
    %131 = vector.multi_reduction <minsi>, %130, %cst_76 [1] : vector<8x128xi32> to vector<8xi32>
    %132 = vector.shape_cast %131 : vector<8xi32> to vector<8x1xi32>
    %133 = arith.index_cast %arg0 : i32 to index
    %134 = memref.load %arg1[%133] : memref<6xi32, #tpu.memory_space<smem>>
    %c1_i32 = arith.constant 1 : i32
    %135 = arith.cmpi eq, %134, %c1_i32 : i32
    %c0_77 = arith.constant 0 : index
    %c0_78 = arith.constant 0 : index
    %c0_79 = arith.constant 0 : index
    %136 = vector.load %arg2[%c0_77, %c0_78, %c0_79] : memref<1x8x1xi32, #tpu.memory_space<vmem>>, vector<1x8x1xi32>
    %137 = vector.shape_cast %136 : vector<1x8x1xi32> to vector<8x1xi32>
    %138 = arith.select %135, %137, %132 : vector<8x1xi32>
    %c0_80 = arith.constant 0 : index
    %c0_81 = arith.constant 0 : index
    %139 = vector.load %arg24[%c0_80, %c0_81] : memref<8x1xi32, #tpu.memory_space<vmem>>, vector<8x1xi32>
    tpu.vector_store %arg24[%c0_80, %c0_81], %138 {strides = array<i32>} : memref<8x1xi32, #tpu.memory_space<vmem>>, vector<8x1xi32>,
    return
  }
  func.func @transform_0(%arg0: i32, %arg1: memref<6xi32, #tpu.memory_space<smem>>) -> (i32, i32, i32) {
    %c0_i32 = arith.constant 0 : i32
    %c0_i32_0 = arith.constant 0 : i32
    %c0_i32_1 = arith.constant 0 : i32
    return %arg0, %c0_i32, %c0_i32_0 : i32, i32, i32
  }
  func.func @transform_1(%arg0: i32, %arg1: memref<6xi32, #tpu.memory_space<smem>>) -> (i32, i32, i32) {
    %c0_i32 = arith.constant 0 : i32
    %c0_i32_0 = arith.constant 0 : i32
    %c0_i32_1 = arith.constant 0 : i32
    %c0_i32_2 = arith.constant 0 : i32
    return %c0_i32, %c0_i32_0, %c0_i32_1 : i32, i32, i32
  }
  func.func @transform_2(%arg0: i32, %arg1: memref<6xi32, #tpu.memory_space<smem>>) -> (i32, i32) {
    %c0_i32 = arith.constant 0 : i32
    %c0_i32_0 = arith.constant 0 : i32
    %c0_i32_1 = arith.constant 0 : i32
    return %c0_i32, %c0_i32_0 : i32, i32
  }
  func.func @transform_3(%arg0: i32, %arg1: memref<6xi32, #tpu.memory_space<smem>>) -> (i32, i32) {
    %c0_i32 = arith.constant 0 : i32
    %c0_i32_0 = arith.constant 0 : i32
    %c0_i32_1 = arith.constant 0 : i32
    return %c0_i32, %c0_i32_0 : i32, i32
  }
  func.func @transform_4(%arg0: i32, %arg1: memref<6xi32, #tpu.memory_space<smem>>) -> (i32, i32) {
    %c0_i32 = arith.constant 0 : i32
    %c0_i32_0 = arith.constant 0 : i32
    %c0_i32_1 = arith.constant 0 : i32
    return %c0_i32, %c0_i32_0 : i32, i32
  }
  func.func @transform_5(%arg0: i32, %arg1: memref<6xi32, #tpu.memory_space<smem>>) -> (i32, i32) {
    %c0_i32 = arith.constant 0 : i32
    %c0_i32_0 = arith.constant 0 : i32
    %c0_i32_1 = arith.constant 0 : i32
    return %c0_i32, %c0_i32_0 : i32, i32
  }
  func.func @transform_6(%arg0: i32, %arg1: memref<6xi32, #tpu.memory_space<smem>>) -> (i32, i32) {
    %c0_i32 = arith.constant 0 : i32
    %c0_i32_0 = arith.constant 0 : i32
    %c0_i32_1 = arith.constant 0 : i32
    return %c0_i32, %c0_i32_0 : i32, i32
  }
  func.func @transform_7(%arg0: i32, %arg1: memref<6xi32, #tpu.memory_space<smem>>) -> (i32, i32) {
    %c0_i32 = arith.constant 0 : i32
    %c0_i32_0 = arith.constant 0 : i32
    %c0_i32_1 = arith.constant 0 : i32
    return %c0_i32, %c0_i32_0 : i32, i32
  }
  func.func @transform_8(%arg0: i32, %arg1: memref<6xi32, #tpu.memory_space<smem>>) -> (i32, i32) {
    %c0_i32 = arith.constant 0 : i32
    %c0_i32_0 = arith.constant 0 : i32
    %c0_i32_1 = arith.constant 0 : i32
    return %c0_i32, %c0_i32_0 : i32, i32
  }
  func.func @transform_9(%arg0: i32, %arg1: memref<6xi32, #tpu.memory_space<smem>>) -> (i32, i32) {
    %c0_i32 = arith.constant 0 : i32
    %c0_i32_0 = arith.constant 0 : i32
    %c0_i32_1 = arith.constant 0 : i32
    return %c0_i32, %c0_i32_0 : i32, i32
  }
  func.func @transform_10(%arg0: i32, %arg1: memref<6xi32, #tpu.memory_space<smem>>) -> (i32, i32) {
    %c0_i32 = arith.constant 0 : i32
    %c0_i32_0 = arith.constant 0 : i32
    %c0_i32_1 = arith.constant 0 : i32
    return %c0_i32, %c0_i32_0 : i32, i32
  }
  func.func @transform_11(%arg0: i32, %arg1: memref<6xi32, #tpu.memory_space<smem>>) -> (i32, i32) {
    %c0_i32 = arith.constant 0 : i32
    %c0_i32_0 = arith.constant 0 : i32
    %c0_i32_1 = arith.constant 0 : i32
    return %c0_i32, %c0_i32_0 : i32, i32
  }
  func.func @transform_12(%arg0: i32, %arg1: memref<6xi32, #tpu.memory_space<smem>>) -> (i32, i32) {
    %c0_i32 = arith.constant 0 : i32
    %c0_i32_0 = arith.constant 0 : i32
    %c0_i32_1 = arith.constant 0 : i32
    return %c0_i32, %c0_i32_0 : i32, i32
  }
  func.func @transform_13(%arg0: i32, %arg1: memref<6xi32, #tpu.memory_space<smem>>) -> (i32, i32) {
    %c0_i32 = arith.constant 0 : i32
    %c0_i32_0 = arith.constant 0 : i32
    %c0_i32_1 = arith.constant 0 : i32
    return %c0_i32, %c0_i32_0 : i32, i32
  }
  func.func @transform_14(%arg0: i32, %arg1: memref<6xi32, #tpu.memory_space<smem>>) -> (i32, i32) {
    %c0_i32 = arith.constant 0 : i32
    %c0_i32_0 = arith.constant 0 : i32
    %c0_i32_1 = arith.constant 0 : i32
    return %c0_i32, %c0_i32_0 : i32, i32
  }
  func.func @transform_15(%arg0: i32, %arg1: memref<6xi32, #tpu.memory_space<smem>>) -> (i32, i32, i32) {
    %c0_i32 = arith.constant 0 : i32
    %c0_i32_0 = arith.constant 0 : i32
    %c0_i32_1 = arith.constant 0 : i32
    return %arg0, %c0_i32, %c0_i32_0 : i32, i32, i32
  }
  func.func @transform_16(%arg0: i32, %arg1: memref<6xi32, #tpu.memory_space<smem>>) -> (i32, i32, i32) {
    %c0_i32 = arith.constant 0 : i32
    %c0_i32_0 = arith.constant 0 : i32
    %c0_i32_1 = arith.constant 0 : i32
    return %arg0, %c0_i32, %c0_i32_0 : i32, i32, i32
  }
}

</mosaic_0001>

<llo_original>
// kernel: seq2seq_forward.3
$region0: #{seq2seq_forward.3}
  #allocation0 [shape = 'u32[]', space=smem, size = 0x4, offset = 0x4, fixed_abs, tag = 'smem constant byte address 0x4 - core index']
  #allocation1 [shape = 'u32[144,128]{1,0:T(1,128)}', space=vmem, size = 0x12000, scoped, tag = 'internal scratch']
  %s0 = inlined_call_operand.vmem [shape: f32[64,16], index: 0, kind: input, shape index: {}]
  %s1 = inlined_call_operand.vmem [shape: f32[16,512], index: 1, kind: input, shape index: {}]
  %s2 = inlined_call_operand.vmem [shape: f32[1,512], index: 2, kind: input, shape index: {}]
  %s3 = inlined_call_operand.vmem [shape: f32[64,512], index: 3, kind: output, shape index: {}]
  %s4 = sld [smem:[#allocation0]]
  $region22: #{seq2seq_forward.3} parent=0
    _
  %s6 = ssub.s32 1, %s4
  %s7 = scalar_select 0, %s6, %s4
  // Predicated region
  $region2: #{seq2seq_forward.3} parent=0 // pred_check
    _
  $region3: #{seq2seq_forward.3} parent=0 // pred_check_branch
    %9 = sbr.rel (0) target = $region5
  $region4: #{seq2seq_forward.3} parent=0 // pred_region
    _
  $region5: #{seq2seq_forward.3} parent=0 // pred_fallthru
    _
  // Predicated region
  $region6: #{seq2seq_forward.3} parent=0 // pred_check
    _
  $region7: #{seq2seq_forward.3} parent=0 // pred_check_branch
    %11 = sbr.rel (0) target = $region9
  $region8: #{seq2seq_forward.3} parent=0 // pred_region
    _
  $region9: #{seq2seq_forward.3} parent=0 // pred_fallthru
    _
  // Predicated region
  $region10: #{seq2seq_forward.3} parent=0 // pred_check
    _
  $region11: #{seq2seq_forward.3} parent=0 // pred_check_branch
    %13 = sbr.rel (0) target = $region13
  $region12: #{seq2seq_forward.3} parent=0 // pred_region
    _
  $region13: #{seq2seq_forward.3} parent=0 // pred_fallthru
    _
  %v14 = vld [vmem:[%s0] sm:$0xff]
  %v15 = vld [vmem:[%s0 + $0x8] sm:$0xff]
  %v16 = vld [vmem:[%s0 + $0x10] sm:$0xff]
  %v17 = vld [vmem:[%s0 + $0x18] sm:$0xff]
  %v18 = vld [vmem:[%s0 + $0x20] sm:$0xff]
  %v19 = vld [vmem:[%s0 + $0x28] sm:$0xff]
  %v20 = vld [vmem:[%s0 + $0x30] sm:$0xff]
  %v21 = vld [vmem:[%s0 + $0x38] sm:$0xff]
  %v22 = vld [vmem:[%s1] sm:$0xff]
  %v23 = vld [vmem:[%s1 + $0x8] sm:$0xff]
  %v24 = vld [vmem:[%s1 + $0x10] sm:$0xff]
  %v25 = vld [vmem:[%s1 + $0x18] sm:$0xff]
  %v26 = vld [vmem:[%s1 + $0x20] sm:$0xff]
  %v27 = vld [vmem:[%s1 + $0x28] sm:$0xff]
  %v28 = vld [vmem:[%s1 + $0x30] sm:$0xff]
  %v29 = vld [vmem:[%s1 + $0x38] sm:$0xff]
  %v30 = vld [vmem:[%s2] sm:$0xf]
  %v32 = vlaneseq
  %v33 = vshrl.u32 %v32, 7
  %v34 = vsub.s32 0, %v33
  %v35 = vrot.slane %v30, %v34
  %v36 = vlaneseq
  %v37 = vshrl.u32 %v36, 7
  %v38 = vsub.s32 1, %v37
  %v39 = vrot.slane %v30, %v38
  %v40 = vlaneseq
  %v41 = vshrl.u32 %v40, 7
  %v42 = vsub.s32 2, %v41
  %v43 = vrot.slane %v30, %v42
  %v44 = vlaneseq
  %v45 = vshrl.u32 %v44, 7
  %v46 = vsub.s32 3, %v45
  %v47 = vrot.slane %v30, %v46
  %vm52 = vcmask 130048
  %v54 = vsel %vm52, %v14, 0
  %v57 = vsel %vm52, %v15, 0
  %v60 = vsel %vm52, %v16, 0
  %v63 = vsel %vm52, %v17, 0
  %v66 = vsel %vm52, %v18, 0
  %v69 = vsel %vm52, %v19, 0
  %v72 = vsel %vm52, %v20, 0
  %v75 = vsel %vm52, %v21, 0
  %77 = vmatprep.subr.mxu0 %v23
  %78 = vmatpush1.msra.mxu0 %v22
  %79 = vmatprep.subr.mxu0 %v27
  %80 = vmatpush1.msra.mxu0 %v26
  %81 = vmatprep.subr.mxu0 0.0
  %82 = vmatpush1.msra.mxu0 0.0
  %83 = vmatprep.subr.mxu0 0.0
  %84 = vmatpush1.msra.mxu0 0.0
  %85 = vmatprep.subr.mxu0 0.0
  %86 = vmatpush1.msra.mxu0 0.0
  %87 = vmatprep.subr.mxu0 0.0
  %88 = vmatpush1.msra.mxu0 0.0
  %89 = vmatprep.subr.mxu0 0.0
  %90 = vmatpush1.msra.mxu0 0.0
  %91 = vmatprep.subr.mxu0 0.0
  %92 = vmatpush1.msra.mxu0 0.0
  %93 = vmatprep.subr.mxu0 0.0
  %94 = vmatpush1.msra.mxu0 0.0
  %95 = vmatprep.subr.mxu0 0.0
  %96 = vmatpush1.msra.mxu0 0.0
  %97 = vmatprep.subr.mxu0 0.0
  %98 = vmatpush1.msra.mxu0 0.0
  %99 = vmatprep.subr.mxu0 0.0
  %100 = vmatpush1.msra.mxu0 0.0
  %101 = vmatprep.subr.mxu0 0.0
  %102 = vmatpush1.msra.mxu0 0.0
  %103 = vmatprep.subr.mxu0 0.0
  %104 = vmatpush1.msra.mxu0 0.0
  %105 = vmatprep.subr.mxu0 0.0
  %106 = vmatpush1.msra.mxu0 0.0
  %107 = vmatprep.subr.mxu0 0.0
  %108 = vmatpush1.msra.mxu0 0.0
  %109 = vmatprep.subr.mxu0 0.0
  %110 = vmatpush1.msra.mxu0 0.0
  %111 = vmatprep.subr.mxu0 0.0
  %112 = vmatpush1.msra.mxu0 0.0
  %113 = vmatprep.subr.mxu0 0.0
  %114 = vmatpush1.msra.mxu0 0.0
  %115 = vmatprep.subr.mxu0 0.0
  %116 = vmatpush1.msra.mxu0 0.0
  %117 = vmatprep.subr.mxu0 0.0
  %118 = vmatpush1.msra.mxu0 0.0
  %119 = vmatprep.subr.mxu0 0.0
  %120 = vmatpush1.msra.mxu0 0.0
  %121 = vmatprep.subr.mxu0 0.0
  %122 = vmatpush1.msra.mxu0 0.0
  %123 = vmatprep.subr.mxu0 0.0
  %124 = vmatpush1.msra.mxu0 0.0
  %125 = vmatprep.subr.mxu0 0.0
  %126 = vmatpush1.msra.mxu0 0.0
  %127 = vmatprep.subr.mxu0 0.0
  %128 = vmatpush1.msra.mxu0 0.0
  %129 = vmatprep.subr.mxu0 0.0
  %130 = vmatpush1.msra.mxu0 0.0
  %131 = vmatprep.subr.mxu0 0.0
  %132 = vmatpush1.msra.mxu0 0.0
  %133 = vmatprep.subr.mxu0 0.0
  %134 = vmatpush1.msra.mxu0 0.0
  %135 = vmatprep.subr.mxu0 0.0
  %136 = vmatpush1.msra.mxu0 0.0
  %137 = vmatprep.subr.mxu0 0.0
  %138 = vmatpush1.msra.mxu0 0.0
  %139 = vmatprep.subr.mxu0 0.0
  %140 = vmatpush1.msra.mxu0 0.0
  %141 = vmatprep.mubr.f32.mxu0 0.0
  %142 = vmatmul.mubr.f32.gmra.mrb[0].mxu0 %v54
  %v143 = vpop.f32.mrb[0].mxu0
  %v144 = vadd.f32 %v35, %v143
  %v145 = vpop.f32.mrb[0].mxu0
  %v146 = vadd.f32 %v39, %v145
  %147 = vmatprep.mubr.f32.mxu0 0.0
  %148 = vmatmul.mubr.f32.gmra.mrb[0].mxu0 %v57
  %v149 = vpop.f32.mrb[0].mxu0
  %v150 = vadd.f32 %v35, %v149
  %v151 = vpop.f32.mrb[0].mxu0
  %v152 = vadd.f32 %v39, %v151
  %153 = vmatprep.mubr.f32.mxu0 0.0
  %154 = vmatmul.mubr.f32.gmra.mrb[0].mxu0 %v60
  %v155 = vpop.f32.mrb[0].mxu0
  %v156 = vadd.f32 %v35, %v155
  %v157 = vpop.f32.mrb[0].mxu0
  %v158 = vadd.f32 %v39, %v157
  %159 = vmatprep.mubr.f32.mxu0 0.0
  %160 = vmatmul.mubr.f32.gmra.mrb[0].mxu0 %v63
  %v161 = vpop.f32.mrb[0].mxu0
  %v162 = vadd.f32 %v35, %v161
  %v163 = vpop.f32.mrb[0].mxu0
  %v164 = vadd.f32 %v39, %v163
  %165 = vmatprep.mubr.f32.mxu0 0.0
  %166 = vmatmul.mubr.f32.gmra.mrb[0].mxu0 %v66
  %v167 = vpop.f32.mrb[0].mxu0
  %v168 = vadd.f32 %v35, %v167
  %v169 = vpop.f32.mrb[0].mxu0
  %v170 = vadd.f32 %v39, %v169
  %171 = vmatprep.mubr.f32.mxu0 0.0
  %172 = vmatmul.mubr.f32.gmra.mrb[0].mxu0 %v69
  %v173 = vpop.f32.mrb[0].mxu0
  %v174 = vadd.f32 %v35, %v173
  %v175 = vpop.f32.mrb[0].mxu0
  %v176 = vadd.f32 %v39, %v175
  %177 = vmatprep.mubr.f32.mxu0 0.0
  %178 = vmatmul.mubr.f32.gmra.mrb[0].mxu0 %v72
  %v179 = vpop.f32.mrb[0].mxu0
  %v180 = vadd.f32 %v35, %v179
  %v181 = vpop.f32.mrb[0].mxu0
  %v182 = vadd.f32 %v39, %v181
  %183 = vmatprep.mubr.f32.mxu0 0.0
  %184 = vmatmul.mubr.f32.gmra.mrb[0].mxu0 %v75
  %v185 = vpop.f32.mrb[0].mxu0
  %v186 = vadd.f32 %v35, %v185
  %v187 = vpop.f32.mrb[0].mxu0
  %v188 = vadd.f32 %v39, %v187
  %189 = vdwg.mxu0
  %190 = vmatprep.subr.mxu0 %v25
  %191 = vmatpush1.msra.mxu0 %v24
  %192 = vmatprep.subr.mxu0 %v29
  %193 = vmatpush1.msra.mxu0 %v28
  %194 = vmatprep.subr.mxu0 0.0
  %195 = vmatpush1.msra.mxu0 0.0
  %196 = vmatprep.subr.mxu0 0.0
  %197 = vmatpush1.msra.mxu0 0.0
  %198 = vmatprep.subr.mxu0 0.0
  %199 = vmatpush1.msra.mxu0 0.0
  %200 = vmatprep.subr.mxu0 0.0
  %201 = vmatpush1.msra.mxu0 0.0
  %202 = vmatprep.subr.mxu0 0.0
  %203 = vmatpush1.msra.mxu0 0.0
  %204 = vmatprep.subr.mxu0 0.0
  %205 = vmatpush1.msra.mxu0 0.0
  %206 = vmatprep.subr.mxu0 0.0
  %207 = vmatpush1.msra.mxu0 0.0
  %208 = vmatprep.subr.mxu0 0.0
  %209 = vmatpush1.msra.mxu0 0.0
  %210 = vmatprep.subr.mxu0 0.0
  %211 = vmatpush1.msra.mxu0 0.0
  %212 = vmatprep.subr.mxu0 0.0
  %213 = vmatpush1.msra.mxu0 0.0
  %214 = vmatprep.subr.mxu0 0.0
  %215 = vmatpush1.msra.mxu0 0.0
  %216 = vmatprep.subr.mxu0 0.0
  %217 = vmatpush1.msra.mxu0 0.0
  %218 = vmatprep.subr.mxu0 0.0
  %219 = vmatpush1.msra.mxu0 0.0
  %220 = vmatprep.subr.mxu0 0.0
  %221 = vmatpush1.msra.mxu0 0.0
  %222 = vmatprep.subr.mxu0 0.0
  %223 = vmatpush1.msra.mxu0 0.0
  %224 = vmatprep.subr.mxu0 0.0
  %225 = vmatpush1.msra.mxu0 0.0
  %226 = vmatprep.subr.mxu0 0.0
  %227 = vmatpush1.msra.mxu0 0.0
  %228 = vmatprep.subr.mxu0 0.0
  %229 = vmatpush1.msra.mxu0 0.0
  %230 = vmatprep.subr.mxu0 0.0
  %231 = vmatpush1.msra.mxu0 0.0
  %232 = vmatprep.subr.mxu0 0.0
  %233 = vmatpush1.msra.mxu0 0.0
  %234 = vmatprep.subr.mxu0 0.0
  %235 = vmatpush1.msra.mxu0 0.0
  %236 = vmatprep.subr.mxu0 0.0
  %237 = vmatpush1.msra.mxu0 0.0
  %238 = vmatprep.subr.mxu0 0.0
  %239 = vmatpush1.msra.mxu0 0.0
  %240 = vmatprep.subr.mxu0 0.0
  %241 = vmatpush1.msra.mxu0 0.0
  %242 = vmatprep.subr.mxu0 0.0
  %243 = vmatpush1.msra.mxu0 0.0
  %244 = vmatprep.subr.mxu0 0.0
  %245 = vmatpush1.msra.mxu0 0.0
  %246 = vmatprep.subr.mxu0 0.0
  %247 = vmatpush1.msra.mxu0 0.0
  %248 = vmatprep.subr.mxu0 0.0
  %249 = vmatpush1.msra.mxu0 0.0
  %250 = vmatprep.subr.mxu0 0.0
  %251 = vmatpush1.msra.mxu0 0.0
  %252 = vmatprep.subr.mxu0 0.0
  %253 = vmatpush1.msra.mxu0 0.0
  %254 = vmatprep.mubr.f32.mxu0 0.0
  %255 = vmatmul.mubr.f32.gmra.mrb[0].mxu0 %v54
  %v256 = vpop.f32.mrb[0].mxu0
  %v257 = vadd.f32 %v43, %v256
  %v258 = vpop.f32.mrb[0].mxu0
  %v259 = vadd.f32 %v47, %v258
  %260 = vmatprep.mubr.f32.mxu0 0.0
  %261 = vmatmul.mubr.f32.gmra.mrb[0].mxu0 %v57
  %v262 = vpop.f32.mrb[0].mxu0
  %v263 = vadd.f32 %v43, %v262
  %v264 = vpop.f32.mrb[0].mxu0
  %v265 = vadd.f32 %v47, %v264
  %266 = vmatprep.mubr.f32.mxu0 0.0
  %267 = vmatmul.mubr.f32.gmra.mrb[0].mxu0 %v60
  %v268 = vpop.f32.mrb[0].mxu0
  %v269 = vadd.f32 %v43, %v268
  %v270 = vpop.f32.mrb[0].mxu0
  %v271 = vadd.f32 %v47, %v270
  %272 = vmatprep.mubr.f32.mxu0 0.0
  %273 = vmatmul.mubr.f32.gmra.mrb[0].mxu0 %v63
  %v274 = vpop.f32.mrb[0].mxu0
  %v275 = vadd.f32 %v43, %v274
  %v276 = vpop.f32.mrb[0].mxu0
  %v277 = vadd.f32 %v47, %v276
  %278 = vmatprep.mubr.f32.mxu0 0.0
  %279 = vmatmul.mubr.f32.gmra.mrb[0].mxu0 %v66
  %v280 = vpop.f32.mrb[0].mxu0
  %v281 = vadd.f32 %v43, %v280
  %v282 = vpop.f32.mrb[0].mxu0
  %v283 = vadd.f32 %v47, %v282
  %284 = vmatprep.mubr.f32.mxu0 0.0
  %285 = vmatmul.mubr.f32.gmra.mrb[0].mxu0 %v69
  %v286 = vpop.f32.mrb[0].mxu0
  %v287 = vadd.f32 %v43, %v286
  %v288 = vpop.f32.mrb[0].mxu0
  %v289 = vadd.f32 %v47, %v288
  %290 = vmatprep.mubr.f32.mxu0 0.0
  %291 = vmatmul.mubr.f32.gmra.mrb[0].mxu0 %v72
  %v292 = vpop.f32.mrb[0].mxu0
  %v293 = vadd.f32 %v43, %v292
  %v294 = vpop.f32.mrb[0].mxu0
  %v295 = vadd.f32 %v47, %v294
  %296 = vmatprep.mubr.f32.mxu0 0.0
  %297 = vmatmul.mubr.f32.gmra.mrb[0].mxu0 %v75
  %v298 = vpop.f32.mrb[0].mxu0
  %v299 = vadd.f32 %v43, %v298
  %v300 = vpop.f32.mrb[0].mxu0
  %v301 = vadd.f32 %v47, %v300
  %302 = vdwg.mxu0
  %303 = vst [vmem:[%s3] sm:$0xff] %v144
  %304 = vst [vmem:[%s3 + $0x8] sm:$0xff] %v146
  %305 = vst [vmem:[%s3 + $0x10] sm:$0xff] %v257
  %306 = vst [vmem:[%s3 + $0x18] sm:$0xff] %v259
  %307 = vst [vmem:[%s3 + $0x20] sm:$0xff] %v150
  %308 = vst [vmem:[%s3 + $0x28] sm:$0xff] %v152
  %309 = vst [vmem:[%s3 + $0x30] sm:$0xff] %v263
  %310 = vst [vmem:[%s3 + $0x38] sm:$0xff] %v265
  %311 = vst [vmem:[%s3 + $0x40] sm:$0xff] %v156
  %312 = vst [vmem:[%s3 + $0x48] sm:$0xff] %v158
  %313 = vst [vmem:[%s3 + $0x50] sm:$0xff] %v269
  %314 = vst [vmem:[%s3 + $0x58] sm:$0xff] %v271
  %315 = vst [vmem:[%s3 + $0x60] sm:$0xff] %v162
  %316 = vst [vmem:[%s3 + $0x68] sm:$0xff] %v164
  %317 = vst [vmem:[%s3 + $0x70] sm:$0xff] %v275
  %318 = vst [vmem:[%s3 + $0x78] sm:$0xff] %v277
  %319 = vst [vmem:[%s3 + $0x80] sm:$0xff] %v168
  %320 = vst [vmem:[%s3 + $0x88] sm:$0xff] %v170
  %321 = vst [vmem:[%s3 + $0x90] sm:$0xff] %v281
  %322 = vst [vmem:[%s3 + $0x98] sm:$0xff] %v283
  %323 = vst [vmem:[%s3 + $0xa0] sm:$0xff] %v174
  %324 = vst [vmem:[%s3 + $0xa8] sm:$0xff] %v176
  %325 = vst [vmem:[%s3 + $0xb0] sm:$0xff] %v287
  %326 = vst [vmem:[%s3 + $0xb8] sm:$0xff] %v289
  %327 = vst [vmem:[%s3 + $0xc0] sm:$0xff] %v180
  %328 = vst [vmem:[%s3 + $0xc8] sm:$0xff] %v182
  %329 = vst [vmem:[%s3 + $0xd0] sm:$0xff] %v293
  %330 = vst [vmem:[%s3 + $0xd8] sm:$0xff] %v295
  %331 = vst [vmem:[%s3 + $0xe0] sm:$0xff] %v186
  %332 = vst [vmem:[%s3 + $0xe8] sm:$0xff] %v188
  %333 = vst [vmem:[%s3 + $0xf0] sm:$0xff] %v299
  %334 = vst [vmem:[%s3 + $0xf8] sm:$0xff] %v301
  // Predicated region
  $region14: #{seq2seq_forward.3} parent=0 // pred_check
    _
  $region15: #{seq2seq_forward.3} parent=0 // pred_check_branch
    %336 = sbr.rel (0) target = $region17
  $region16: #{seq2seq_forward.3} parent=0 // pred_region
    _
  $region17: #{seq2seq_forward.3} parent=0 // pred_fallthru
    _
  // Predicated region
  $region18: #{seq2seq_forward.3} parent=0 // pred_check
    _
  $region19: #{seq2seq_forward.3} parent=0 // pred_check_branch
    %338 = sbr.rel (0) target = $region21
  $region20: #{seq2seq_forward.3} parent=0 // pred_region
    _
  $region21: #{seq2seq_forward.3} parent=0 // pred_fallthru
    _

// kernel: seq2seq_forward.4
$region0: #{seq2seq_forward.4}
  #allocation0 [shape = 'u32[]', space=smem, size = 0x4, offset = 0x4, fixed_abs, tag = 'smem constant byte address 0x4 - core index']
  #allocation1 [shape = 'u32[144,128]{1,0:T(1,128)}', space=vmem, size = 0x12000, scoped, tag = 'internal scratch']
  #allocation2 [shape = 'f32[8,128]{1,0:T(8,128)}', space=vmem, size = 0x1000, scoped, tag = 'scratch operand']
  #allocation3 [shape = 'f32[8,128]{1,0:T(8,128)}', space=vmem, size = 0x1000, scoped, tag = 'scratch operand']
  %s0 = inlined_call_operand.vmem [shape: f32[8,8,512], index: 0, kind: input, shape index: {}]
  %s1 = inlined_call_operand.vmem [shape: f32[128,512], index: 1, kind: input, shape index: {}]
  %s2 = inlined_call_operand.vmem [shape: f32[8,8,128], index: 2, kind: output, shape index: {}]
  %s3 = sld [smem:[#allocation0]]
  $region45: #{seq2seq_forward.4} parent=0
    _
  %s5 = ssub.s32 1, %s3
  %s6 = scalar_select 0, %s5, %s3
  loop: start=0, step=1, limit=10
  $region2: #{seq2seq_forward.4} parent=0 // loop_pre_header
    _
  $region3: #{seq2seq_forward.4} parent=0 // loop_header
    %s8 = sphi 0, %s12
    %p9 = scmp.ge.s32.totalorder %s8, 10
    %s18 = sphi 0, %s20
    %s21 = sphi 0, %s18
    %s22 = sphi 0, %s21
    %s38 = sphi 0, %s22
    %s42 = sphi 0, %s42
    %s44 = sphi 0, %s42
    %s45 = sphi 0, %s44
    %s59 = sphi 0, %s45
    %s65 = sphi 0, %s67
    %s68 = sphi 0, %s65
    %s69 = sphi 0, %s68
    %s85 = sphi 0, %s69
  $region4: #{seq2seq_forward.4} parent=0 // loop_header_branch
    %11 = sbr.rel (%p9) target = $region8
  $region5: #{seq2seq_forward.4} parent=0 // loop_body
    %s13 = ssub.s32 %s8, 1
    %s14 = ssub.s32 %s8, 2
    %s15 = sadd.s32 %s8, 1
    %s16 = ssub.s32 %s8, %s15
    %p17 = scmp.eq.s32.totalorder %s16, 0
    %s19 = sadd.s32 %s18, 1
    %s20 = scalar_select %p17, %s18, %s19
    %p23 = pneg %p17
    %p24 = scmp.eq.s32.totalorder %s8, 7
    %p25 = por %p23, %p24
    %p26 = scmp.ne.s32.totalorder %s18, %s21
    %p27 = scmp.eq.s32.totalorder %s8, 0
    %p28 = por %p26, %p27
    %p29 = scmp.ne.s32.totalorder %s18, %s21
    %p30 = scmp.eq.s32.totalorder %s13, 7
    %p31 = por %p29, %p30
    %p32 = scmp.ne.s32.totalorder %s21, %s22
    %p33 = scmp.eq.s32.totalorder %s13, 0
    %p34 = por %p32, %p33
    %p35 = scmp.ne.s32.totalorder %s21, %s22
    %p36 = scmp.eq.s32.totalorder %s14, 7
    %p37 = por %p35, %p36
    %p39 = scmp.ne.s32.totalorder %s22, %s38
    %p40 = scmp.eq.s32.totalorder %s14, 0
    %p41 = por %p39, %p40
    %s43 = sadd.s32 %s42, 1
    %p46 = scmp.eq.s32.totalorder %s8, 7
    %p47 = scmp.ne.s32.totalorder %s42, %s44
    %p48 = scmp.eq.s32.totalorder %s8, 0
    %p49 = por %p47, %p48
    %p50 = scmp.ne.s32.totalorder %s42, %s44
    %p51 = scmp.eq.s32.totalorder %s13, 7
    %p52 = por %p50, %p51
    %p53 = scmp.ne.s32.totalorder %s44, %s45
    %p54 = scmp.eq.s32.totalorder %s13, 0
    %p55 = por %p53, %p54
    %p56 = scmp.ne.s32.totalorder %s44, %s45
    %p57 = scmp.eq.s32.totalorder %s14, 7
    %p58 = por %p56, %p57
    %p60 = scmp.ne.s32.totalorder %s45, %s59
    %p61 = scmp.eq.s32.totalorder %s14, 0
    %p62 = por %p60, %p61
    %s63 = ssub.s32 %s8, %s15
    %p64 = scmp.eq.s32.totalorder %s63, 0
    %s66 = sadd.s32 %s65, 1
    %s67 = scalar_select %p64, %s65, %s66
    %p70 = pneg %p64
    %p71 = scmp.eq.s32.totalorder %s8, 7
    %p72 = por %p70, %p71
    %p73 = scmp.ne.s32.totalorder %s65, %s68
    %p74 = scmp.eq.s32.totalorder %s8, 0
    %p75 = por %p73, %p74
    %p76 = scmp.ne.s32.totalorder %s65, %s68
    %p77 = scmp.eq.s32.totalorder %s13, 7
    %p78 = por %p76, %p77
    %p79 = scmp.ne.s32.totalorder %s68, %s69
    %p80 = scmp.eq.s32.totalorder %s13, 0
    %p81 = por %p79, %p80
    %p82 = scmp.ne.s32.totalorder %s68, %s69
    %p83 = scmp.eq.s32.totalorder %s14, 7
    %p84 = por %p82, %p83
    %p86 = scmp.ne.s32.totalorder %s69, %s85
    %p87 = scmp.eq.s32.totalorder %s14, 0
    %p88 = por %p86, %p87
    %p89 = scmp.le.s32.totalorder 1, %s8
    %p90 = scmp.lt.s32.totalorder %s8, 9
    %p91 = pnand %p89, %p90
    %p92 = pneg %p91
    // Predicated region
    $region9: #{seq2seq_forward.4} parent=5 // pred_check
      _
    $region10: #{seq2seq_forward.4} parent=5 // pred_check_branch
      %94 = sbr.rel (%p91) target = $region12
    $region11: #{seq2seq_forward.4} parent=5 // pred_region
      %s95 = ssub.s32 %s8, 1
      // Predicated region
      $region13: #{seq2seq_forward.4} parent=11 // pred_check
        %p96 = pneg %p55
      $region14: #{seq2seq_forward.4} parent=11 // pred_check_branch
        %98 = sbr.rel (%p96) target = $region16
      $region15: #{seq2seq_forward.4} parent=11 // pred_region
        _
      $region16: #{seq2seq_forward.4} parent=11 // pred_fallthru
        _
    $region12: #{seq2seq_forward.4} parent=5 // pred_fallthru
      _
    %p99 = scmp.lt.s32.totalorder %s8, 8
    // Predicated region
    $region17: #{seq2seq_forward.4} parent=5 // pred_check
      %p100 = pneg %p99
    $region18: #{seq2seq_forward.4} parent=5 // pred_check_branch
      %102 = sbr.rel (%p100) target = $region20
    $region19: #{seq2seq_forward.4} parent=5 // pred_region
      // Predicated region
      $region21: #{seq2seq_forward.4} parent=19 // pred_check
        %p103 = pneg %p28
      $region22: #{seq2seq_forward.4} parent=19 // pred_check_branch
        %105 = sbr.rel (%p103) target = $region24
      $region23: #{seq2seq_forward.4} parent=19 // pred_region
        %p106 = scmp.lt.s32.totalorder %s8, 7
        %s107 = scalar_select %p106, %s8, 7
        %s108 = smul.addr %s107, 4
        %s109 = smul.addr %s108, 8
        %s110 = scalar_lea.vmem %s0, %s109
      $region24: #{seq2seq_forward.4} parent=19 // pred_fallthru
        _
    $region20: #{seq2seq_forward.4} parent=5 // pred_fallthru
      _
    %p111 = scmp.le.s32.totalorder 1, %s8
    %p112 = scmp.lt.s32.totalorder %s8, 9
    %p113 = pnand %p111, %p112
    %p114 = pneg %p113
    // Predicated region
    $region25: #{seq2seq_forward.4} parent=5 // pred_check
      _
    $region26: #{seq2seq_forward.4} parent=5 // pred_check_branch
      %116 = sbr.rel (%p113) target = $region28
    $region27: #{seq2seq_forward.4} parent=5 // pred_region
      %s117 = ssub.s32 %s8, 1
      %p118 = scmp.lt.s32.totalorder %s13, 7
      %s119 = scalar_select %p118, %s13, 7
      %s120 = smul.addr %s119, 4
      %s121 = smul.addr %s120, 8
      %s122 = scalar_lea.vmem %s0, %s121
      %p123 = pneg %p34
      %p124 = pneg %p31
      %p125 = pneg %p55
      %p126 = pneg %p52
      %p127 = pneg %p81
      %p128 = pneg %p78
      %p129 = scmp.lt.s32.totalorder %s13, 7
      %s130 = scalar_select %p129, %s13, 7
      %s131 = smul.addr %s130, 8
      %s132 = scalar_lea.vmem %s2, %s131
      %p133 = scmp.lt.s32.totalorder %s13, 7
      %s134 = scalar_select %p133, %s13, 7
      %s135 = smul.addr %s134, 4
      %s136 = smul.addr %s135, 8
      %s137 = scalar_lea.vmem %s0, %s136
      %p138 = scmp.lt.s32.totalorder %s13, 7
      %s139 = scalar_select %p138, %s13, 7
      %s140 = smul.addr %s139, 8
      %s141 = scalar_lea.vmem %s2, %s140
      %p142 = scmp.eq.s32.totalorder %s13, 0
      // Predicated region
      $region29: #{seq2seq_forward.4} parent=27 // pred_check
        %p143 = pneg %p142
      $region30: #{seq2seq_forward.4} parent=27 // pred_check_branch
        %145 = sbr.rel (%p143) target = $region32
      $region31: #{seq2seq_forward.4} parent=27 // pred_region
        %146 = vst [vmem:[#allocation2] sm:$0xff] 0.0
        %147 = vst [vmem:[#allocation3] sm:$0xff] 0.0
      $region32: #{seq2seq_forward.4} parent=27 // pred_fallthru
        _
      %v148 = vld [vmem:[%s137] sm:$0xff]
      %v149 = vld [vmem:[%s137 + $0x8] sm:$0xff]
      %v150 = vld [vmem:[%s137 + $0x10] sm:$0xff]
      %v151 = vld [vmem:[%s137 + $0x18] sm:$0xff]
      %v152 = vld [vmem:[#allocation2] sm:$0xff]
      %v153 = vld [vmem:[%s1] sm:$0xff]
      %v154 = vld [vmem:[%s1 + $0x8] sm:$0xff]
      %v155 = vld [vmem:[%s1 + $0x10] sm:$0xff]
      %v156 = vld [vmem:[%s1 + $0x18] sm:$0xff]
      %v157 = vld [vmem:[%s1 + $0x20] sm:$0xff]
      %v158 = vld [vmem:[%s1 + $0x28] sm:$0xff]
      %v159 = vld [vmem:[%s1 + $0x30] sm:$0xff]
      %v160 = vld [vmem:[%s1 + $0x38] sm:$0xff]
      %v161 = vld [vmem:[%s1 + $0x40] sm:$0xff]
      %v162 = vld [vmem:[%s1 + $0x48] sm:$0xff]
      %v163 = vld [vmem:[%s1 + $0x50] sm:$0xff]
      %v164 = vld [vmem:[%s1 + $0x58] sm:$0xff]
      %v165 = vld [vmem:[%s1 + $0x60] sm:$0xff]
      %v166 = vld [vmem:[%s1 + $0x68] sm:$0xff]
      %v167 = vld [vmem:[%s1 + $0x70] sm:$0xff]
      %v168 = vld [vmem:[%s1 + $0x78] sm:$0xff]
      %v169 = vld [vmem:[%s1 + $0x80] sm:$0xff]
      %v170 = vld [vmem:[%s1 + $0x88] sm:$0xff]
      %v171 = vld [vmem:[%s1 + $0x90] sm:$0xff]
      %v172 = vld [vmem:[%s1 + $0x98] sm:$0xff]
      %v173 = vld [vmem:[%s1 + $0xa0] sm:$0xff]
      %v174 = vld [vmem:[%s1 + $0xa8] sm:$0xff]
      %v175 = vld [vmem:[%s1 + $0xb0] sm:$0xff]
      %v176 = vld [vmem:[%s1 + $0xb8] sm:$0xff]
      %v177 = vld [vmem:[%s1 + $0xc0] sm:$0xff]
      %v178 = vld [vmem:[%s1 + $0xc8] sm:$0xff]
      %v179 = vld [vmem:[%s1 + $0xd0] sm:$0xff]
      %v180 = vld [vmem:[%s1 + $0xd8] sm:$0xff]
      %v181 = vld [vmem:[%s1 + $0xe0] sm:$0xff]
      %v182 = vld [vmem:[%s1 + $0xe8] sm:$0xff]
      %v183 = vld [vmem:[%s1 + $0xf0] sm:$0xff]
      %v184 = vld [vmem:[%s1 + $0xf8] sm:$0xff]
      %v185 = vld [vmem:[%s1 + $0x100] sm:$0xff]
      %v186 = vld [vmem:[%s1 + $0x108] sm:$0xff]
      %v187 = vld [vmem:[%s1 + $0x110] sm:$0xff]
      %v188 = vld [vmem:[%s1 + $0x118] sm:$0xff]
      %v189 = vld [vmem:[%s1 + $0x120] sm:$0xff]
      %v190 = vld [vmem:[%s1 + $0x128] sm:$0xff]
      %v191 = vld [vmem:[%s1 + $0x130] sm:$0xff]
      %v192 = vld [vmem:[%s1 + $0x138] sm:$0xff]
      %v193 = vld [vmem:[%s1 + $0x140] sm:$0xff]
      %v194 = vld [vmem:[%s1 + $0x148] sm:$0xff]
      %v195 = vld [vmem:[%s1 + $0x150] sm:$0xff]
      %v196 = vld [vmem:[%s1 + $0x158] sm:$0xff]
      %v197 = vld [vmem:[%s1 + $0x160] sm:$0xff]
      %v198 = vld [vmem:[%s1 + $0x168] sm:$0xff]
      %v199 = vld [vmem:[%s1 + $0x170] sm:$0xff]
      %v200 = vld [vmem:[%s1 + $0x178] sm:$0xff]
      %v201 = vld [vmem:[%s1 + $0x180] sm:$0xff]
      %v202 = vld [vmem:[%s1 + $0x188] sm:$0xff]
      %v203 = vld [vmem:[%s1 + $0x190] sm:$0xff]
      %v204 = vld [vmem:[%s1 + $0x198] sm:$0xff]
      %v205 = vld [vmem:[%s1 + $0x1a0] sm:$0xff]
      %v206 = vld [vmem:[%s1 + $0x1a8] sm:$0xff]
      %v207 = vld [vmem:[%s1 + $0x1b0] sm:$0xff]
      %v208 = vld [vmem:[%s1 + $0x1b8] sm:$0xff]
      %v209 = vld [vmem:[%s1 + $0x1c0] sm:$0xff]
      %v210 = vld [vmem:[%s1 + $0x1c8] sm:$0xff]
      %v211 = vld [vmem:[%s1 + $0x1d0] sm:$0xff]
      %v212 = vld [vmem:[%s1 + $0x1d8] sm:$0xff]
      %v213 = vld [vmem:[%s1 + $0x1e0] sm:$0xff]
      %v214 = vld [vmem:[%s1 + $0x1e8] sm:$0xff]
      %v215 = vld [vmem:[%s1 + $0x1f0] sm:$0xff]
      %v216 = vld [vmem:[%s1 + $0x1f8] sm:$0xff]
      %217 = vmatprep.subr.mxu0 %v154
      %218 = vmatpush1.msra.mxu0 %v153
      %219 = vmatprep.subr.mxu0 %v158
      %220 = vmatpush1.msra.mxu0 %v157
      %221 = vmatprep.subr.mxu0 %v162
      %222 = vmatpush1.msra.mxu0 %v161
      %223 = vmatprep.subr.mxu0 %v166
      %224 = vmatpush1.msra.mxu0 %v165
      %225 = vmatprep.subr.mxu0 %v170
      %226 = vmatpush1.msra.mxu0 %v169
      %227 = vmatprep.subr.mxu0 %v174
      %228 = vmatpush1.msra.mxu0 %v173
      %229 = vmatprep.subr.mxu0 %v178
      %230 = vmatpush1.msra.mxu0 %v177
      %231 = vmatprep.subr.mxu0 %v182
      %232 = vmatpush1.msra.mxu0 %v181
      %233 = vmatprep.subr.mxu0 %v186
      %234 = vmatpush1.msra.mxu0 %v185
      %235 = vmatprep.subr.mxu0 %v190
      %236 = vmatpush1.msra.mxu0 %v189
      %237 = vmatprep.subr.mxu0 %v194
      %238 = vmatpush1.msra.mxu0 %v193
      %239 = vmatprep.subr.mxu0 %v198
      %240 = vmatpush1.msra.mxu0 %v197
      %241 = vmatprep.subr.mxu0 %v202
      %242 = vmatpush1.msra.mxu0 %v201
      %243 = vmatprep.subr.mxu0 %v206
      %244 = vmatpush1.msra.mxu0 %v205
      %245 = vmatprep.subr.mxu0 %v210
      %246 = vmatpush1.msra.mxu0 %v209
      %247 = vmatprep.subr.mxu0 %v214
      %248 = vmatpush1.msra.mxu0 %v213
      %249 = vmatprep.subr.mxu0 0.0
      %250 = vmatpush1.msra.mxu0 0.0
      %251 = vmatprep.subr.mxu0 0.0
      %252 = vmatpush1.msra.mxu0 0.0
      %253 = vmatprep.subr.mxu0 0.0
      %254 = vmatpush1.msra.mxu0 0.0
      %255 = vmatprep.subr.mxu0 0.0
      %256 = vmatpush1.msra.mxu0 0.0
      %257 = vmatprep.subr.mxu0 0.0
      %258 = vmatpush1.msra.mxu0 0.0
      %259 = vmatprep.subr.mxu0 0.0
      %260 = vmatpush1.msra.mxu0 0.0
      %261 = vmatprep.subr.mxu0 0.0
      %262 = vmatpush1.msra.mxu0 0.0
      %263 = vmatprep.subr.mxu0 0.0
      %264 = vmatpush1.msra.mxu0 0.0
      %265 = vmatprep.subr.mxu0 0.0
      %266 = vmatpush1.msra.mxu0 0.0
      %267 = vmatprep.subr.mxu0 0.0
      %268 = vmatpush1.msra.mxu0 0.0
      %269 = vmatprep.subr.mxu0 0.0
      %270 = vmatpush1.msra.mxu0 0.0
      %271 = vmatprep.subr.mxu0 0.0
      %272 = vmatpush1.msra.mxu0 0.0
      %273 = vmatprep.subr.mxu0 0.0
      %274 = vmatpush1.msra.mxu0 0.0
      %275 = vmatprep.subr.mxu0 0.0
      %276 = vmatpush1.msra.mxu0 0.0
      %277 = vmatprep.subr.mxu0 0.0
      %278 = vmatpush1.msra.mxu0 0.0
      %279 = vmatprep.subr.mxu0 0.0
      %280 = vmatpush1.msra.mxu0 0.0
      %281 = vmatprep.mubr.f32.mxu0 0.0
      %282 = vmatmul.mubr.f32.gmra.mrb[0].mxu0 %v152
      %v283 = vpop.f32.mrb[0].mxu0
      %v284 = vadd.f32 0.0, %v283
      %v285 = vpop.f32.mrb[0].mxu0
      %v286 = vadd.f32 0.0, %v285
      %287 = vdwg.mxu0
      %288 = vmatprep.subr.mxu0 %v156
      %289 = vmatpush1.msra.mxu0 %v155
      %290 = vmatprep.subr.mxu0 %v160
      %291 = vmatpush1.msra.mxu0 %v159
      %292 = vmatprep.subr.mxu0 %v164
      %293 = vmatpush1.msra.mxu0 %v163
      %294 = vmatprep.subr.mxu0 %v168
      %295 = vmatpush1.msra.mxu0 %v167
      %296 = vmatprep.subr.mxu0 %v172
      %297 = vmatpush1.msra.mxu0 %v171
      %298 = vmatprep.subr.mxu0 %v176
      %299 = vmatpush1.msra.mxu0 %v175
      %300 = vmatprep.subr.mxu0 %v180
      %301 = vmatpush1.msra.mxu0 %v179
      %302 = vmatprep.subr.mxu0 %v184
      %303 = vmatpush1.msra.mxu0 %v183
      %304 = vmatprep.subr.mxu0 %v188
      %305 = vmatpush1.msra.mxu0 %v187
      %306 = vmatprep.subr.mxu0 %v192
      %307 = vmatpush1.msra.mxu0 %v191
      %308 = vmatprep.subr.mxu0 %v196
      %309 = vmatpush1.msra.mxu0 %v195
      %310 = vmatprep.subr.mxu0 %v200
      %311 = vmatpush1.msra.mxu0 %v199
      %312 = vmatprep.subr.mxu0 %v204
      %313 = vmatpush1.msra.mxu0 %v203
      %314 = vmatprep.subr.mxu0 %v208
      %315 = vmatpush1.msra.mxu0 %v207
      %316 = vmatprep.subr.mxu0 %v212
      %317 = vmatpush1.msra.mxu0 %v211
      %318 = vmatprep.subr.mxu0 %v216
      %319 = vmatpush1.msra.mxu0 %v215
      %320 = vmatprep.subr.mxu0 0.0
      %321 = vmatpush1.msra.mxu0 0.0
      %322 = vmatprep.subr.mxu0 0.0
      %323 = vmatpush1.msra.mxu0 0.0
      %324 = vmatprep.subr.mxu0 0.0
      %325 = vmatpush1.msra.mxu0 0.0
      %326 = vmatprep.subr.mxu0 0.0
      %327 = vmatpush1.msra.mxu0 0.0
      %328 = vmatprep.subr.mxu0 0.0
      %329 = vmatpush1.msra.mxu0 0.0
      %330 = vmatprep.subr.mxu0 0.0
      %331 = vmatpush1.msra.mxu0 0.0
      %332 = vmatprep.subr.mxu0 0.0
      %333 = vmatpush1.msra.mxu0 0.0
      %334 = vmatprep.subr.mxu0 0.0
      %335 = vmatpush1.msra.mxu0 0.0
      %336 = vmatprep.subr.mxu0 0.0
      %337 = vmatpush1.msra.mxu0 0.0
      %338 = vmatprep.subr.mxu0 0.0
      %339 = vmatpush1.msra.mxu0 0.0
      %340 = vmatprep.subr.mxu0 0.0
      %341 = vmatpush1.msra.mxu0 0.0
      %342 = vmatprep.subr.mxu0 0.0
      %343 = vmatpush1.msra.mxu0 0.0
      %344 = vmatprep.subr.mxu0 0.0
      %345 = vmatpush1.msra.mxu0 0.0
      %346 = vmatprep.subr.mxu0 0.0
      %347 = vmatpush1.msra.mxu0 0.0
      %348 = vmatprep.subr.mxu0 0.0
      %349 = vmatpush1.msra.mxu0 0.0
      %350 = vmatprep.subr.mxu0 0.0
      %351 = vmatpush1.msra.mxu0 0.0
      %352 = vmatprep.mubr.f32.mxu0 0.0
      %353 = vmatmul.mubr.f32.gmra.mrb[0].mxu0 %v152
      %v354 = vpop.f32.mrb[0].mxu0
      %v355 = vadd.f32 0.0, %v354
      %v356 = vpop.f32.mrb[0].mxu0
      %v357 = vadd.f32 0.0, %v356
      %358 = vdwg.mxu0
      %v359 = vadd.f32 %v148, %v284
      %v360 = vadd.f32 %v149, %v286
      %v361 = vadd.f32 %v150, %v355
      %v362 = vadd.f32 %v151, %v357
      %v363 = vxor.u32 %v359, 2147483648
      %v364 = vmul.f32 %v363, 1.442695
      %v365 = vpow.pop %v364
      %v366 = vadd.f32 %v365, 1.0
      %v367 = vrcp.pop %v366
      %v368 = vmul.f32 1.0, %v367
      %v369 = vxor.u32 %v360, 2147483648
      %v370 = vmul.f32 %v369, 1.442695
      %v371 = vpow.pop %v370
      %v372 = vadd.f32 %v371, 1.0
      %v373 = vrcp.pop %v372
      %v374 = vmul.f32 1.0, %v373
      %v375 = vtanh.pop %v361
      %v376 = vxor.u32 %v362, 2147483648
      %v377 = vmul.f32 %v376, 1.442695
      %v378 = vpow.pop %v377
      %v379 = vadd.f32 %v378, 1.0
      %v380 = vrcp.pop %v379
      %v381 = vmul.f32 1.0, %v380
      %v382 = vld [vmem:[#allocation3] sm:$0xff]
      %v383 = vmul.f32 %v374, %v382
      %v384 = vmul.f32 %v368, %v375
      %v385 = vadd.f32 %v383, %v384
      %v386 = vtanh.pop %v385
      %v387 = vmul.f32 %v381, %v386
      %388 = vst [vmem:[#allocation3] sm:$0xff] %v385
      %389 = vst [vmem:[#allocation2] sm:$0xff] %v387
      %390 = vst [vmem:[%s141] sm:$0xff] %v387
      %p391 = scmp.lt.s32.totalorder %s13, 7
      %s392 = scalar_select %p391, %s13, 7
      %s393 = smul.addr %s392, 8
      %s394 = scalar_lea.vmem %s2, %s393
      // Predicated region
      $region33: #{seq2seq_forward.4} parent=27 // pred_check
        %p395 = pneg %p78
      $region34: #{seq2seq_forward.4} parent=27 // pred_check_branch
        %397 = sbr.rel (%p395) target = $region36
      $region35: #{seq2seq_forward.4} parent=27 // pred_region
        _
      $region36: #{seq2seq_forward.4} parent=27 // pred_fallthru
        _
    $region28: #{seq2seq_forward.4} parent=5 // pred_fallthru
      _
    %p398 = scmp.le.s32.totalorder 2, %s8
    // Predicated region
    $region37: #{seq2seq_forward.4} parent=5 // pred_check
      %p399 = pneg %p398
    $region38: #{seq2seq_forward.4} parent=5 // pred_check_branch
      %401 = sbr.rel (%p399) target = $region40
    $region39: #{seq2seq_forward.4} parent=5 // pred_region
      %s402 = ssub.s32 %s8, 2
      // Predicated region
      $region41: #{seq2seq_forward.4} parent=39 // pred_check
        %p403 = pneg %p84
      $region42: #{seq2seq_forward.4} parent=39 // pred_check_branch
        %405 = sbr.rel (%p403) target = $region44
      $region43: #{seq2seq_forward.4} parent=39 // pred_region
        %p406 = scmp.lt.s32.totalorder %s14, 7
        %s407 = scalar_select %p406, %s14, 7
        %s408 = smul.addr %s407, 8
        %s409 = scalar_lea.vmem %s2, %s408
      $region44: #{seq2seq_forward.4} parent=39 // pred_fallthru
        _
    $region40: #{seq2seq_forward.4} parent=5 // pred_fallthru
      _
  $region6: #{seq2seq_forward.4} parent=0 // loop_footer
    %s12 = sadd.s32 1, %s8
  $region7: #{seq2seq_forward.4} parent=0 // loop_footer_branch
    %7 = sbr.rel target = $region3
  $region8: #{seq2seq_forward.4} parent=0 // loop_exit
    _

// kernel: seq2seq_forward.5
$region0: #{seq2seq_forward.5}
  #allocation0 [shape = 'u32[]', space=smem, size = 0x4, offset = 0x4, fixed_abs, tag = 'smem constant byte address 0x4 - core index']
  #allocation1 [shape = 'u32[144,128]{1,0:T(1,128)}', space=vmem, size = 0x12000, scoped, tag = 'internal scratch']
  #allocation2 [shape = 'f32[8,128]{1,0:T(8,128)}', space=vmem, size = 0x1000, scoped, tag = 'scratch operand']
  #allocation3 [shape = 'f32[8,128]{1,0:T(8,128)}', space=vmem, size = 0x1000, scoped, tag = 'scratch operand']
  #allocation4 [shape = 'f32[8,128]{1,0:T(8,128)}', space=vmem, size = 0x1000, scoped, tag = 'scratch operand']
  #allocation5 [shape = 'f32[8,128]{1,0:T(8,128)}', space=vmem, size = 0x1000, scoped, tag = 'scratch operand']
  #allocation6 [shape = 'f32[8,128]{1,0:T(8,128)}', space=vmem, size = 0x1000, scoped, tag = 'scratch operand']
  #allocation7 [shape = 's32[8,1]{1,0:T(8,128)}', space=vmem, size = 0x1000, scoped, tag = 'scratch operand']
  #allocation8 [shape = 's32[1]{0}', space=sflag, size = 0x4, scoped, tag = 'scoped memory for seq2seq_forward.5']
  #allocation9 [shape = 'u8[512]{0}', space=smem, size = 0x200, scoped, tag = 'prefetched SMEM operand 0']
  %s0 = inlined_call_operand.vmem [shape: s32[6], index: 0, kind: input, shape index: {}]
  %s1 = inlined_call_operand.vmem [shape: s32[6,8,1], index: 1, kind: input, shape index: {}]
  %s2 = inlined_call_operand.vmem [shape: f32[8,8,128], index: 2, kind: input, shape index: {}]
  %s3 = inlined_call_operand.vmem [shape: f32[128,32], index: 3, kind: input, shape index: {}]
  %s4 = inlined_call_operand.vmem [shape: f32[32,512], index: 4, kind: input, shape index: {}]
  %s5 = inlined_call_operand.vmem [shape: f32[128,512], index: 5, kind: input, shape index: {}]
  %s6 = inlined_call_operand.vmem [shape: f32[128,512], index: 6, kind: input, shape index: {}]
  %s7 = inlined_call_operand.vmem [shape: f32[1,512], index: 7, kind: input, shape index: {}]
  %s8 = inlined_call_operand.vmem [shape: f32[128,512], index: 8, kind: input, shape index: {}]
  %s9 = inlined_call_operand.vmem [shape: f32[128,512], index: 9, kind: input, shape index: {}]
  %s10 = inlined_call_operand.vmem [shape: f32[1,512], index: 10, kind: input, shape index: {}]
  %s11 = inlined_call_operand.vmem [shape: f32[128,128], index: 11, kind: input, shape index: {}]
  %s12 = inlined_call_operand.vmem [shape: f32[1,128], index: 12, kind: input, shape index: {}]
  %s13 = inlined_call_operand.vmem [shape: f32[128,128], index: 13, kind: input, shape index: {}]
  %s14 = inlined_call_operand.vmem [shape: f32[128,128], index: 14, kind: input, shape index: {}]
  %s15 = inlined_call_operand.vmem [shape: f32[1,128], index: 15, kind: input, shape index: {}]
  %s16 = inlined_call_operand.vmem [shape: f32[6,8,128], index: 16, kind: output, shape index: {0}]
  %s17 = inlined_call_operand.vmem [shape: f32[6,8,8], index: 17, kind: output, shape index: {1}]
  %18 = xla_tuple %s16, %s17
  %s19 = sld [smem:[#allocation0]]
  $region105: #{seq2seq_forward.5} parent=0
    _
  %s21 = ssub.s32 1, %s19
  %s22 = scalar_select 0, %s21, %s19
  %s23 = sshll.u32 %s0, 4
  %s24 = int_to_ptr.vmem [resolvable:$true] %s23
  %26 = dma.vmem_to_smem %s24, 16, [#allocation9], [#allocation8]
  %27 = dma.done [#allocation8], 16
  %28 = sfence
  loop: start=0, step=1, limit=8
  $region2: #{seq2seq_forward.5} parent=0 // loop_pre_header
    _
  $region3: #{seq2seq_forward.5} parent=0 // loop_header
    %s30 = sphi 0, %s34
    %p31 = scmp.ge.s32.totalorder %s30, 8
    %s40 = sphi 0, %s42
    %s43 = sphi 0, %s40
    %s44 = sphi 0, %s43
    %s60 = sphi 0, %s44
    %s64 = sphi 0, %s64
    %s66 = sphi 0, %s64
    %s67 = sphi 0, %s66
    %s81 = sphi 0, %s67
    %s85 = sphi 0, %s85
    %s87 = sphi 0, %s85
    %s88 = sphi 0, %s87
    %s102 = sphi 0, %s88
    %s106 = sphi 0, %s106
    %s108 = sphi 0, %s106
    %s109 = sphi 0, %s108
    %s123 = sphi 0, %s109
    %s127 = sphi 0, %s127
    %s129 = sphi 0, %s127
    %s130 = sphi 0, %s129
    %s144 = sphi 0, %s130
    %s148 = sphi 0, %s148
    %s150 = sphi 0, %s148
    %s151 = sphi 0, %s150
    %s165 = sphi 0, %s151
    %s169 = sphi 0, %s169
    %s171 = sphi 0, %s169
    %s172 = sphi 0, %s171
    %s186 = sphi 0, %s172
    %s190 = sphi 0, %s190
    %s192 = sphi 0, %s190
    %s193 = sphi 0, %s192
    %s207 = sphi 0, %s193
    %s211 = sphi 0, %s211
    %s213 = sphi 0, %s211
    %s214 = sphi 0, %s213
    %s228 = sphi 0, %s214
    %s232 = sphi 0, %s232
    %s234 = sphi 0, %s232
    %s235 = sphi 0, %s234
    %s249 = sphi 0, %s235
    %s253 = sphi 0, %s253
    %s255 = sphi 0, %s253
    %s256 = sphi 0, %s255
    %s270 = sphi 0, %s256
    %s274 = sphi 0, %s274
    %s276 = sphi 0, %s274
    %s277 = sphi 0, %s276
    %s291 = sphi 0, %s277
    %s295 = sphi 0, %s295
    %s297 = sphi 0, %s295
    %s298 = sphi 0, %s297
    %s312 = sphi 0, %s298
    %s316 = sphi 0, %s316
    %s318 = sphi 0, %s316
    %s319 = sphi 0, %s318
    %s333 = sphi 0, %s319
    %s337 = sphi 0, %s337
    %s339 = sphi 0, %s337
    %s340 = sphi 0, %s339
    %s354 = sphi 0, %s340
    %s360 = sphi 0, %s362
    %s363 = sphi 0, %s360
    %s364 = sphi 0, %s363
    %s380 = sphi 0, %s364
    %s386 = sphi 0, %s388
    %s389 = sphi 0, %s386
    %s390 = sphi 0, %s389
    %s406 = sphi 0, %s390
  $region4: #{seq2seq_forward.5} parent=0 // loop_header_branch
    %33 = sbr.rel (%p31) target = $region8
  $region5: #{seq2seq_forward.5} parent=0 // loop_body
    %s35 = ssub.s32 %s30, 1
    %s36 = ssub.s32 %s30, 2
    %s37 = sadd.s32 %s30, 1
    %s38 = ssub.s32 %s30, %s37
    %p39 = scmp.eq.s32.totalorder %s38, 0
    %s41 = sadd.s32 %s40, 1
    %s42 = scalar_select %p39, %s40, %s41
    %p45 = pneg %p39
    %p46 = scmp.eq.s32.totalorder %s30, 5
    %p47 = por %p45, %p46
    %p48 = scmp.ne.s32.totalorder %s40, %s43
    %p49 = scmp.eq.s32.totalorder %s30, 0
    %p50 = por %p48, %p49
    %p51 = scmp.ne.s32.totalorder %s40, %s43
    %p52 = scmp.eq.s32.totalorder %s35, 5
    %p53 = por %p51, %p52
    %p54 = scmp.ne.s32.totalorder %s43, %s44
    %p55 = scmp.eq.s32.totalorder %s35, 0
    %p56 = por %p54, %p55
    %p57 = scmp.ne.s32.totalorder %s43, %s44
    %p58 = scmp.eq.s32.totalorder %s36, 5
    %p59 = por %p57, %p58
    %p61 = scmp.ne.s32.totalorder %s44, %s60
    %p62 = scmp.eq.s32.totalorder %s36, 0
    %p63 = por %p61, %p62
    %s65 = sadd.s32 %s64, 1
    %p68 = scmp.eq.s32.totalorder %s30, 5
    %p69 = scmp.ne.s32.totalorder %s64, %s66
    %p70 = scmp.eq.s32.totalorder %s30, 0
    %p71 = por %p69, %p70
    %p72 = scmp.ne.s32.totalorder %s64, %s66
    %p73 = scmp.eq.s32.totalorder %s35, 5
    %p74 = por %p72, %p73
    %p75 = scmp.ne.s32.totalorder %s66, %s67
    %p76 = scmp.eq.s32.totalorder %s35, 0
    %p77 = por %p75, %p76
    %p78 = scmp.ne.s32.totalorder %s66, %s67
    %p79 = scmp.eq.s32.totalorder %s36, 5
    %p80 = por %p78, %p79
    %p82 = scmp.ne.s32.totalorder %s67, %s81
    %p83 = scmp.eq.s32.totalorder %s36, 0
    %p84 = por %p82, %p83
    %s86 = sadd.s32 %s85, 1
    %p89 = scmp.eq.s32.totalorder %s30, 5
    %p90 = scmp.ne.s32.totalorder %s85, %s87
    %p91 = scmp.eq.s32.totalorder %s30, 0
    %p92 = por %p90, %p91
    %p93 = scmp.ne.s32.totalorder %s85, %s87
    %p94 = scmp.eq.s32.totalorder %s35, 5
    %p95 = por %p93, %p94
    %p96 = scmp.ne.s32.totalorder %s87, %s88
    %p97 = scmp.eq.s32.totalorder %s35, 0
    %p98 = por %p96, %p97
    %p99 = scmp.ne.s32.totalorder %s87, %s88
    %p100 = scmp.eq.s32.totalorder %s36, 5
    %p101 = por %p99, %p100
    %p103 = scmp.ne.s32.totalorder %s88, %s102
    %p104 = scmp.eq.s32.totalorder %s36, 0
    %p105 = por %p103, %p104
    %s107 = sadd.s32 %s106, 1
    %p110 = scmp.eq.s32.totalorder %s30, 5
    %p111 = scmp.ne.s32.totalorder %s106, %s108
    %p112 = scmp.eq.s32.totalorder %s30, 0
    %p113 = por %p111, %p112
    %p114 = scmp.ne.s32.totalorder %s106, %s108
    %p115 = scmp.eq.s32.totalorder %s35, 5
    %p116 = por %p114, %p115
    %p117 = scmp.ne.s32.totalorder %s108, %s109
    %p118 = scmp.eq.s32.totalorder %s35, 0
    %p119 = por %p117, %p118
    %p120 = scmp.ne.s32.totalorder %s108, %s109
    %p121 = scmp.eq.s32.totalorder %s36, 5
    %p122 = por %p120, %p121
    %p124 = scmp.ne.s32.totalorder %s109, %s123
    %p125 = scmp.eq.s32.totalorder %s36, 0
    %p126 = por %p124, %p125
    %s128 = sadd.s32 %s127, 1
    %p131 = scmp.eq.s32.totalorder %s30, 5
    %p132 = scmp.ne.s32.totalorder %s127, %s129
    %p133 = scmp.eq.s32.totalorder %s30, 0
    %p134 = por %p132, %p133
    %p135 = scmp.ne.s32.totalorder %s127, %s129
    %p136 = scmp.eq.s32.totalorder %s35, 5
    %p137 = por %p135, %p136
    %p138 = scmp.ne.s32.totalorder %s129, %s130
    %p139 = scmp.eq.s32.totalorder %s35, 0
    %p140 = por %p138, %p139
    %p141 = scmp.ne.s32.totalorder %s129, %s130
    %p142 = scmp.eq.s32.totalorder %s36, 5
    %p143 = por %p141, %p142
    %p145 = scmp.ne.s32.totalorder %s130, %s144
    %p146 = scmp.eq.s32.totalorder %s36, 0
    %p147 = por %p145, %p146
    %s149 = sadd.s32 %s148, 1
    %p152 = scmp.eq.s32.totalorder %s30, 5
    %p153 = scmp.ne.s32.totalorder %s148, %s150
    %p154 = scmp.eq.s32.totalorder %s30, 0
    %p155 = por %p153, %p154
    %p156 = scmp.ne.s32.totalorder %s148, %s150
    %p157 = scmp.eq.s32.totalorder %s35, 5
    %p158 = por %p156, %p157
    %p159 = scmp.ne.s32.totalorder %s150, %s151
    %p160 = scmp.eq.s32.totalorder %s35, 0
    %p161 = por %p159, %p160
    %p162 = scmp.ne.s32.totalorder %s150, %s151
    %p163 = scmp.eq.s32.totalorder %s36, 5
    %p164 = por %p162, %p163
    %p166 = scmp.ne.s32.totalorder %s151, %s165
    %p167 = scmp.eq.s32.totalorder %s36, 0
    %p168 = por %p166, %p167
    %s170 = sadd.s32 %s169, 1
    %p173 = scmp.eq.s32.totalorder %s30, 5
    %p174 = scmp.ne.s32.totalorder %s169, %s171
    %p175 = scmp.eq.s32.totalorder %s30, 0
    %p176 = por %p174, %p175
    %p177 = scmp.ne.s32.totalorder %s169, %s171
    %p178 = scmp.eq.s32.totalorder %s35, 5
    %p179 = por %p177, %p178
    %p180 = scmp.ne.s32.totalorder %s171, %s172
    %p181 = scmp.eq.s32.totalorder %s35, 0
    %p182 = por %p180, %p181
    %p183 = scmp.ne.s32.totalorder %s171, %s172
    %p184 = scmp.eq.s32.totalorder %s36, 5
    %p185 = por %p183, %p184
    %p187 = scmp.ne.s32.totalorder %s172, %s186
    %p188 = scmp.eq.s32.totalorder %s36, 0
    %p189 = por %p187, %p188
    %s191 = sadd.s32 %s190, 1
    %p194 = scmp.eq.s32.totalorder %s30, 5
    %p195 = scmp.ne.s32.totalorder %s190, %s192
    %p196 = scmp.eq.s32.totalorder %s30, 0
    %p197 = por %p195, %p196
    %p198 = scmp.ne.s32.totalorder %s190, %s192
    %p199 = scmp.eq.s32.totalorder %s35, 5
    %p200 = por %p198, %p199
    %p201 = scmp.ne.s32.totalorder %s192, %s193
    %p202 = scmp.eq.s32.totalorder %s35, 0
    %p203 = por %p201, %p202
    %p204 = scmp.ne.s32.totalorder %s192, %s193
    %p205 = scmp.eq.s32.totalorder %s36, 5
    %p206 = por %p204, %p205
    %p208 = scmp.ne.s32.totalorder %s193, %s207
    %p209 = scmp.eq.s32.totalorder %s36, 0
    %p210 = por %p208, %p209
    %s212 = sadd.s32 %s211, 1
    %p215 = scmp.eq.s32.totalorder %s30, 5
    %p216 = scmp.ne.s32.totalorder %s211, %s213
    %p217 = scmp.eq.s32.totalorder %s30, 0
    %p218 = por %p216, %p217
    %p219 = scmp.ne.s32.totalorder %s211, %s213
    %p220 = scmp.eq.s32.totalorder %s35, 5
    %p221 = por %p219, %p220
    %p222 = scmp.ne.s32.totalorder %s213, %s214
    %p223 = scmp.eq.s32.totalorder %s35, 0
    %p224 = por %p222, %p223
    %p225 = scmp.ne.s32.totalorder %s213, %s214
    %p226 = scmp.eq.s32.totalorder %s36, 5
    %p227 = por %p225, %p226
    %p229 = scmp.ne.s32.totalorder %s214, %s228
    %p230 = scmp.eq.s32.totalorder %s36, 0
    %p231 = por %p229, %p230
    %s233 = sadd.s32 %s232, 1
    %p236 = scmp.eq.s32.totalorder %s30, 5
    %p237 = scmp.ne.s32.totalorder %s232, %s234
    %p238 = scmp.eq.s32.totalorder %s30, 0
    %p239 = por %p237, %p238
    %p240 = scmp.ne.s32.totalorder %s232, %s234
    %p241 = scmp.eq.s32.totalorder %s35, 5
    %p242 = por %p240, %p241
    %p243 = scmp.ne.s32.totalorder %s234, %s235
    %p244 = scmp.eq.s32.totalorder %s35, 0
    %p245 = por %p243, %p244
    %p246 = scmp.ne.s32.totalorder %s234, %s235
    %p247 = scmp.eq.s32.totalorder %s36, 5
    %p248 = por %p246, %p247
    %p250 = scmp.ne.s32.totalorder %s235, %s249
    %p251 = scmp.eq.s32.totalorder %s36, 0
    %p252 = por %p250, %p251
    %s254 = sadd.s32 %s253, 1
    %p257 = scmp.eq.s32.totalorder %s30, 5
    %p258 = scmp.ne.s32.totalorder %s253, %s255
    %p259 = scmp.eq.s32.totalorder %s30, 0
    %p260 = por %p258, %p259
    %p261 = scmp.ne.s32.totalorder %s253, %s255
    %p262 = scmp.eq.s32.totalorder %s35, 5
    %p263 = por %p261, %p262
    %p264 = scmp.ne.s32.totalorder %s255, %s256
    %p265 = scmp.eq.s32.totalorder %s35, 0
    %p266 = por %p264, %p265
    %p267 = scmp.ne.s32.totalorder %s255, %s256
    %p268 = scmp.eq.s32.totalorder %s36, 5
    %p269 = por %p267, %p268
    %p271 = scmp.ne.s32.totalorder %s256, %s270
    %p272 = scmp.eq.s32.totalorder %s36, 0
    %p273 = por %p271, %p272
    %s275 = sadd.s32 %s274, 1
    %p278 = scmp.eq.s32.totalorder %s30, 5
    %p279 = scmp.ne.s32.totalorder %s274, %s276
    %p280 = scmp.eq.s32.totalorder %s30, 0
    %p281 = por %p279, %p280
    %p282 = scmp.ne.s32.totalorder %s274, %s276
    %p283 = scmp.eq.s32.totalorder %s35, 5
    %p284 = por %p282, %p283
    %p285 = scmp.ne.s32.totalorder %s276, %s277
    %p286 = scmp.eq.s32.totalorder %s35, 0
    %p287 = por %p285, %p286
    %p288 = scmp.ne.s32.totalorder %s276, %s277
    %p289 = scmp.eq.s32.totalorder %s36, 5
    %p290 = por %p288, %p289
    %p292 = scmp.ne.s32.totalorder %s277, %s291
    %p293 = scmp.eq.s32.totalorder %s36, 0
    %p294 = por %p292, %p293
    %s296 = sadd.s32 %s295, 1
    %p299 = scmp.eq.s32.totalorder %s30, 5
    %p300 = scmp.ne.s32.totalorder %s295, %s297
    %p301 = scmp.eq.s32.totalorder %s30, 0
    %p302 = por %p300, %p301
    %p303 = scmp.ne.s32.totalorder %s295, %s297
    %p304 = scmp.eq.s32.totalorder %s35, 5
    %p305 = por %p303, %p304
    %p306 = scmp.ne.s32.totalorder %s297, %s298
    %p307 = scmp.eq.s32.totalorder %s35, 0
    %p308 = por %p306, %p307
    %p309 = scmp.ne.s32.totalorder %s297, %s298
    %p310 = scmp.eq.s32.totalorder %s36, 5
    %p311 = por %p309, %p310
    %p313 = scmp.ne.s32.totalorder %s298, %s312
    %p314 = scmp.eq.s32.totalorder %s36, 0
    %p315 = por %p313, %p314
    %s317 = sadd.s32 %s316, 1
    %p320 = scmp.eq.s32.totalorder %s30, 5
    %p321 = scmp.ne.s32.totalorder %s316, %s318
    %p322 = scmp.eq.s32.totalorder %s30, 0
    %p323 = por %p321, %p322
    %p324 = scmp.ne.s32.totalorder %s316, %s318
    %p325 = scmp.eq.s32.totalorder %s35, 5
    %p326 = por %p324, %p325
    %p327 = scmp.ne.s32.totalorder %s318, %s319
    %p328 = scmp.eq.s32.totalorder %s35, 0
    %p329 = por %p327, %p328
    %p330 = scmp.ne.s32.totalorder %s318, %s319
    %p331 = scmp.eq.s32.totalorder %s36, 5
    %p332 = por %p330, %p331
    %p334 = scmp.ne.s32.totalorder %s319, %s333
    %p335 = scmp.eq.s32.totalorder %s36, 0
    %p336 = por %p334, %p335
    %s338 = sadd.s32 %s337, 1
    %p341 = scmp.eq.s32.totalorder %s30, 5
    %p342 = scmp.ne.s32.totalorder %s337, %s339
    %p343 = scmp.eq.s32.totalorder %s30, 0
    %p344 = por %p342, %p343
    %p345 = scmp.ne.s32.totalorder %s337, %s339
    %p346 = scmp.eq.s32.totalorder %s35, 5
    %p347 = por %p345, %p346
    %p348 = scmp.ne.s32.totalorder %s339, %s340
    %p349 = scmp.eq.s32.totalorder %s35, 0
    %p350 = por %p348, %p349
    %p351 = scmp.ne.s32.totalorder %s339, %s340
    %p352 = scmp.eq.s32.totalorder %s36, 5
    %p353 = por %p351, %p352
    %p355 = scmp.ne.s32.totalorder %s340, %s354
    %p356 = scmp.eq.s32.totalorder %s36, 0
    %p357 = por %p355, %p356
    %s358 = ssub.s32 %s30, %s37
    %p359 = scmp.eq.s32.totalorder %s358, 0
    %s361 = sadd.s32 %s360, 1
    %s362 = scalar_select %p359, %s360, %s361
    %p365 = pneg %p359
    %p366 = scmp.eq.s32.totalorder %s30, 5
    %p367 = por %p365, %p366
    %p368 = scmp.ne.s32.totalorder %s360, %s363
    %p369 = scmp.eq.s32.totalorder %s30, 0
    %p370 = por %p368, %p369
    %p371 = scmp.ne.s32.totalorder %s360, %s363
    %p372 = scmp.eq.s32.totalorder %s35, 5
    %p373 = por %p371, %p372
    %p374 = scmp.ne.s32.totalorder %s363, %s364
    %p375 = scmp.eq.s32.totalorder %s35, 0
    %p376 = por %p374, %p375
    %p377 = scmp.ne.s32.totalorder %s363, %s364
    %p378 = scmp.eq.s32.totalorder %s36, 5
    %p379 = por %p377, %p378
    %p381 = scmp.ne.s32.totalorder %s364, %s380
    %p382 = scmp.eq.s32.totalorder %s36, 0
    %p383 = por %p381, %p382
    %s384 = ssub.s32 %s30, %s37
    %p385 = scmp.eq.s32.totalorder %s384, 0
    %s387 = sadd.s32 %s386, 1
    %s388 = scalar_select %p385, %s386, %s387
    %p391 = pneg %p385
    %p392 = scmp.eq.s32.totalorder %s30, 5
    %p393 = por %p391, %p392
    %p394 = scmp.ne.s32.totalorder %s386, %s389
    %p395 = scmp.eq.s32.totalorder %s30, 0
    %p396 = por %p394, %p395
    %p397 = scmp.ne.s32.totalorder %s386, %s389
    %p398 = scmp.eq.s32.totalorder %s35, 5
    %p399 = por %p397, %p398
    %p400 = scmp.ne.s32.totalorder %s389, %s390
    %p401 = scmp.eq.s32.totalorder %s35, 0
    %p402 = por %p400, %p401
    %p403 = scmp.ne.s32.totalorder %s389, %s390
    %p404 = scmp.eq.s32.totalorder %s36, 5
    %p405 = por %p403, %p404
    %p407 = scmp.ne.s32.totalorder %s390, %s406
    %p408 = scmp.eq.s32.totalorder %s36, 0
    %p409 = por %p407, %p408
    %p410 = scmp.le.s32.totalorder 1, %s30
    %p411 = scmp.lt.s32.totalorder %s30, 7
    %p412 = pnand %p410, %p411
    %p413 = pneg %p412
    // Predicated region
    $region9: #{seq2seq_forward.5} parent=5 // pred_check
      _
    $region10: #{seq2seq_forward.5} parent=5 // pred_check_branch
      %415 = sbr.rel (%p412) target = $region12
    $region11: #{seq2seq_forward.5} parent=5 // pred_region
      %s416 = ssub.s32 %s30, 1
      // Predicated region
      $region13: #{seq2seq_forward.5} parent=11 // pred_check
        %p417 = pneg %p77
      $region14: #{seq2seq_forward.5} parent=11 // pred_check_branch
        %419 = sbr.rel (%p417) target = $region16
      $region15: #{seq2seq_forward.5} parent=11 // pred_region
        _
      $region16: #{seq2seq_forward.5} parent=11 // pred_fallthru
        _
      // Predicated region
      $region17: #{seq2seq_forward.5} parent=11 // pred_check
        %p420 = pneg %p98
      $region18: #{seq2seq_forward.5} parent=11 // pred_check_branch
        %422 = sbr.rel (%p420) target = $region20
      $region19: #{seq2seq_forward.5} parent=11 // pred_region
        _
      $region20: #{seq2seq_forward.5} parent=11 // pred_fallthru
        _
      // Predicated region
      $region21: #{seq2seq_forward.5} parent=11 // pred_check
        %p423 = pneg %p119
      $region22: #{seq2seq_forward.5} parent=11 // pred_check_branch
        %425 = sbr.rel (%p423) target = $region24
      $region23: #{seq2seq_forward.5} parent=11 // pred_region
        _
      $region24: #{seq2seq_forward.5} parent=11 // pred_fallthru
        _
      // Predicated region
      $region25: #{seq2seq_forward.5} parent=11 // pred_check
        %p426 = pneg %p140
      $region26: #{seq2seq_forward.5} parent=11 // pred_check_branch
        %428 = sbr.rel (%p426) target = $region28
      $region27: #{seq2seq_forward.5} parent=11 // pred_region
        _
      $region28: #{seq2seq_forward.5} parent=11 // pred_fallthru
        _
      // Predicated region
      $region29: #{seq2seq_forward.5} parent=11 // pred_check
        %p429 = pneg %p161
      $region30: #{seq2seq_forward.5} parent=11 // pred_check_branch
        %431 = sbr.rel (%p429) target = $region32
      $region31: #{seq2seq_forward.5} parent=11 // pred_region
        _
      $region32: #{seq2seq_forward.5} parent=11 // pred_fallthru
        _
      // Predicated region
      $region33: #{seq2seq_forward.5} parent=11 // pred_check
        %p432 = pneg %p182
      $region34: #{seq2seq_forward.5} parent=11 // pred_check_branch
        %434 = sbr.rel (%p432) target = $region36
      $region35: #{seq2seq_forward.5} parent=11 // pred_region
        _
      $region36: #{seq2seq_forward.5} parent=11 // pred_fallthru
        _
      // Predicated region
      $region37: #{seq2seq_forward.5} parent=11 // pred_check
        %p435 = pneg %p203
      $region38: #{seq2seq_forward.5} parent=11 // pred_check_branch
        %437 = sbr.rel (%p435) target = $region40
      $region39: #{seq2seq_forward.5} parent=11 // pred_region
        _
      $region40: #{seq2seq_forward.5} parent=11 // pred_fallthru
        _
      // Predicated region
      $region41: #{seq2seq_forward.5} parent=11 // pred_check
        %p438 = pneg %p224
      $region42: #{seq2seq_forward.5} parent=11 // pred_check_branch
        %440 = sbr.rel (%p438) target = $region44
      $region43: #{seq2seq_forward.5} parent=11 // pred_region
        _
      $region44: #{seq2seq_forward.5} parent=11 // pred_fallthru
        _
      // Predicated region
      $region45: #{seq2seq_forward.5} parent=11 // pred_check
        %p441 = pneg %p245
      $region46: #{seq2seq_forward.5} parent=11 // pred_check_branch
        %443 = sbr.rel (%p441) target = $region48
      $region47: #{seq2seq_forward.5} parent=11 // pred_region
        _
      $region48: #{seq2seq_forward.5} parent=11 // pred_fallthru
        _
      // Predicated region
      $region49: #{seq2seq_forward.5} parent=11 // pred_check
        %p444 = pneg %p266
      $region50: #{seq2seq_forward.5} parent=11 // pred_check_branch
        %446 = sbr.rel (%p444) target = $region52
      $region51: #{seq2seq_forward.5} parent=11 // pred_region
        _
      $region52: #{seq2seq_forward.5} parent=11 // pred_fallthru
        _
      // Predicated region
      $region53: #{seq2seq_forward.5} parent=11 // pred_check
        %p447 = pneg %p287
      $region54: #{seq2seq_forward.5} parent=11 // pred_check_branch
        %449 = sbr.rel (%p447) target = $region56
      $region55: #{seq2seq_forward.5} parent=11 // pred_region
        _
      $region56: #{seq2seq_forward.5} parent=11 // pred_fallthru
        _
      // Predicated region
      $region57: #{seq2seq_forward.5} parent=11 // pred_check
        %p450 = pneg %p308
      $region58: #{seq2seq_forward.5} parent=11 // pred_check_branch
        %452 = sbr.rel (%p450) target = $region60
      $region59: #{seq2seq_forward.5} parent=11 // pred_region
        _
      $region60: #{seq2seq_forward.5} parent=11 // pred_fallthru
        _
      // Predicated region
      $region61: #{seq2seq_forward.5} parent=11 // pred_check
        %p453 = pneg %p329
      $region62: #{seq2seq_forward.5} parent=11 // pred_check_branch
        %455 = sbr.rel (%p453) target = $region64
      $region63: #{seq2seq_forward.5} parent=11 // pred_region
        _
      $region64: #{seq2seq_forward.5} parent=11 // pred_fallthru
        _
      // Predicated region
      $region65: #{seq2seq_forward.5} parent=11 // pred_check
        %p456 = pneg %p350
      $region66: #{seq2seq_forward.5} parent=11 // pred_check_branch
        %458 = sbr.rel (%p456) target = $region68
      $region67: #{seq2seq_forward.5} parent=11 // pred_region
        _
      $region68: #{seq2seq_forward.5} parent=11 // pred_fallthru
        _
    $region12: #{seq2seq_forward.5} parent=5 // pred_fallthru
      _
    %p459 = scmp.lt.s32.totalorder %s30, 6
    // Predicated region
    $region69: #{seq2seq_forward.5} parent=5 // pred_check
      %p460 = pneg %p459
    $region70: #{seq2seq_forward.5} parent=5 // pred_check_branch
      %462 = sbr.rel (%p460) target = $region72
    $region71: #{seq2seq_forward.5} parent=5 // pred_region
      // Predicated region
      $region73: #{seq2seq_forward.5} parent=71 // pred_check
        %p463 = pneg %p50
      $region74: #{seq2seq_forward.5} parent=71 // pred_check_branch
        %465 = sbr.rel (%p463) target = $region76
      $region75: #{seq2seq_forward.5} parent=71 // pred_region
        %p466 = scmp.lt.s32.totalorder %s30, 5
        %s467 = scalar_select %p466, %s30, 5
        %s468 = smul.addr %s467, 8
        %s469 = scalar_lea.vmem %s1, %s468
      $region76: #{seq2seq_forward.5} parent=71 // pred_fallthru
        _
    $region72: #{seq2seq_forward.5} parent=5 // pred_fallthru
      _
    %p470 = scmp.le.s32.totalorder 1, %s30
    %p471 = scmp.lt.s32.totalorder %s30, 7
    %p472 = pnand %p470, %p471
    %p473 = pneg %p472
    // Predicated region
    $region77: #{seq2seq_forward.5} parent=5 // pred_check
      _
    $region78: #{seq2seq_forward.5} parent=5 // pred_check_branch
      %475 = sbr.rel (%p472) target = $region80
    $region79: #{seq2seq_forward.5} parent=5 // pred_region
      %s476 = ssub.s32 %s30, 1
      %p477 = scmp.lt.s32.totalorder %s35, 5
      %s478 = scalar_select %p477, %s35, 5
      %s479 = smul.addr %s478, 8
      %s480 = scalar_lea.vmem %s1, %s479
      %p481 = pneg %p56
      %p482 = pneg %p53
      %p483 = pneg %p77
      %p484 = pneg %p74
      %p485 = pneg %p98
      %p486 = pneg %p95
      %p487 = pneg %p119
      %p488 = pneg %p116
      %p489 = pneg %p140
      %p490 = pneg %p137
      %p491 = pneg %p161
      %p492 = pneg %p158
      %p493 = pneg %p182
      %p494 = pneg %p179
      %p495 = pneg %p203
      %p496 = pneg %p200
      %p497 = pneg %p224
      %p498 = pneg %p221
      %p499 = pneg %p245
      %p500 = pneg %p242
      %p501 = pneg %p266
      %p502 = pneg %p263
      %p503 = pneg %p287
      %p504 = pneg %p284
      %p505 = pneg %p308
      %p506 = pneg %p305
      %p507 = pneg %p329
      %p508 = pneg %p326
      %p509 = pneg %p350
      %p510 = pneg %p347
      %p511 = pneg %p376
      %p512 = pneg %p373
      %p513 = scmp.lt.s32.totalorder %s35, 5
      %s514 = scalar_select %p513, %s35, 5
      %s515 = smul.addr %s514, 8
      %s516 = scalar_lea.vmem %s16, %s515
      %p517 = pneg %p402
      %p518 = pneg %p399
      %p519 = scmp.lt.s32.totalorder %s35, 5
      %s520 = scalar_select %p519, %s35, 5
      %s521 = smul.addr %s520, 8
      %s522 = scalar_lea.vmem %s17, %s521
      %p523 = scmp.lt.s32.totalorder %s35, 5
      %s524 = scalar_select %p523, %s35, 5
      %s525 = smul.addr %s524, 8
      %s526 = scalar_lea.vmem %s1, %s525
      %p527 = scmp.lt.s32.totalorder %s35, 5
      %s528 = scalar_select %p527, %s35, 5
      %s529 = smul.addr %s528, 8
      %s530 = scalar_lea.vmem %s16, %s529
      %p531 = scmp.lt.s32.totalorder %s35, 5
      %s532 = scalar_select %p531, %s35, 5
      %s533 = smul.addr %s532, 8
      %s534 = scalar_lea.vmem %s17, %s533
      %p535 = scmp.eq.s32.totalorder %s35, 0
      // Predicated region
      $region81: #{seq2seq_forward.5} parent=79 // pred_check
        %p536 = pneg %p535
      $region82: #{seq2seq_forward.5} parent=79 // pred_check_branch
        %538 = sbr.rel (%p536) target = $region84
      $region83: #{seq2seq_forward.5} parent=79 // pred_region
        %539 = vst [vmem:[#allocation2] sm:$0xff] 0.0
        %540 = vst [vmem:[#allocation3] sm:$0xff] 0.0
        %541 = vst [vmem:[#allocation4] sm:$0xff] 0.0
        %542 = vst [vmem:[#allocation5] sm:$0xff] 0.0
        %543 = vst [vmem:[#allocation6] sm:$0xff] 0.0
        %vm544 = vcmask 7168
        %545 = vst.msk [vmem:[#allocation7] sm:$0xff] %vm544, 0
      $region84: #{seq2seq_forward.5} parent=79 // pred_fallthru
        _
      %v546 = vlaneseq
      %v547 = vand.u32 %v546, 127
      %v548 = vld [vmem:[#allocation7] sm:$0xff]
      %549 = vset.pattern.permute.xlu0 0
      %550 = vperm.xlu0 %549, %v548
      %v551 = vpop.permute.xlu0 %550
      %vm552 = vcmp.eq.s32.totalorder %v547, %v551
      %v553 = vsel %vm552, 1, 0
      %v554 = vcvt.s32.f32 %v553
      %v555 = vld [vmem:[%s3] sm:$0xff]
      %v556 = vld [vmem:[%s3 + $0x8] sm:$0xff]
      %v557 = vld [vmem:[%s3 + $0x10] sm:$0xff]
      %v558 = vld [vmem:[%s3 + $0x18] sm:$0xff]
      %v559 = vld [vmem:[%s3 + $0x20] sm:$0xff]
      %v560 = vld [vmem:[%s3 + $0x28] sm:$0xff]
      %v561 = vld [vmem:[%s3 + $0x30] sm:$0xff]
      %v562 = vld [vmem:[%s3 + $0x38] sm:$0xff]
      %v563 = vld [vmem:[%s3 + $0x40] sm:$0xff]
      %v564 = vld [vmem:[%s3 + $0x48] sm:$0xff]
      %v565 = vld [vmem:[%s3 + $0x50] sm:$0xff]
      %v566 = vld [vmem:[%s3 + $0x58] sm:$0xff]
      %v567 = vld [vmem:[%s3 + $0x60] sm:$0xff]
      %v568 = vld [vmem:[%s3 + $0x68] sm:$0xff]
      %v569 = vld [vmem:[%s3 + $0x70] sm:$0xff]
      %v570 = vld [vmem:[%s3 + $0x78] sm:$0xff]
      %571 = vmatprep.subr.mxu0 0.0
      %572 = vmatpush1.msra.mxu0 %v555
      %573 = vmatprep.subr.mxu0 0.0
      %574 = vmatpush1.msra.mxu0 %v556
      %575 = vmatprep.subr.mxu0 0.0
      %576 = vmatpush1.msra.mxu0 %v557
      %577 = vmatprep.subr.mxu0 0.0
      %578 = vmatpush1.msra.mxu0 %v558
      %579 = vmatprep.subr.mxu0 0.0
      %580 = vmatpush1.msra.mxu0 %v559
      %581 = vmatprep.subr.mxu0 0.0
      %582 = vmatpush1.msra.mxu0 %v560
      %583 = vmatprep.subr.mxu0 0.0
      %584 = vmatpush1.msra.mxu0 %v561
      %585 = vmatprep.subr.mxu0 0.0
      %586 = vmatpush1.msra.mxu0 %v562
      %587 = vmatprep.subr.mxu0 0.0
      %588 = vmatpush1.msra.mxu0 %v563
      %589 = vmatprep.subr.mxu0 0.0
      %590 = vmatpush1.msra.mxu0 %v564
      %591 = vmatprep.subr.mxu0 0.0
      %592 = vmatpush1.msra.mxu0 %v565
      %593 = vmatprep.subr.mxu0 0.0
      %594 = vmatpush1.msra.mxu0 %v566
      %595 = vmatprep.subr.mxu0 0.0
      %596 = vmatpush1.msra.mxu0 %v567
      %597 = vmatprep.subr.mxu0 0.0
      %598 = vmatpush1.msra.mxu0 %v568
      %599 = vmatprep.subr.mxu0 0.0
      %600 = vmatpush1.msra.mxu0 %v569
      %601 = vmatprep.subr.mxu0 0.0
      %602 = vmatpush1.msra.mxu0 %v570
      %603 = vmatprep.subr.mxu0 0.0
      %604 = vmatpush1.msra.mxu0 0.0
      %605 = vmatprep.subr.mxu0 0.0
      %606 = vmatpush1.msra.mxu0 0.0
      %607 = vmatprep.subr.mxu0 0.0
      %608 = vmatpush1.msra.mxu0 0.0
      %609 = vmatprep.subr.mxu0 0.0
      %610 = vmatpush1.msra.mxu0 0.0
      %611 = vmatprep.subr.mxu0 0.0
      %612 = vmatpush1.msra.mxu0 0.0
      %613 = vmatprep.subr.mxu0 0.0
      %614 = vmatpush1.msra.mxu0 0.0
      %615 = vmatprep.subr.mxu0 0.0
      %616 = vmatpush1.msra.mxu0 0.0
      %617 = vmatprep.subr.mxu0 0.0
      %618 = vmatpush1.msra.mxu0 0.0
      %619 = vmatprep.subr.mxu0 0.0
      %620 = vmatpush1.msra.mxu0 0.0
      %621 = vmatprep.subr.mxu0 0.0
      %622 = vmatpush1.msra.mxu0 0.0
      %623 = vmatprep.subr.mxu0 0.0
      %624 = vmatpush1.msra.mxu0 0.0
      %625 = vmatprep.subr.mxu0 0.0
      %626 = vmatpush1.msra.mxu0 0.0
      %627 = vmatprep.subr.mxu0 0.0
      %628 = vmatpush1.msra.mxu0 0.0
      %629 = vmatprep.subr.mxu0 0.0
      %630 = vmatpush1.msra.mxu0 0.0
      %631 = vmatprep.subr.mxu0 0.0
      %632 = vmatpush1.msra.mxu0 0.0
      %633 = vmatprep.subr.mxu0 0.0
      %634 = vmatpush1.msra.mxu0 0.0
      %635 = vmatprep.mubr.f32.mxu0 0.0
      %636 = vmatmul.mubr.f32.gmra.mrb[0].mxu0 %v554
      %v637 = vpop.f32.mrb[0].mxu0
      %v638 = vadd.f32 0.0, %v637
      %v639 = vpop.f32.mrb[0].mxu0
      %640 = vdwg.mxu0
      %v641 = vld [vmem:[%s4] sm:$0xff]
      %v642 = vld [vmem:[%s4 + $0x8] sm:$0xff]
      %v643 = vld [vmem:[%s4 + $0x10] sm:$0xff]
      %v644 = vld [vmem:[%s4 + $0x18] sm:$0xff]
      %v645 = vld [vmem:[%s4 + $0x20] sm:$0xff]
      %v646 = vld [vmem:[%s4 + $0x28] sm:$0xff]
      %v647 = vld [vmem:[%s4 + $0x30] sm:$0xff]
      %v648 = vld [vmem:[%s4 + $0x38] sm:$0xff]
      %v649 = vld [vmem:[%s4 + $0x40] sm:$0xff]
      %v650 = vld [vmem:[%s4 + $0x48] sm:$0xff]
      %v651 = vld [vmem:[%s4 + $0x50] sm:$0xff]
      %v652 = vld [vmem:[%s4 + $0x58] sm:$0xff]
      %v653 = vld [vmem:[%s4 + $0x60] sm:$0xff]
      %v654 = vld [vmem:[%s4 + $0x68] sm:$0xff]
      %v655 = vld [vmem:[%s4 + $0x70] sm:$0xff]
      %v656 = vld [vmem:[%s4 + $0x78] sm:$0xff]
      %v657 = vld [vmem:[#allocation6] sm:$0xff]
      %v658 = vld [vmem:[%s5] sm:$0xff]
      %v659 = vld [vmem:[%s5 + $0x8] sm:$0xff]
      %v660 = vld [vmem:[%s5 + $0x10] sm:$0xff]
      %v661 = vld [vmem:[%s5 + $0x18] sm:$0xff]
      %v662 = vld [vmem:[%s5 + $0x20] sm:$0xff]
      %v663 = vld [vmem:[%s5 + $0x28] sm:$0xff]
      %v664 = vld [vmem:[%s5 + $0x30] sm:$0xff]
      %v665 = vld [vmem:[%s5 + $0x38] sm:$0xff]
      %v666 = vld [vmem:[%s5 + $0x40] sm:$0xff]
      %v667 = vld [vmem:[%s5 + $0x48] sm:$0xff]
      %v668 = vld [vmem:[%s5 + $0x50] sm:$0xff]
      %v669 = vld [vmem:[%s5 + $0x58] sm:$0xff]
      %v670 = vld [vmem:[%s5 + $0x60] sm:$0xff]
      %v671 = vld [vmem:[%s5 + $0x68] sm:$0xff]
      %v672 = vld [vmem:[%s5 + $0x70] sm:$0xff]
      %v673 = vld [vmem:[%s5 + $0x78] sm:$0xff]
      %v674 = vld [vmem:[%s5 + $0x80] sm:$0xff]
      %v675 = vld [vmem:[%s5 + $0x88] sm:$0xff]
      %v676 = vld [vmem:[%s5 + $0x90] sm:$0xff]
      %v677 = vld [vmem:[%s5 + $0x98] sm:$0xff]
      %v678 = vld [vmem:[%s5 + $0xa0] sm:$0xff]
      %v679 = vld [vmem:[%s5 + $0xa8] sm:$0xff]
      %v680 = vld [vmem:[%s5 + $0xb0] sm:$0xff]
      %v681 = vld [vmem:[%s5 + $0xb8] sm:$0xff]
      %v682 = vld [vmem:[%s5 + $0xc0] sm:$0xff]
      %v683 = vld [vmem:[%s5 + $0xc8] sm:$0xff]
      %v684 = vld [vmem:[%s5 + $0xd0] sm:$0xff]
      %v685 = vld [vmem:[%s5 + $0xd8] sm:$0xff]
      %v686 = vld [vmem:[%s5 + $0xe0] sm:$0xff]
      %v687 = vld [vmem:[%s5 + $0xe8] sm:$0xff]
      %v688 = vld [vmem:[%s5 + $0xf0] sm:$0xff]
      %v689 = vld [vmem:[%s5 + $0xf8] sm:$0xff]
      %v690 = vld [vmem:[%s5 + $0x100] sm:$0xff]
      %v691 = vld [vmem:[%s5 + $0x108] sm:$0xff]
      %v692 = vld [vmem:[%s5 + $0x110] sm:$0xff]
      %v693 = vld [vmem:[%s5 + $0x118] sm:$0xff]
      %v694 = vld [vmem:[%s5 + $0x120] sm:$0xff]
      %v695 = vld [vmem:[%s5 + $0x128] sm:$0xff]
      %v696 = vld [vmem:[%s5 + $0x130] sm:$0xff]
      %v697 = vld [vmem:[%s5 + $0x138] sm:$0xff]
      %v698 = vld [vmem:[%s5 + $0x140] sm:$0xff]
      %v699 = vld [vmem:[%s5 + $0x148] sm:$0xff]
      %v700 = vld [vmem:[%s5 + $0x150] sm:$0xff]
      %v701 = vld [vmem:[%s5 + $0x158] sm:$0xff]
      %v702 = vld [vmem:[%s5 + $0x160] sm:$0xff]
      %v703 = vld [vmem:[%s5 + $0x168] sm:$0xff]
      %v704 = vld [vmem:[%s5 + $0x170] sm:$0xff]
      %v705 = vld [vmem:[%s5 + $0x178] sm:$0xff]
      %v706 = vld [vmem:[%s5 + $0x180] sm:$0xff]
      %v707 = vld [vmem:[%s5 + $0x188] sm:$0xff]
      %v708 = vld [vmem:[%s5 + $0x190] sm:$0xff]
      %v709 = vld [vmem:[%s5 + $0x198] sm:$0xff]
      %v710 = vld [vmem:[%s5 + $0x1a0] sm:$0xff]
      %v711 = vld [vmem:[%s5 + $0x1a8] sm:$0xff]
      %v712 = vld [vmem:[%s5 + $0x1b0] sm:$0xff]
      %v713 = vld [vmem:[%s5 + $0x1b8] sm:$0xff]
      %v714 = vld [vmem:[%s5 + $0x1c0] sm:$0xff]
      %v715 = vld [vmem:[%s5 + $0x1c8] sm:$0xff]
      %v716 = vld [vmem:[%s5 + $0x1d0] sm:$0xff]
      %v717 = vld [vmem:[%s5 + $0x1d8] sm:$0xff]
      %v718 = vld [vmem:[%s5 + $0x1e0] sm:$0xff]
      %v719 = vld [vmem:[%s5 + $0x1e8] sm:$0xff]
      %v720 = vld [vmem:[%s5 + $0x1f0] sm:$0xff]
      %v721 = vld [vmem:[%s5 + $0x1f8] sm:$0xff]
      %722 = vmatprep.subr.mxu0 %v659
      %723 = vmatpush1.msra.mxu0 %v658
      %724 = vmatprep.subr.mxu0 %v663
      %725 = vmatpush1.msra.mxu0 %v662
      %726 = vmatprep.subr.mxu0 %v667
      %727 = vmatpush1.msra.mxu0 %v666
      %728 = vmatprep.subr.mxu0 %v671
      %729 = vmatpush1.msra.mxu0 %v670
      %730 = vmatprep.subr.mxu0 %v675
      %731 = vmatpush1.msra.mxu0 %v674
      %732 = vmatprep.subr.mxu0 %v679
      %733 = vmatpush1.msra.mxu0 %v678
      %734 = vmatprep.subr.mxu0 %v683
      %735 = vmatpush1.msra.mxu0 %v682
      %736 = vmatprep.subr.mxu0 %v687
      %737 = vmatpush1.msra.mxu0 %v686
      %738 = vmatprep.subr.mxu0 %v691
      %739 = vmatpush1.msra.mxu0 %v690
      %740 = vmatprep.subr.mxu0 %v695
      %741 = vmatpush1.msra.mxu0 %v694
      %742 = vmatprep.subr.mxu0 %v699
      %743 = vmatpush1.msra.mxu0 %v698
      %744 = vmatprep.subr.mxu0 %v703
      %745 = vmatpush1.msra.mxu0 %v702
      %746 = vmatprep.subr.mxu0 %v707
      %747 = vmatpush1.msra.mxu0 %v706
      %748 = vmatprep.subr.mxu0 %v711
      %749 = vmatpush1.msra.mxu0 %v710
      %750 = vmatprep.subr.mxu0 %v715
      %751 = vmatpush1.msra.mxu0 %v714
      %752 = vmatprep.subr.mxu0 %v719
      %753 = vmatpush1.msra.mxu0 %v718
      %754 = vmatprep.subr.mxu0 0.0
      %755 = vmatpush1.msra.mxu0 0.0
      %756 = vmatprep.subr.mxu0 0.0
      %757 = vmatpush1.msra.mxu0 0.0
      %758 = vmatprep.subr.mxu0 0.0
      %759 = vmatpush1.msra.mxu0 0.0
      %760 = vmatprep.subr.mxu0 0.0
      %761 = vmatpush1.msra.mxu0 0.0
      %762 = vmatprep.subr.mxu0 0.0
      %763 = vmatpush1.msra.mxu0 0.0
      %764 = vmatprep.subr.mxu0 0.0
      %765 = vmatpush1.msra.mxu0 0.0
      %766 = vmatprep.subr.mxu0 0.0
      %767 = vmatpush1.msra.mxu0 0.0
      %768 = vmatprep.subr.mxu0 0.0
      %769 = vmatpush1.msra.mxu0 0.0
      %770 = vmatprep.subr.mxu0 0.0
      %771 = vmatpush1.msra.mxu0 0.0
      %772 = vmatprep.subr.mxu0 0.0
      %773 = vmatpush1.msra.mxu0 0.0
      %774 = vmatprep.subr.mxu0 0.0
      %775 = vmatpush1.msra.mxu0 0.0
      %776 = vmatprep.subr.mxu0 0.0
      %777 = vmatpush1.msra.mxu0 0.0
      %778 = vmatprep.subr.mxu0 0.0
      %779 = vmatpush1.msra.mxu0 0.0
      %780 = vmatprep.subr.mxu0 0.0
      %781 = vmatpush1.msra.mxu0 0.0
      %782 = vmatprep.subr.mxu0 0.0
      %783 = vmatpush1.msra.mxu0 0.0
      %784 = vmatprep.subr.mxu0 0.0
      %785 = vmatpush1.msra.mxu0 0.0
      %786 = vmatprep.mubr.f32.mxu0 0.0
      %787 = vmatmul.mubr.f32.gmra.mrb[0].mxu0 %v657
      %v788 = vpop.f32.mrb[0].mxu0
      %v789 = vadd.f32 0.0, %v788
      %v790 = vpop.f32.mrb[0].mxu0
      %v791 = vadd.f32 0.0, %v790
      %792 = vdwg.mxu0
      %793 = vmatprep.subr.mxu0 %v661
      %794 = vmatpush1.msra.mxu0 %v660
      %795 = vmatprep.subr.mxu0 %v665
      %796 = vmatpush1.msra.mxu0 %v664
      %797 = vmatprep.subr.mxu0 %v669
      %798 = vmatpush1.msra.mxu0 %v668
      %799 = vmatprep.subr.mxu0 %v673
      %800 = vmatpush1.msra.mxu0 %v672
      %801 = vmatprep.subr.mxu0 %v677
      %802 = vmatpush1.msra.mxu0 %v676
      %803 = vmatprep.subr.mxu0 %v681
      %804 = vmatpush1.msra.mxu0 %v680
      %805 = vmatprep.subr.mxu0 %v685
      %806 = vmatpush1.msra.mxu0 %v684
      %807 = vmatprep.subr.mxu0 %v689
      %808 = vmatpush1.msra.mxu0 %v688
      %809 = vmatprep.subr.mxu0 %v693
      %810 = vmatpush1.msra.mxu0 %v692
      %811 = vmatprep.subr.mxu0 %v697
      %812 = vmatpush1.msra.mxu0 %v696
      %813 = vmatprep.subr.mxu0 %v701
      %814 = vmatpush1.msra.mxu0 %v700
      %815 = vmatprep.subr.mxu0 %v705
      %816 = vmatpush1.msra.mxu0 %v704
      %817 = vmatprep.subr.mxu0 %v709
      %818 = vmatpush1.msra.mxu0 %v708
      %819 = vmatprep.subr.mxu0 %v713
      %820 = vmatpush1.msra.mxu0 %v712
      %821 = vmatprep.subr.mxu0 %v717
      %822 = vmatpush1.msra.mxu0 %v716
      %823 = vmatprep.subr.mxu0 %v721
      %824 = vmatpush1.msra.mxu0 %v720
      %825 = vmatprep.subr.mxu0 0.0
      %826 = vmatpush1.msra.mxu0 0.0
      %827 = vmatprep.subr.mxu0 0.0
      %828 = vmatpush1.msra.mxu0 0.0
      %829 = vmatprep.subr.mxu0 0.0
      %830 = vmatpush1.msra.mxu0 0.0
      %831 = vmatprep.subr.mxu0 0.0
      %832 = vmatpush1.msra.mxu0 0.0
      %833 = vmatprep.subr.mxu0 0.0
      %834 = vmatpush1.msra.mxu0 0.0
      %835 = vmatprep.subr.mxu0 0.0
      %836 = vmatpush1.msra.mxu0 0.0
      %837 = vmatprep.subr.mxu0 0.0
      %838 = vmatpush1.msra.mxu0 0.0
      %839 = vmatprep.subr.mxu0 0.0
      %840 = vmatpush1.msra.mxu0 0.0
      %841 = vmatprep.subr.mxu0 0.0
      %842 = vmatpush1.msra.mxu0 0.0
      %843 = vmatprep.subr.mxu0 0.0
      %844 = vmatpush1.msra.mxu0 0.0
      %845 = vmatprep.subr.mxu0 0.0
      %846 = vmatpush1.msra.mxu0 0.0
      %847 = vmatprep.subr.mxu0 0.0
      %848 = vmatpush1.msra.mxu0 0.0
      %849 = vmatprep.subr.mxu0 0.0
      %850 = vmatpush1.msra.mxu0 0.0
      %851 = vmatprep.subr.mxu0 0.0
      %852 = vmatpush1.msra.mxu0 0.0
      %853 = vmatprep.subr.mxu0 0.0
      %854 = vmatpush1.msra.mxu0 0.0
      %855 = vmatprep.subr.mxu0 0.0
      %856 = vmatpush1.msra.mxu0 0.0
      %857 = vmatprep.mubr.f32.mxu0 0.0
      %858 = vmatmul.mubr.f32.gmra.mrb[0].mxu0 %v657
      %v859 = vpop.f32.mrb[0].mxu0
      %v860 = vadd.f32 0.0, %v859
      %v861 = vpop.f32.mrb[0].mxu0
      %v862 = vadd.f32 0.0, %v861
      %863 = vdwg.mxu0
      %vm864 = vcmask 261120
      %v866 = vsel %vm864, %v638, 0
      %868 = vmatprep.subr.mxu0 %v642
      %869 = vmatpush1.msra.mxu0 %v641
      %870 = vmatprep.subr.mxu0 %v646
      %871 = vmatpush1.msra.mxu0 %v645
      %872 = vmatprep.subr.mxu0 %v650
      %873 = vmatpush1.msra.mxu0 %v649
      %874 = vmatprep.subr.mxu0 %v654
      %875 = vmatpush1.msra.mxu0 %v653
      %876 = vmatprep.subr.mxu0 0.0
      %877 = vmatpush1.msra.mxu0 0.0
      %878 = vmatprep.subr.mxu0 0.0
      %879 = vmatpush1.msra.mxu0 0.0
      %880 = vmatprep.subr.mxu0 0.0
      %881 = vmatpush1.msra.mxu0 0.0
      %882 = vmatprep.subr.mxu0 0.0
      %883 = vmatpush1.msra.mxu0 0.0
      %884 = vmatprep.subr.mxu0 0.0
      %885 = vmatpush1.msra.mxu0 0.0
      %886 = vmatprep.subr.mxu0 0.0
      %887 = vmatpush1.msra.mxu0 0.0
      %888 = vmatprep.subr.mxu0 0.0
      %889 = vmatpush1.msra.mxu0 0.0
      %890 = vmatprep.subr.mxu0 0.0
      %891 = vmatpush1.msra.mxu0 0.0
      %892 = vmatprep.subr.mxu0 0.0
      %893 = vmatpush1.msra.mxu0 0.0
      %894 = vmatprep.subr.mxu0 0.0
      %895 = vmatpush1.msra.mxu0 0.0
      %896 = vmatprep.subr.mxu0 0.0
      %897 = vmatpush1.msra.mxu0 0.0
      %898 = vmatprep.subr.mxu0 0.0
      %899 = vmatpush1.msra.mxu0 0.0
      %900 = vmatprep.subr.mxu0 0.0
      %901 = vmatpush1.msra.mxu0 0.0
      %902 = vmatprep.subr.mxu0 0.0
      %903 = vmatpush1.msra.mxu0 0.0
      %904 = vmatprep.subr.mxu0 0.0
      %905 = vmatpush1.msra.mxu0 0.0
      %906 = vmatprep.subr.mxu0 0.0
      %907 = vmatpush1.msra.mxu0 0.0
      %908 = vmatprep.subr.mxu0 0.0
      %909 = vmatpush1.msra.mxu0 0.0
      %910 = vmatprep.subr.mxu0 0.0
      %911 = vmatpush1.msra.mxu0 0.0
      %912 = vmatprep.subr.mxu0 0.0
      %913 = vmatpush1.msra.mxu0 0.0
      %914 = vmatprep.subr.mxu0 0.0
      %915 = vmatpush1.msra.mxu0 0.0
      %916 = vmatprep.subr.mxu0 0.0
      %917 = vmatpush1.msra.mxu0 0.0
      %918 = vmatprep.subr.mxu0 0.0
      %919 = vmatpush1.msra.mxu0 0.0
      %920 = vmatprep.subr.mxu0 0.0
      %921 = vmatpush1.msra.mxu0 0.0
      %922 = vmatprep.subr.mxu0 0.0
      %923 = vmatpush1.msra.mxu0 0.0
      %924 = vmatprep.subr.mxu0 0.0
      %925 = vmatpush1.msra.mxu0 0.0
      %926 = vmatprep.subr.mxu0 0.0
      %927 = vmatpush1.msra.mxu0 0.0
      %928 = vmatprep.subr.mxu0 0.0
      %929 = vmatpush1.msra.mxu0 0.0
      %930 = vmatprep.subr.mxu0 0.0
      %931 = vmatpush1.msra.mxu0 0.0
      %932 = vmatprep.mubr.f32.mxu0 0.0
      %933 = vmatmul.mubr.f32.gmra.mrb[0].mxu0 %v866
      %v934 = vpop.f32.mrb[0].mxu0
      %v935 = vadd.f32 %v789, %v934
      %v936 = vpop.f32.mrb[0].mxu0
      %v937 = vadd.f32 %v791, %v936
      %938 = vdwg.mxu0
      %939 = vmatprep.subr.mxu0 %v644
      %940 = vmatpush1.msra.mxu0 %v643
      %941 = vmatprep.subr.mxu0 %v648
      %942 = vmatpush1.msra.mxu0 %v647
      %943 = vmatprep.subr.mxu0 %v652
      %944 = vmatpush1.msra.mxu0 %v651
      %945 = vmatprep.subr.mxu0 %v656
      %946 = vmatpush1.msra.mxu0 %v655
      %947 = vmatprep.subr.mxu0 0.0
      %948 = vmatpush1.msra.mxu0 0.0
      %949 = vmatprep.subr.mxu0 0.0
      %950 = vmatpush1.msra.mxu0 0.0
      %951 = vmatprep.subr.mxu0 0.0
      %952 = vmatpush1.msra.mxu0 0.0
      %953 = vmatprep.subr.mxu0 0.0
      %954 = vmatpush1.msra.mxu0 0.0
      %955 = vmatprep.subr.mxu0 0.0
      %956 = vmatpush1.msra.mxu0 0.0
      %957 = vmatprep.subr.mxu0 0.0
      %958 = vmatpush1.msra.mxu0 0.0
      %959 = vmatprep.subr.mxu0 0.0
      %960 = vmatpush1.msra.mxu0 0.0
      %961 = vmatprep.subr.mxu0 0.0
      %962 = vmatpush1.msra.mxu0 0.0
      %963 = vmatprep.subr.mxu0 0.0
      %964 = vmatpush1.msra.mxu0 0.0
      %965 = vmatprep.subr.mxu0 0.0
      %966 = vmatpush1.msra.mxu0 0.0
      %967 = vmatprep.subr.mxu0 0.0
      %968 = vmatpush1.msra.mxu0 0.0
      %969 = vmatprep.subr.mxu0 0.0
      %970 = vmatpush1.msra.mxu0 0.0
      %971 = vmatprep.subr.mxu0 0.0
      %972 = vmatpush1.msra.mxu0 0.0
      %973 = vmatprep.subr.mxu0 0.0
      %974 = vmatpush1.msra.mxu0 0.0
      %975 = vmatprep.subr.mxu0 0.0
      %976 = vmatpush1.msra.mxu0 0.0
      %977 = vmatprep.subr.mxu0 0.0
      %978 = vmatpush1.msra.mxu0 0.0
      %979 = vmatprep.subr.mxu0 0.0
      %980 = vmatpush1.msra.mxu0 0.0
      %981 = vmatprep.subr.mxu0 0.0
      %982 = vmatpush1.msra.mxu0 0.0
      %983 = vmatprep.subr.mxu0 0.0
      %984 = vmatpush1.msra.mxu0 0.0
      %985 = vmatprep.subr.mxu0 0.0
      %986 = vmatpush1.msra.mxu0 0.0
      %987 = vmatprep.subr.mxu0 0.0
      %988 = vmatpush1.msra.mxu0 0.0
      %989 = vmatprep.subr.mxu0 0.0
      %990 = vmatpush1.msra.mxu0 0.0
      %991 = vmatprep.subr.mxu0 0.0
      %992 = vmatpush1.msra.mxu0 0.0
      %993 = vmatprep.subr.mxu0 0.0
      %994 = vmatpush1.msra.mxu0 0.0
      %995 = vmatprep.subr.mxu0 0.0
      %996 = vmatpush1.msra.mxu0 0.0
      %997 = vmatprep.subr.mxu0 0.0
      %998 = vmatpush1.msra.mxu0 0.0
      %999 = vmatprep.subr.mxu0 0.0
      %1000 = vmatpush1.msra.mxu0 0.0
      %1001 = vmatprep.subr.mxu0 0.0
      %1002 = vmatpush1.msra.mxu0 0.0
      %1003 = vmatprep.mubr.f32.mxu0 0.0
      %1004 = vmatmul.mubr.f32.gmra.mrb[0].mxu0 %v866
      %v1005 = vpop.f32.mrb[0].mxu0
      %v1006 = vadd.f32 %v860, %v1005
      %v1007 = vpop.f32.mrb[0].mxu0
      %v1008 = vadd.f32 %v862, %v1007
      %1009 = vdwg.mxu0
      %v1010 = vld [vmem:[#allocation2] sm:$0xff]
      %v1011 = vld [vmem:[%s6] sm:$0xff]
      %v1012 = vld [vmem:[%s6 + $0x8] sm:$0xff]
      %v1013 = vld [vmem:[%s6 + $0x10] sm:$0xff]
      %v1014 = vld [vmem:[%s6 + $0x18] sm:$0xff]
      %v1015 = vld [vmem:[%s6 + $0x20] sm:$0xff]
      %v1016 = vld [vmem:[%s6 + $0x28] sm:$0xff]
      %v1017 = vld [vmem:[%s6 + $0x30] sm:$0xff]
      %v1018 = vld [vmem:[%s6 + $0x38] sm:$0xff]
      %v1019 = vld [vmem:[%s6 + $0x40] sm:$0xff]
      %v1020 = vld [vmem:[%s6 + $0x48] sm:$0xff]
      %v1021 = vld [vmem:[%s6 + $0x50] sm:$0xff]
      %v1022 = vld [vmem:[%s6 + $0x58] sm:$0xff]
      %v1023 = vld [vmem:[%s6 + $0x60] sm:$0xff]
      %v1024 = vld [vmem:[%s6 + $0x68] sm:$0xff]
      %v1025 = vld [vmem:[%s6 + $0x70] sm:$0xff]
      %v1026 = vld [vmem:[%s6 + $0x78] sm:$0xff]
      %v1027 = vld [vmem:[%s6 + $0x80] sm:$0xff]
      %v1028 = vld [vmem:[%s6 + $0x88] sm:$0xff]
      %v1029 = vld [vmem:[%s6 + $0x90] sm:$0xff]
      %v1030 = vld [vmem:[%s6 + $0x98] sm:$0xff]
      %v1031 = vld [vmem:[%s6 + $0xa0] sm:$0xff]
      %v1032 = vld [vmem:[%s6 + $0xa8] sm:$0xff]
      %v1033 = vld [vmem:[%s6 + $0xb0] sm:$0xff]
      %v1034 = vld [vmem:[%s6 + $0xb8] sm:$0xff]
      %v1035 = vld [vmem:[%s6 + $0xc0] sm:$0xff]
      %v1036 = vld [vmem:[%s6 + $0xc8] sm:$0xff]
      %v1037 = vld [vmem:[%s6 + $0xd0] sm:$0xff]
      %v1038 = vld [vmem:[%s6 + $0xd8] sm:$0xff]
      %v1039 = vld [vmem:[%s6 + $0xe0] sm:$0xff]
      %v1040 = vld [vmem:[%s6 + $0xe8] sm:$0xff]
      %v1041 = vld [vmem:[%s6 + $0xf0] sm:$0xff]
      %v1042 = vld [vmem:[%s6 + $0xf8] sm:$0xff]
      %v1043 = vld [vmem:[%s6 + $0x100] sm:$0xff]
      %v1044 = vld [vmem:[%s6 + $0x108] sm:$0xff]
      %v1045 = vld [vmem:[%s6 + $0x110] sm:$0xff]
      %v1046 = vld [vmem:[%s6 + $0x118] sm:$0xff]
      %v1047 = vld [vmem:[%s6 + $0x120] sm:$0xff]
      %v1048 = vld [vmem:[%s6 + $0x128] sm:$0xff]
      %v1049 = vld [vmem:[%s6 + $0x130] sm:$0xff]
      %v1050 = vld [vmem:[%s6 + $0x138] sm:$0xff]
      %v1051 = vld [vmem:[%s6 + $0x140] sm:$0xff]
      %v1052 = vld [vmem:[%s6 + $0x148] sm:$0xff]
      %v1053 = vld [vmem:[%s6 + $0x150] sm:$0xff]
      %v1054 = vld [vmem:[%s6 + $0x158] sm:$0xff]
      %v1055 = vld [vmem:[%s6 + $0x160] sm:$0xff]
      %v1056 = vld [vmem:[%s6 + $0x168] sm:$0xff]
      %v1057 = vld [vmem:[%s6 + $0x170] sm:$0xff]
      %v1058 = vld [vmem:[%s6 + $0x178] sm:$0xff]
      %v1059 = vld [vmem:[%s6 + $0x180] sm:$0xff]
      %v1060 = vld [vmem:[%s6 + $0x188] sm:$0xff]
      %v1061 = vld [vmem:[%s6 + $0x190] sm:$0xff]
      %v1062 = vld [vmem:[%s6 + $0x198] sm:$0xff]
      %v1063 = vld [vmem:[%s6 + $0x1a0] sm:$0xff]
      %v1064 = vld [vmem:[%s6 + $0x1a8] sm:$0xff]
      %v1065 = vld [vmem:[%s6 + $0x1b0] sm:$0xff]
      %v1066 = vld [vmem:[%s6 + $0x1b8] sm:$0xff]
      %v1067 = vld [vmem:[%s6 + $0x1c0] sm:$0xff]
      %v1068 = vld [vmem:[%s6 + $0x1c8] sm:$0xff]
      %v1069 = vld [vmem:[%s6 + $0x1d0] sm:$0xff]
      %v1070 = vld [vmem:[%s6 + $0x1d8] sm:$0xff]
      %v1071 = vld [vmem:[%s6 + $0x1e0] sm:$0xff]
      %v1072 = vld [vmem:[%s6 + $0x1e8] sm:$0xff]
      %v1073 = vld [vmem:[%s6 + $0x1f0] sm:$0xff]
      %v1074 = vld [vmem:[%s6 + $0x1f8] sm:$0xff]
      %1075 = vmatprep.subr.mxu0 %v1012
      %1076 = vmatpush1.msra.mxu0 %v1011
      %1077 = vmatprep.subr.mxu0 %v1016
      %1078 = vmatpush1.msra.mxu0 %v1015
      %1079 = vmatprep.subr.mxu0 %v1020
      %1080 = vmatpush1.msra.mxu0 %v1019
      %1081 = vmatprep.subr.mxu0 %v1024
      %1082 = vmatpush1.msra.mxu0 %v1023
      %1083 = vmatprep.subr.mxu0 %v1028
      %1084 = vmatpush1.msra.mxu0 %v1027
      %1085 = vmatprep.subr.mxu0 %v1032
      %1086 = vmatpush1.msra.mxu0 %v1031
      %1087 = vmatprep.subr.mxu0 %v1036
      %1088 = vmatpush1.msra.mxu0 %v1035
      %1089 = vmatprep.subr.mxu0 %v1040
      %1090 = vmatpush1.msra.mxu0 %v1039
      %1091 = vmatprep.subr.mxu0 %v1044
      %1092 = vmatpush1.msra.mxu0 %v1043
      %1093 = vmatprep.subr.mxu0 %v1048
      %1094 = vmatpush1.msra.mxu0 %v1047
      %1095 = vmatprep.subr.mxu0 %v1052
      %1096 = vmatpush1.msra.mxu0 %v1051
      %1097 = vmatprep.subr.mxu0 %v1056
      %1098 = vmatpush1.msra.mxu0 %v1055
      %1099 = vmatprep.subr.mxu0 %v1060
      %1100 = vmatpush1.msra.mxu0 %v1059
      %1101 = vmatprep.subr.mxu0 %v1064
      %1102 = vmatpush1.msra.mxu0 %v1063
      %1103 = vmatprep.subr.mxu0 %v1068
      %1104 = vmatpush1.msra.mxu0 %v1067
      %1105 = vmatprep.subr.mxu0 %v1072
      %1106 = vmatpush1.msra.mxu0 %v1071
      %1107 = vmatprep.subr.mxu0 0.0
      %1108 = vmatpush1.msra.mxu0 0.0
      %1109 = vmatprep.subr.mxu0 0.0
      %1110 = vmatpush1.msra.mxu0 0.0
      %1111 = vmatprep.subr.mxu0 0.0
      %1112 = vmatpush1.msra.mxu0 0.0
      %1113 = vmatprep.subr.mxu0 0.0
      %1114 = vmatpush1.msra.mxu0 0.0
      %1115 = vmatprep.subr.mxu0 0.0
      %1116 = vmatpush1.msra.mxu0 0.0
      %1117 = vmatprep.subr.mxu0 0.0
      %1118 = vmatpush1.msra.mxu0 0.0
      %1119 = vmatprep.subr.mxu0 0.0
      %1120 = vmatpush1.msra.mxu0 0.0
      %1121 = vmatprep.subr.mxu0 0.0
      %1122 = vmatpush1.msra.mxu0 0.0
      %1123 = vmatprep.subr.mxu0 0.0
      %1124 = vmatpush1.msra.mxu0 0.0
      %1125 = vmatprep.subr.mxu0 0.0
      %1126 = vmatpush1.msra.mxu0 0.0
      %1127 = vmatprep.subr.mxu0 0.0
      %1128 = vmatpush1.msra.mxu0 0.0
      %1129 = vmatprep.subr.mxu0 0.0
      %1130 = vmatpush1.msra.mxu0 0.0
      %1131 = vmatprep.subr.mxu0 0.0
      %1132 = vmatpush1.msra.mxu0 0.0
      %1133 = vmatprep.subr.mxu0 0.0
      %1134 = vmatpush1.msra.mxu0 0.0
      %1135 = vmatprep.subr.mxu0 0.0
      %1136 = vmatpush1.msra.mxu0 0.0
      %1137 = vmatprep.subr.mxu0 0.0
      %1138 = vmatpush1.msra.mxu0 0.0
      %1139 = vmatprep.mubr.f32.mxu0 0.0
      %1140 = vmatmul.mubr.f32.gmra.mrb[0].mxu0 %v1010
      %v1141 = vpop.f32.mrb[0].mxu0
      %v1142 = vadd.f32 0.0, %v1141
      %v1143 = vpop.f32.mrb[0].mxu0
      %v1144 = vadd.f32 0.0, %v1143
      %1145 = vdwg.mxu0
      %1146 = vmatprep.subr.mxu0 %v1014
      %1147 = vmatpush1.msra.mxu0 %v1013
      %1148 = vmatprep.subr.mxu0 %v1018
      %1149 = vmatpush1.msra.mxu0 %v1017
      %1150 = vmatprep.subr.mxu0 %v1022
      %1151 = vmatpush1.msra.mxu0 %v1021
      %1152 = vmatprep.subr.mxu0 %v1026
      %1153 = vmatpush1.msra.mxu0 %v1025
      %1154 = vmatprep.subr.mxu0 %v1030
      %1155 = vmatpush1.msra.mxu0 %v1029
      %1156 = vmatprep.subr.mxu0 %v1034
      %1157 = vmatpush1.msra.mxu0 %v1033
      %1158 = vmatprep.subr.mxu0 %v1038
      %1159 = vmatpush1.msra.mxu0 %v1037
      %1160 = vmatprep.subr.mxu0 %v1042
      %1161 = vmatpush1.msra.mxu0 %v1041
      %1162 = vmatprep.subr.mxu0 %v1046
      %1163 = vmatpush1.msra.mxu0 %v1045
      %1164 = vmatprep.subr.mxu0 %v1050
      %1165 = vmatpush1.msra.mxu0 %v1049
      %1166 = vmatprep.subr.mxu0 %v1054
      %1167 = vmatpush1.msra.mxu0 %v1053
      %1168 = vmatprep.subr.mxu0 %v1058
      %1169 = vmatpush1.msra.mxu0 %v1057
      %1170 = vmatprep.subr.mxu0 %v1062
      %1171 = vmatpush1.msra.mxu0 %v1061
      %1172 = vmatprep.subr.mxu0 %v1066
      %1173 = vmatpush1.msra.mxu0 %v1065
      %1174 = vmatprep.subr.mxu0 %v1070
      %1175 = vmatpush1.msra.mxu0 %v1069
      %1176 = vmatprep.subr.mxu0 %v1074
      %1177 = vmatpush1.msra.mxu0 %v1073
      %1178 = vmatprep.subr.mxu0 0.0
      %1179 = vmatpush1.msra.mxu0 0.0
      %1180 = vmatprep.subr.mxu0 0.0
      %1181 = vmatpush1.msra.mxu0 0.0
      %1182 = vmatprep.subr.mxu0 0.0
      %1183 = vmatpush1.msra.mxu0 0.0
      %1184 = vmatprep.subr.mxu0 0.0
      %1185 = vmatpush1.msra.mxu0 0.0
      %1186 = vmatprep.subr.mxu0 0.0
      %1187 = vmatpush1.msra.mxu0 0.0
      %1188 = vmatprep.subr.mxu0 0.0
      %1189 = vmatpush1.msra.mxu0 0.0
      %1190 = vmatprep.subr.mxu0 0.0
      %1191 = vmatpush1.msra.mxu0 0.0
      %1192 = vmatprep.subr.mxu0 0.0
      %1193 = vmatpush1.msra.mxu0 0.0
      %1194 = vmatprep.subr.mxu0 0.0
      %1195 = vmatpush1.msra.mxu0 0.0
      %1196 = vmatprep.subr.mxu0 0.0
      %1197 = vmatpush1.msra.mxu0 0.0
      %1198 = vmatprep.subr.mxu0 0.0
      %1199 = vmatpush1.msra.mxu0 0.0
      %1200 = vmatprep.subr.mxu0 0.0
      %1201 = vmatpush1.msra.mxu0 0.0
      %1202 = vmatprep.subr.mxu0 0.0
      %1203 = vmatpush1.msra.mxu0 0.0
      %1204 = vmatprep.subr.mxu0 0.0
      %1205 = vmatpush1.msra.mxu0 0.0
      %1206 = vmatprep.subr.mxu0 0.0
      %1207 = vmatpush1.msra.mxu0 0.0
      %1208 = vmatprep.subr.mxu0 0.0
      %1209 = vmatpush1.msra.mxu0 0.0
      %1210 = vmatprep.mubr.f32.mxu0 0.0
      %1211 = vmatmul.mubr.f32.gmra.mrb[0].mxu0 %v1010
      %v1212 = vpop.f32.mrb[0].mxu0
      %v1213 = vadd.f32 0.0, %v1212
      %v1214 = vpop.f32.mrb[0].mxu0
      %v1215 = vadd.f32 0.0, %v1214
      %1216 = vdwg.mxu0
      %v1217 = vadd.f32 %v935, %v1142
      %v1218 = vadd.f32 %v937, %v1144
      %v1219 = vadd.f32 %v1006, %v1213
      %v1220 = vadd.f32 %v1008, %v1215
      %v1221 = vld [vmem:[%s7] sm:$0xf]
      %v1223 = vlaneseq
      %v1224 = vshrl.u32 %v1223, 7
      %v1225 = vsub.s32 0, %v1224
      %v1226 = vrot.slane %v1221, %v1225
      %v1227 = vlaneseq
      %v1228 = vshrl.u32 %v1227, 7
      %v1229 = vsub.s32 1, %v1228
      %v1230 = vrot.slane %v1221, %v1229
      %v1231 = vlaneseq
      %v1232 = vshrl.u32 %v1231, 7
      %v1233 = vsub.s32 2, %v1232
      %v1234 = vrot.slane %v1221, %v1233
      %v1235 = vlaneseq
      %v1236 = vshrl.u32 %v1235, 7
      %v1237 = vsub.s32 3, %v1236
      %v1238 = vrot.slane %v1221, %v1237
      %v1243 = vadd.f32 %v1217, %v1226
      %v1244 = vadd.f32 %v1218, %v1230
      %v1245 = vadd.f32 %v1219, %v1234
      %v1246 = vadd.f32 %v1220, %v1238
      %v1247 = vxor.u32 %v1243, 2147483648
      %v1248 = vmul.f32 %v1247, 1.442695
      %v1249 = vpow.pop %v1248
      %v1250 = vadd.f32 %v1249, 1.0
      %v1251 = vrcp.pop %v1250
      %v1252 = vmul.f32 1.0, %v1251
      %v1253 = vxor.u32 %v1244, 2147483648
      %v1254 = vmul.f32 %v1253, 1.442695
      %v1255 = vpow.pop %v1254
      %v1256 = vadd.f32 %v1255, 1.0
      %v1257 = vrcp.pop %v1256
      %v1258 = vmul.f32 1.0, %v1257
      %v1259 = vtanh.pop %v1245
      %v1260 = vxor.u32 %v1246, 2147483648
      %v1261 = vmul.f32 %v1260, 1.442695
      %v1262 = vpow.pop %v1261
      %v1263 = vadd.f32 %v1262, 1.0
      %v1264 = vrcp.pop %v1263
      %v1265 = vmul.f32 1.0, %v1264
      %v1266 = vld [vmem:[#allocation3] sm:$0xff]
      %v1267 = vmul.f32 %v1258, %v1266
      %v1268 = vmul.f32 %v1252, %v1259
      %v1269 = vadd.f32 %v1267, %v1268
      %v1270 = vtanh.pop %v1269
      %v1271 = vmul.f32 %v1265, %v1270
      %1272 = vst [vmem:[#allocation3] sm:$0xff] %v1269
      %1273 = vst [vmem:[#allocation2] sm:$0xff] %v1271
      %v1274 = vld [vmem:[%s8] sm:$0xff]
      %v1275 = vld [vmem:[%s8 + $0x8] sm:$0xff]
      %v1276 = vld [vmem:[%s8 + $0x10] sm:$0xff]
      %v1277 = vld [vmem:[%s8 + $0x18] sm:$0xff]
      %v1278 = vld [vmem:[%s8 + $0x20] sm:$0xff]
      %v1279 = vld [vmem:[%s8 + $0x28] sm:$0xff]
      %v1280 = vld [vmem:[%s8 + $0x30] sm:$0xff]
      %v1281 = vld [vmem:[%s8 + $0x38] sm:$0xff]
      %v1282 = vld [vmem:[%s8 + $0x40] sm:$0xff]
      %v1283 = vld [vmem:[%s8 + $0x48] sm:$0xff]
      %v1284 = vld [vmem:[%s8 + $0x50] sm:$0xff]
      %v1285 = vld [vmem:[%s8 + $0x58] sm:$0xff]
      %v1286 = vld [vmem:[%s8 + $0x60] sm:$0xff]
      %v1287 = vld [vmem:[%s8 + $0x68] sm:$0xff]
      %v1288 = vld [vmem:[%s8 + $0x70] sm:$0xff]
      %v1289 = vld [vmem:[%s8 + $0x78] sm:$0xff]
      %v1290 = vld [vmem:[%s8 + $0x80] sm:$0xff]
      %v1291 = vld [vmem:[%s8 + $0x88] sm:$0xff]
      %v1292 = vld [vmem:[%s8 + $0x90] sm:$0xff]
      %v1293 = vld [vmem:[%s8 + $0x98] sm:$0xff]
      %v1294 = vld [vmem:[%s8 + $0xa0] sm:$0xff]
      %v1295 = vld [vmem:[%s8 + $0xa8] sm:$0xff]
      %v1296 = vld [vmem:[%s8 + $0xb0] sm:$0xff]
      %v1297 = vld [vmem:[%s8 + $0xb8] sm:$0xff]
      %v1298 = vld [vmem:[%s8 + $0xc0] sm:$0xff]
      %v1299 = vld [vmem:[%s8 + $0xc8] sm:$0xff]
      %v1300 = vld [vmem:[%s8 + $0xd0] sm:$0xff]
      %v1301 = vld [vmem:[%s8 + $0xd8] sm:$0xff]
      %v1302 = vld [vmem:[%s8 + $0xe0] sm:$0xff]
      %v1303 = vld [vmem:[%s8 + $0xe8] sm:$0xff]
      %v1304 = vld [vmem:[%s8 + $0xf0] sm:$0xff]
      %v1305 = vld [vmem:[%s8 + $0xf8] sm:$0xff]
      %v1306 = vld [vmem:[%s8 + $0x100] sm:$0xff]
      %v1307 = vld [vmem:[%s8 + $0x108] sm:$0xff]
      %v1308 = vld [vmem:[%s8 + $0x110] sm:$0xff]
      %v1309 = vld [vmem:[%s8 + $0x118] sm:$0xff]
      %v1310 = vld [vmem:[%s8 + $0x120] sm:$0xff]
      %v1311 = vld [vmem:[%s8 + $0x128] sm:$0xff]
      %v1312 = vld [vmem:[%s8 + $0x130] sm:$0xff]
      %v1313 = vld [vmem:[%s8 + $0x138] sm:$0xff]
      %v1314 = vld [vmem:[%s8 + $0x140] sm:$0xff]
      %v1315 = vld [vmem:[%s8 + $0x148] sm:$0xff]
      %v1316 = vld [vmem:[%s8 + $0x150] sm:$0xff]
      %v1317 = vld [vmem:[%s8 + $0x158] sm:$0xff]
      %v1318 = vld [vmem:[%s8 + $0x160] sm:$0xff]
      %v1319 = vld [vmem:[%s8 + $0x168] sm:$0xff]
      %v1320 = vld [vmem:[%s8 + $0x170] sm:$0xff]
      %v1321 = vld [vmem:[%s8 + $0x178] sm:$0xff]
      %v1322 = vld [vmem:[%s8 + $0x180] sm:$0xff]
      %v1323 = vld [vmem:[%s8 + $0x188] sm:$0xff]
      %v1324 = vld [vmem:[%s8 + $0x190] sm:$0xff]
      %v1325 = vld [vmem:[%s8 + $0x198] sm:$0xff]
      %v1326 = vld [vmem:[%s8 + $0x1a0] sm:$0xff]
      %v1327 = vld [vmem:[%s8 + $0x1a8] sm:$0xff]
      %v1328 = vld [vmem:[%s8 + $0x1b0] sm:$0xff]
      %v1329 = vld [vmem:[%s8 + $0x1b8] sm:$0xff]
      %v1330 = vld [vmem:[%s8 + $0x1c0] sm:$0xff]
      %v1331 = vld [vmem:[%s8 + $0x1c8] sm:$0xff]
      %v1332 = vld [vmem:[%s8 + $0x1d0] sm:$0xff]
      %v1333 = vld [vmem:[%s8 + $0x1d8] sm:$0xff]
      %v1334 = vld [vmem:[%s8 + $0x1e0] sm:$0xff]
      %v1335 = vld [vmem:[%s8 + $0x1e8] sm:$0xff]
      %v1336 = vld [vmem:[%s8 + $0x1f0] sm:$0xff]
      %v1337 = vld [vmem:[%s8 + $0x1f8] sm:$0xff]
      %v1338 = vld [vmem:[#allocation4] sm:$0xff]
      %v1339 = vld [vmem:[%s9] sm:$0xff]
      %v1340 = vld [vmem:[%s9 + $0x8] sm:$0xff]
      %v1341 = vld [vmem:[%s9 + $0x10] sm:$0xff]
      %v1342 = vld [vmem:[%s9 + $0x18] sm:$0xff]
      %v1343 = vld [vmem:[%s9 + $0x20] sm:$0xff]
      %v1344 = vld [vmem:[%s9 + $0x28] sm:$0xff]
      %v1345 = vld [vmem:[%s9 + $0x30] sm:$0xff]
      %v1346 = vld [vmem:[%s9 + $0x38] sm:$0xff]
      %v1347 = vld [vmem:[%s9 + $0x40] sm:$0xff]
      %v1348 = vld [vmem:[%s9 + $0x48] sm:$0xff]
      %v1349 = vld [vmem:[%s9 + $0x50] sm:$0xff]
      %v1350 = vld [vmem:[%s9 + $0x58] sm:$0xff]
      %v1351 = vld [vmem:[%s9 + $0x60] sm:$0xff]
      %v1352 = vld [vmem:[%s9 + $0x68] sm:$0xff]
      %v1353 = vld [vmem:[%s9 + $0x70] sm:$0xff]
      %v1354 = vld [vmem:[%s9 + $0x78] sm:$0xff]
      %v1355 = vld [vmem:[%s9 + $0x80] sm:$0xff]
      %v1356 = vld [vmem:[%s9 + $0x88] sm:$0xff]
      %v1357 = vld [vmem:[%s9 + $0x90] sm:$0xff]
      %v1358 = vld [vmem:[%s9 + $0x98] sm:$0xff]
      %v1359 = vld [vmem:[%s9 + $0xa0] sm:$0xff]
      %v1360 = vld [vmem:[%s9 + $0xa8] sm:$0xff]
      %v1361 = vld [vmem:[%s9 + $0xb0] sm:$0xff]
      %v1362 = vld [vmem:[%s9 + $0xb8] sm:$0xff]
      %v1363 = vld [vmem:[%s9 + $0xc0] sm:$0xff]
      %v1364 = vld [vmem:[%s9 + $0xc8] sm:$0xff]
      %v1365 = vld [vmem:[%s9 + $0xd0] sm:$0xff]
      %v1366 = vld [vmem:[%s9 + $0xd8] sm:$0xff]
      %v1367 = vld [vmem:[%s9 + $0xe0] sm:$0xff]
      %v1368 = vld [vmem:[%s9 + $0xe8] sm:$0xff]
      %v1369 = vld [vmem:[%s9 + $0xf0] sm:$0xff]
      %v1370 = vld [vmem:[%s9 + $0xf8] sm:$0xff]
      %v1371 = vld [vmem:[%s9 + $0x100] sm:$0xff]
      %v1372 = vld [vmem:[%s9 + $0x108] sm:$0xff]
      %v1373 = vld [vmem:[%s9 + $0x110] sm:$0xff]
      %v1374 = vld [vmem:[%s9 + $0x118] sm:$0xff]
      %v1375 = vld [vmem:[%s9 + $0x120] sm:$0xff]
      %v1376 = vld [vmem:[%s9 + $0x128] sm:$0xff]
      %v1377 = vld [vmem:[%s9 + $0x130] sm:$0xff]
      %v1378 = vld [vmem:[%s9 + $0x138] sm:$0xff]
      %v1379 = vld [vmem:[%s9 + $0x140] sm:$0xff]
      %v1380 = vld [vmem:[%s9 + $0x148] sm:$0xff]
      %v1381 = vld [vmem:[%s9 + $0x150] sm:$0xff]
      %v1382 = vld [vmem:[%s9 + $0x158] sm:$0xff]
      %v1383 = vld [vmem:[%s9 + $0x160] sm:$0xff]
      %v1384 = vld [vmem:[%s9 + $0x168] sm:$0xff]
      %v1385 = vld [vmem:[%s9 + $0x170] sm:$0xff]
      %v1386 = vld [vmem:[%s9 + $0x178] sm:$0xff]
      %v1387 = vld [vmem:[%s9 + $0x180] sm:$0xff]
      %v1388 = vld [vmem:[%s9 + $0x188] sm:$0xff]
      %v1389 = vld [vmem:[%s9 + $0x190] sm:$0xff]
      %v1390 = vld [vmem:[%s9 + $0x198] sm:$0xff]
      %v1391 = vld [vmem:[%s9 + $0x1a0] sm:$0xff]
      %v1392 = vld [vmem:[%s9 + $0x1a8] sm:$0xff]
      %v1393 = vld [vmem:[%s9 + $0x1b0] sm:$0xff]
      %v1394 = vld [vmem:[%s9 + $0x1b8] sm:$0xff]
      %v1395 = vld [vmem:[%s9 + $0x1c0] sm:$0xff]
      %v1396 = vld [vmem:[%s9 + $0x1c8] sm:$0xff]
      %v1397 = vld [vmem:[%s9 + $0x1d0] sm:$0xff]
      %v1398 = vld [vmem:[%s9 + $0x1d8] sm:$0xff]
      %v1399 = vld [vmem:[%s9 + $0x1e0] sm:$0xff]
      %v1400 = vld [vmem:[%s9 + $0x1e8] sm:$0xff]
      %v1401 = vld [vmem:[%s9 + $0x1f0] sm:$0xff]
      %v1402 = vld [vmem:[%s9 + $0x1f8] sm:$0xff]
      %1403 = vmatprep.subr.mxu0 %v1340
      %1404 = vmatpush1.msra.mxu0 %v1339
      %1405 = vmatprep.subr.mxu0 %v1344
      %1406 = vmatpush1.msra.mxu0 %v1343
      %1407 = vmatprep.subr.mxu0 %v1348
      %1408 = vmatpush1.msra.mxu0 %v1347
      %1409 = vmatprep.subr.mxu0 %v1352
      %1410 = vmatpush1.msra.mxu0 %v1351
      %1411 = vmatprep.subr.mxu0 %v1356
      %1412 = vmatpush1.msra.mxu0 %v1355
      %1413 = vmatprep.subr.mxu0 %v1360
      %1414 = vmatpush1.msra.mxu0 %v1359
      %1415 = vmatprep.subr.mxu0 %v1364
      %1416 = vmatpush1.msra.mxu0 %v1363
      %1417 = vmatprep.subr.mxu0 %v1368
      %1418 = vmatpush1.msra.mxu0 %v1367
      %1419 = vmatprep.subr.mxu0 %v1372
      %1420 = vmatpush1.msra.mxu0 %v1371
      %1421 = vmatprep.subr.mxu0 %v1376
      %1422 = vmatpush1.msra.mxu0 %v1375
      %1423 = vmatprep.subr.mxu0 %v1380
      %1424 = vmatpush1.msra.mxu0 %v1379
      %1425 = vmatprep.subr.mxu0 %v1384
      %1426 = vmatpush1.msra.mxu0 %v1383
      %1427 = vmatprep.subr.mxu0 %v1388
      %1428 = vmatpush1.msra.mxu0 %v1387
      %1429 = vmatprep.subr.mxu0 %v1392
      %1430 = vmatpush1.msra.mxu0 %v1391
      %1431 = vmatprep.subr.mxu0 %v1396
      %1432 = vmatpush1.msra.mxu0 %v1395
      %1433 = vmatprep.subr.mxu0 %v1400
      %1434 = vmatpush1.msra.mxu0 %v1399
      %1435 = vmatprep.subr.mxu0 0.0
      %1436 = vmatpush1.msra.mxu0 0.0
      %1437 = vmatprep.subr.mxu0 0.0
      %1438 = vmatpush1.msra.mxu0 0.0
      %1439 = vmatprep.subr.mxu0 0.0
      %1440 = vmatpush1.msra.mxu0 0.0
      %1441 = vmatprep.subr.mxu0 0.0
      %1442 = vmatpush1.msra.mxu0 0.0
      %1443 = vmatprep.subr.mxu0 0.0
      %1444 = vmatpush1.msra.mxu0 0.0
      %1445 = vmatprep.subr.mxu0 0.0
      %1446 = vmatpush1.msra.mxu0 0.0
      %1447 = vmatprep.subr.mxu0 0.0
      %1448 = vmatpush1.msra.mxu0 0.0
      %1449 = vmatprep.subr.mxu0 0.0
      %1450 = vmatpush1.msra.mxu0 0.0
      %1451 = vmatprep.subr.mxu0 0.0
      %1452 = vmatpush1.msra.mxu0 0.0
      %1453 = vmatprep.subr.mxu0 0.0
      %1454 = vmatpush1.msra.mxu0 0.0
      %1455 = vmatprep.subr.mxu0 0.0
      %1456 = vmatpush1.msra.mxu0 0.0
      %1457 = vmatprep.subr.mxu0 0.0
      %1458 = vmatpush1.msra.mxu0 0.0
      %1459 = vmatprep.subr.mxu0 0.0
      %1460 = vmatpush1.msra.mxu0 0.0
      %1461 = vmatprep.subr.mxu0 0.0
      %1462 = vmatpush1.msra.mxu0 0.0
      %1463 = vmatprep.subr.mxu0 0.0
      %1464 = vmatpush1.msra.mxu0 0.0
      %1465 = vmatprep.subr.mxu0 0.0
      %1466 = vmatpush1.msra.mxu0 0.0
      %1467 = vmatprep.mubr.f32.mxu0 0.0
      %1468 = vmatmul.mubr.f32.gmra.mrb[0].mxu0 %v1338
      %v1469 = vpop.f32.mrb[0].mxu0
      %v1470 = vadd.f32 0.0, %v1469
      %v1471 = vpop.f32.mrb[0].mxu0
      %v1472 = vadd.f32 0.0, %v1471
      %1473 = vdwg.mxu0
      %1474 = vmatprep.subr.mxu0 %v1342
      %1475 = vmatpush1.msra.mxu0 %v1341
      %1476 = vmatprep.subr.mxu0 %v1346
      %1477 = vmatpush1.msra.mxu0 %v1345
      %1478 = vmatprep.subr.mxu0 %v1350
      %1479 = vmatpush1.msra.mxu0 %v1349
      %1480 = vmatprep.subr.mxu0 %v1354
      %1481 = vmatpush1.msra.mxu0 %v1353
      %1482 = vmatprep.subr.mxu0 %v1358
      %1483 = vmatpush1.msra.mxu0 %v1357
      %1484 = vmatprep.subr.mxu0 %v1362
      %1485 = vmatpush1.msra.mxu0 %v1361
      %1486 = vmatprep.subr.mxu0 %v1366
      %1487 = vmatpush1.msra.mxu0 %v1365
      %1488 = vmatprep.subr.mxu0 %v1370
      %1489 = vmatpush1.msra.mxu0 %v1369
      %1490 = vmatprep.subr.mxu0 %v1374
      %1491 = vmatpush1.msra.mxu0 %v1373
      %1492 = vmatprep.subr.mxu0 %v1378
      %1493 = vmatpush1.msra.mxu0 %v1377
      %1494 = vmatprep.subr.mxu0 %v1382
      %1495 = vmatpush1.msra.mxu0 %v1381
      %1496 = vmatprep.subr.mxu0 %v1386
      %1497 = vmatpush1.msra.mxu0 %v1385
      %1498 = vmatprep.subr.mxu0 %v1390
      %1499 = vmatpush1.msra.mxu0 %v1389
      %1500 = vmatprep.subr.mxu0 %v1394
      %1501 = vmatpush1.msra.mxu0 %v1393
      %1502 = vmatprep.subr.mxu0 %v1398
      %1503 = vmatpush1.msra.mxu0 %v1397
      %1504 = vmatprep.subr.mxu0 %v1402
      %1505 = vmatpush1.msra.mxu0 %v1401
      %1506 = vmatprep.subr.mxu0 0.0
      %1507 = vmatpush1.msra.mxu0 0.0
      %1508 = vmatprep.subr.mxu0 0.0
      %1509 = vmatpush1.msra.mxu0 0.0
      %1510 = vmatprep.subr.mxu0 0.0
      %1511 = vmatpush1.msra.mxu0 0.0
      %1512 = vmatprep.subr.mxu0 0.0
      %1513 = vmatpush1.msra.mxu0 0.0
      %1514 = vmatprep.subr.mxu0 0.0
      %1515 = vmatpush1.msra.mxu0 0.0
      %1516 = vmatprep.subr.mxu0 0.0
      %1517 = vmatpush1.msra.mxu0 0.0
      %1518 = vmatprep.subr.mxu0 0.0
      %1519 = vmatpush1.msra.mxu0 0.0
      %1520 = vmatprep.subr.mxu0 0.0
      %1521 = vmatpush1.msra.mxu0 0.0
      %1522 = vmatprep.subr.mxu0 0.0
      %1523 = vmatpush1.msra.mxu0 0.0
      %1524 = vmatprep.subr.mxu0 0.0
      %1525 = vmatpush1.msra.mxu0 0.0
      %1526 = vmatprep.subr.mxu0 0.0
      %1527 = vmatpush1.msra.mxu0 0.0
      %1528 = vmatprep.subr.mxu0 0.0
      %1529 = vmatpush1.msra.mxu0 0.0
      %1530 = vmatprep.subr.mxu0 0.0
      %1531 = vmatpush1.msra.mxu0 0.0
      %1532 = vmatprep.subr.mxu0 0.0
      %1533 = vmatpush1.msra.mxu0 0.0
      %1534 = vmatprep.subr.mxu0 0.0
      %1535 = vmatpush1.msra.mxu0 0.0
      %1536 = vmatprep.subr.mxu0 0.0
      %1537 = vmatpush1.msra.mxu0 0.0
      %1538 = vmatprep.mubr.f32.mxu0 0.0
      %1539 = vmatmul.mubr.f32.gmra.mrb[0].mxu0 %v1338
      %v1540 = vpop.f32.mrb[0].mxu0
      %v1541 = vadd.f32 0.0, %v1540
      %v1542 = vpop.f32.mrb[0].mxu0
      %v1543 = vadd.f32 0.0, %v1542
      %1544 = vdwg.mxu0
      %1545 = vmatprep.subr.mxu0 %v1275
      %1546 = vmatpush1.msra.mxu0 %v1274
      %1547 = vmatprep.subr.mxu0 %v1279
      %1548 = vmatpush1.msra.mxu0 %v1278
      %1549 = vmatprep.subr.mxu0 %v1283
      %1550 = vmatpush1.msra.mxu0 %v1282
      %1551 = vmatprep.subr.mxu0 %v1287
      %1552 = vmatpush1.msra.mxu0 %v1286
      %1553 = vmatprep.subr.mxu0 %v1291
      %1554 = vmatpush1.msra.mxu0 %v1290
      %1555 = vmatprep.subr.mxu0 %v1295
      %1556 = vmatpush1.msra.mxu0 %v1294
      %1557 = vmatprep.subr.mxu0 %v1299
      %1558 = vmatpush1.msra.mxu0 %v1298
      %1559 = vmatprep.subr.mxu0 %v1303
      %1560 = vmatpush1.msra.mxu0 %v1302
      %1561 = vmatprep.subr.mxu0 %v1307
      %1562 = vmatpush1.msra.mxu0 %v1306
      %1563 = vmatprep.subr.mxu0 %v1311
      %1564 = vmatpush1.msra.mxu0 %v1310
      %1565 = vmatprep.subr.mxu0 %v1315
      %1566 = vmatpush1.msra.mxu0 %v1314
      %1567 = vmatprep.subr.mxu0 %v1319
      %1568 = vmatpush1.msra.mxu0 %v1318
      %1569 = vmatprep.subr.mxu0 %v1323
      %1570 = vmatpush1.msra.mxu0 %v1322
      %1571 = vmatprep.subr.mxu0 %v1327
      %1572 = vmatpush1.msra.mxu0 %v1326
      %1573 = vmatprep.subr.mxu0 %v1331
      %1574 = vmatpush1.msra.mxu0 %v1330
      %1575 = vmatprep.subr.mxu0 %v1335
      %1576 = vmatpush1.msra.mxu0 %v1334
      %1577 = vmatprep.subr.mxu0 0.0
      %1578 = vmatpush1.msra.mxu0 0.0
      %1579 = vmatprep.subr.mxu0 0.0
      %1580 = vmatpush1.msra.mxu0 0.0
      %1581 = vmatprep.subr.mxu0 0.0
      %1582 = vmatpush1.msra.mxu0 0.0
      %1583 = vmatprep.subr.mxu0 0.0
      %1584 = vmatpush1.msra.mxu0 0.0
      %1585 = vmatprep.subr.mxu0 0.0
      %1586 = vmatpush1.msra.mxu0 0.0
      %1587 = vmatprep.subr.mxu0 0.0
      %1588 = vmatpush1.msra.mxu0 0.0
      %1589 = vmatprep.subr.mxu0 0.0
      %1590 = vmatpush1.msra.mxu0 0.0
      %1591 = vmatprep.subr.mxu0 0.0
      %1592 = vmatpush1.msra.mxu0 0.0
      %1593 = vmatprep.subr.mxu0 0.0
      %1594 = vmatpush1.msra.mxu0 0.0
      %1595 = vmatprep.subr.mxu0 0.0
      %1596 = vmatpush1.msra.mxu0 0.0
      %1597 = vmatprep.subr.mxu0 0.0
      %1598 = vmatpush1.msra.mxu0 0.0
      %1599 = vmatprep.subr.mxu0 0.0
      %1600 = vmatpush1.msra.mxu0 0.0
      %1601 = vmatprep.subr.mxu0 0.0
      %1602 = vmatpush1.msra.mxu0 0.0
      %1603 = vmatprep.subr.mxu0 0.0
      %1604 = vmatpush1.msra.mxu0 0.0
      %1605 = vmatprep.subr.mxu0 0.0
      %1606 = vmatpush1.msra.mxu0 0.0
      %1607 = vmatprep.subr.mxu0 0.0
      %1608 = vmatpush1.msra.mxu0 0.0
      %1609 = vmatprep.mubr.f32.mxu0 0.0
      %1610 = vmatmul.mubr.f32.gmra.mrb[0].mxu0 %v1271
      %v1611 = vpop.f32.mrb[0].mxu0
      %v1612 = vadd.f32 %v1470, %v1611
      %v1613 = vpop.f32.mrb[0].mxu0
      %v1614 = vadd.f32 %v1472, %v1613
      %1615 = vdwg.mxu0
      %1616 = vmatprep.subr.mxu0 %v1277
      %1617 = vmatpush1.msra.mxu0 %v1276
      %1618 = vmatprep.subr.mxu0 %v1281
      %1619 = vmatpush1.msra.mxu0 %v1280
      %1620 = vmatprep.subr.mxu0 %v1285
      %1621 = vmatpush1.msra.mxu0 %v1284
      %1622 = vmatprep.subr.mxu0 %v1289
      %1623 = vmatpush1.msra.mxu0 %v1288
      %1624 = vmatprep.subr.mxu0 %v1293
      %1625 = vmatpush1.msra.mxu0 %v1292
      %1626 = vmatprep.subr.mxu0 %v1297
      %1627 = vmatpush1.msra.mxu0 %v1296
      %1628 = vmatprep.subr.mxu0 %v1301
      %1629 = vmatpush1.msra.mxu0 %v1300
      %1630 = vmatprep.subr.mxu0 %v1305
      %1631 = vmatpush1.msra.mxu0 %v1304
      %1632 = vmatprep.subr.mxu0 %v1309
      %1633 = vmatpush1.msra.mxu0 %v1308
      %1634 = vmatprep.subr.mxu0 %v1313
      %1635 = vmatpush1.msra.mxu0 %v1312
      %1636 = vmatprep.subr.mxu0 %v1317
      %1637 = vmatpush1.msra.mxu0 %v1316
      %1638 = vmatprep.subr.mxu0 %v1321
      %1639 = vmatpush1.msra.mxu0 %v1320
      %1640 = vmatprep.subr.mxu0 %v1325
      %1641 = vmatpush1.msra.mxu0 %v1324
      %1642 = vmatprep.subr.mxu0 %v1329
      %1643 = vmatpush1.msra.mxu0 %v1328
      %1644 = vmatprep.subr.mxu0 %v1333
      %1645 = vmatpush1.msra.mxu0 %v1332
      %1646 = vmatprep.subr.mxu0 %v1337
      %1647 = vmatpush1.msra.mxu0 %v1336
      %1648 = vmatprep.subr.mxu0 0.0
      %1649 = vmatpush1.msra.mxu0 0.0
      %1650 = vmatprep.subr.mxu0 0.0
      %1651 = vmatpush1.msra.mxu0 0.0
      %1652 = vmatprep.subr.mxu0 0.0
      %1653 = vmatpush1.msra.mxu0 0.0
      %1654 = vmatprep.subr.mxu0 0.0
      %1655 = vmatpush1.msra.mxu0 0.0
      %1656 = vmatprep.subr.mxu0 0.0
      %1657 = vmatpush1.msra.mxu0 0.0
      %1658 = vmatprep.subr.mxu0 0.0
      %1659 = vmatpush1.msra.mxu0 0.0
      %1660 = vmatprep.subr.mxu0 0.0
      %1661 = vmatpush1.msra.mxu0 0.0
      %1662 = vmatprep.subr.mxu0 0.0
      %1663 = vmatpush1.msra.mxu0 0.0
      %1664 = vmatprep.subr.mxu0 0.0
      %1665 = vmatpush1.msra.mxu0 0.0
      %1666 = vmatprep.subr.mxu0 0.0
      %1667 = vmatpush1.msra.mxu0 0.0
      %1668 = vmatprep.subr.mxu0 0.0
      %1669 = vmatpush1.msra.mxu0 0.0
      %1670 = vmatprep.subr.mxu0 0.0
      %1671 = vmatpush1.msra.mxu0 0.0
      %1672 = vmatprep.subr.mxu0 0.0
      %1673 = vmatpush1.msra.mxu0 0.0
      %1674 = vmatprep.subr.mxu0 0.0
      %1675 = vmatpush1.msra.mxu0 0.0
      %1676 = vmatprep.subr.mxu0 0.0
      %1677 = vmatpush1.msra.mxu0 0.0
      %1678 = vmatprep.subr.mxu0 0.0
      %1679 = vmatpush1.msra.mxu0 0.0
      %1680 = vmatprep.mubr.f32.mxu0 0.0
      %1681 = vmatmul.mubr.f32.gmra.mrb[0].mxu0 %v1271
      %v1682 = vpop.f32.mrb[0].mxu0
      %v1683 = vadd.f32 %v1541, %v1682
      %v1684 = vpop.f32.mrb[0].mxu0
      %v1685 = vadd.f32 %v1543, %v1684
      %1686 = vdwg.mxu0
      %v1687 = vld [vmem:[%s10] sm:$0xf]
      %v1689 = vlaneseq
      %v1690 = vshrl.u32 %v1689, 7
      %v1691 = vsub.s32 0, %v1690
      %v1692 = vrot.slane %v1687, %v1691
      %v1693 = vlaneseq
      %v1694 = vshrl.u32 %v1693, 7
      %v1695 = vsub.s32 1, %v1694
      %v1696 = vrot.slane %v1687, %v1695
      %v1697 = vlaneseq
      %v1698 = vshrl.u32 %v1697, 7
      %v1699 = vsub.s32 2, %v1698
      %v1700 = vrot.slane %v1687, %v1699
      %v1701 = vlaneseq
      %v1702 = vshrl.u32 %v1701, 7
      %v1703 = vsub.s32 3, %v1702
      %v1704 = vrot.slane %v1687, %v1703
      %v1709 = vadd.f32 %v1612, %v1692
      %v1710 = vadd.f32 %v1614, %v1696
      %v1711 = vadd.f32 %v1683, %v1700
      %v1712 = vadd.f32 %v1685, %v1704
      %v1713 = vxor.u32 %v1709, 2147483648
      %v1714 = vmul.f32 %v1713, 1.442695
      %v1715 = vpow.pop %v1714
      %v1716 = vadd.f32 %v1715, 1.0
      %v1717 = vrcp.pop %v1716
      %v1718 = vmul.f32 1.0, %v1717
      %v1719 = vxor.u32 %v1710, 2147483648
      %v1720 = vmul.f32 %v1719, 1.442695
      %v1721 = vpow.pop %v1720
      %v1722 = vadd.f32 %v1721, 1.0
      %v1723 = vrcp.pop %v1722
      %v1724 = vmul.f32 1.0, %v1723
      %v1725 = vtanh.pop %v1711
      %v1726 = vxor.u32 %v1712, 2147483648
      %v1727 = vmul.f32 %v1726, 1.442695
      %v1728 = vpow.pop %v1727
      %v1729 = vadd.f32 %v1728, 1.0
      %v1730 = vrcp.pop %v1729
      %v1731 = vmul.f32 1.0, %v1730
      %v1732 = vld [vmem:[#allocation5] sm:$0xff]
      %v1733 = vmul.f32 %v1724, %v1732
      %v1734 = vmul.f32 %v1718, %v1725
      %v1735 = vadd.f32 %v1733, %v1734
      %v1736 = vtanh.pop %v1735
      %v1737 = vmul.f32 %v1731, %v1736
      %1738 = vst [vmem:[#allocation5] sm:$0xff] %v1735
      %1739 = vst [vmem:[#allocation4] sm:$0xff] %v1737
      %v1740 = vld [vmem:[%s11] sm:$0xff]
      %v1741 = vld [vmem:[%s11 + $0x8] sm:$0xff]
      %v1742 = vld [vmem:[%s11 + $0x10] sm:$0xff]
      %v1743 = vld [vmem:[%s11 + $0x18] sm:$0xff]
      %v1744 = vld [vmem:[%s11 + $0x20] sm:$0xff]
      %v1745 = vld [vmem:[%s11 + $0x28] sm:$0xff]
      %v1746 = vld [vmem:[%s11 + $0x30] sm:$0xff]
      %v1747 = vld [vmem:[%s11 + $0x38] sm:$0xff]
      %v1748 = vld [vmem:[%s11 + $0x40] sm:$0xff]
      %v1749 = vld [vmem:[%s11 + $0x48] sm:$0xff]
      %v1750 = vld [vmem:[%s11 + $0x50] sm:$0xff]
      %v1751 = vld [vmem:[%s11 + $0x58] sm:$0xff]
      %v1752 = vld [vmem:[%s11 + $0x60] sm:$0xff]
      %v1753 = vld [vmem:[%s11 + $0x68] sm:$0xff]
      %v1754 = vld [vmem:[%s11 + $0x70] sm:$0xff]
      %v1755 = vld [vmem:[%s11 + $0x78] sm:$0xff]
      %v1756 = vld [vmem:[%s12] sm:$0x1]
      %v1758 = vlaneseq
      %v1759 = vshrl.u32 %v1758, 7
      %v1760 = vsub.s32 0, %v1759
      %v1761 = vrot.slane %v1756, %v1760
      %1763 = vmatprep.subr.mxu0 0.0
      %1764 = vmatpush1.msra.mxu0 %v1740
      %1765 = vmatprep.subr.mxu0 0.0
      %1766 = vmatpush1.msra.mxu0 %v1741
      %1767 = vmatprep.subr.mxu0 0.0
      %1768 = vmatpush1.msra.mxu0 %v1742
      %1769 = vmatprep.subr.mxu0 0.0
      %1770 = vmatpush1.msra.mxu0 %v1743
      %1771 = vmatprep.subr.mxu0 0.0
      %1772 = vmatpush1.msra.mxu0 %v1744
      %1773 = vmatprep.subr.mxu0 0.0
      %1774 = vmatpush1.msra.mxu0 %v1745
      %1775 = vmatprep.subr.mxu0 0.0
      %1776 = vmatpush1.msra.mxu0 %v1746
      %1777 = vmatprep.subr.mxu0 0.0
      %1778 = vmatpush1.msra.mxu0 %v1747
      %1779 = vmatprep.subr.mxu0 0.0
      %1780 = vmatpush1.msra.mxu0 %v1748
      %1781 = vmatprep.subr.mxu0 0.0
      %1782 = vmatpush1.msra.mxu0 %v1749
      %1783 = vmatprep.subr.mxu0 0.0
      %1784 = vmatpush1.msra.mxu0 %v1750
      %1785 = vmatprep.subr.mxu0 0.0
      %1786 = vmatpush1.msra.mxu0 %v1751
      %1787 = vmatprep.subr.mxu0 0.0
      %1788 = vmatpush1.msra.mxu0 %v1752
      %1789 = vmatprep.subr.mxu0 0.0
      %1790 = vmatpush1.msra.mxu0 %v1753
      %1791 = vmatprep.subr.mxu0 0.0
      %1792 = vmatpush1.msra.mxu0 %v1754
      %1793 = vmatprep.subr.mxu0 0.0
      %1794 = vmatpush1.msra.mxu0 %v1755
      %1795 = vmatprep.subr.mxu0 0.0
      %1796 = vmatpush1.msra.mxu0 0.0
      %1797 = vmatprep.subr.mxu0 0.0
      %1798 = vmatpush1.msra.mxu0 0.0
      %1799 = vmatprep.subr.mxu0 0.0
      %1800 = vmatpush1.msra.mxu0 0.0
      %1801 = vmatprep.subr.mxu0 0.0
      %1802 = vmatpush1.msra.mxu0 0.0
      %1803 = vmatprep.subr.mxu0 0.0
      %1804 = vmatpush1.msra.mxu0 0.0
      %1805 = vmatprep.subr.mxu0 0.0
      %1806 = vmatpush1.msra.mxu0 0.0
      %1807 = vmatprep.subr.mxu0 0.0
      %1808 = vmatpush1.msra.mxu0 0.0
      %1809 = vmatprep.subr.mxu0 0.0
      %1810 = vmatpush1.msra.mxu0 0.0
      %1811 = vmatprep.subr.mxu0 0.0
      %1812 = vmatpush1.msra.mxu0 0.0
      %1813 = vmatprep.subr.mxu0 0.0
      %1814 = vmatpush1.msra.mxu0 0.0
      %1815 = vmatprep.subr.mxu0 0.0
      %1816 = vmatpush1.msra.mxu0 0.0
      %1817 = vmatprep.subr.mxu0 0.0
      %1818 = vmatpush1.msra.mxu0 0.0
      %1819 = vmatprep.subr.mxu0 0.0
      %1820 = vmatpush1.msra.mxu0 0.0
      %1821 = vmatprep.subr.mxu0 0.0
      %1822 = vmatpush1.msra.mxu0 0.0
      %1823 = vmatprep.subr.mxu0 0.0
      %1824 = vmatpush1.msra.mxu0 0.0
      %1825 = vmatprep.subr.mxu0 0.0
      %1826 = vmatpush1.msra.mxu0 0.0
      %1827 = vmatprep.mubr.f32.mxu0 0.0
      %1828 = vmatmul.mubr.f32.gmra.mrb[0].mxu0 %v1737
      %v1829 = vpop.f32.mrb[0].mxu0
      %v1830 = vadd.f32 %v1761, %v1829
      %v1831 = vpop.f32.mrb[0].mxu0
      %1832 = vdwg.mxu0
      %v1833 = vld [vmem:[%s2] sm:$0xff]
      %v1834 = vld [vmem:[%s2 + $0x8] sm:$0xff]
      %v1835 = vld [vmem:[%s2 + $0x10] sm:$0xff]
      %v1836 = vld [vmem:[%s2 + $0x18] sm:$0xff]
      %v1837 = vld [vmem:[%s2 + $0x20] sm:$0xff]
      %v1838 = vld [vmem:[%s2 + $0x28] sm:$0xff]
      %v1839 = vld [vmem:[%s2 + $0x30] sm:$0xff]
      %v1840 = vld [vmem:[%s2 + $0x38] sm:$0xff]
      %v1842 = vcombine.high %v1830, %v1830
      %v1844 = vunpack.c.l.s4 1966171168
      %v1845 = vunpack.c.0.s8 %v1844
      %v1846 = vlaneseq
      %v1847 = vshrl.u32 %v1846, 7
      %v1848 = vsub.s32 %v1845, %v1847
      %v1849 = vrot.slane %v1830, %v1848
      %v1851 = vunpack.c.l.s4 1966171168
      %v1852 = vunpack.c.0.s8 %v1851
      %v1853 = vlaneseq
      %v1854 = vshrl.u32 %v1853, 7
      %v1855 = vsub.s32 %v1852, %v1854
      %v1856 = vrot.slane %v1842, %v1855
      %v1857 = vcombine.high %v1849, %v1849
      %v1858 = vcombine.high %v1856, %v1856
      %v1860 = vunpack.c.l.s4 1966171168
      %v1861 = vunpack.c.0.s8 %v1860
      %v1862 = vlaneseq
      %v1863 = vshrl.u32 %v1862, 7
      %v1864 = vsub.s32 %v1861, %v1863
      %v1865 = vrot.slane %v1849, %v1864
      %v1867 = vunpack.c.l.s4 1966171168
      %v1868 = vunpack.c.0.s8 %v1867
      %v1869 = vlaneseq
      %v1870 = vshrl.u32 %v1869, 7
      %v1871 = vsub.s32 %v1868, %v1870
      %v1872 = vrot.slane %v1856, %v1871
      %v1874 = vunpack.c.l.s4 1966171168
      %v1875 = vunpack.c.0.s8 %v1874
      %v1876 = vlaneseq
      %v1877 = vshrl.u32 %v1876, 7
      %v1878 = vsub.s32 %v1875, %v1877
      %v1879 = vrot.slane %v1857, %v1878
      %v1881 = vunpack.c.l.s4 1966171168
      %v1882 = vunpack.c.0.s8 %v1881
      %v1883 = vlaneseq
      %v1884 = vshrl.u32 %v1883, 7
      %v1885 = vsub.s32 %v1882, %v1884
      %v1886 = vrot.slane %v1858, %v1885
      %v1887 = vcombine.high %v1865, %v1865
      %v1888 = vcombine.high %v1872, %v1872
      %v1889 = vcombine.high %v1879, %v1879
      %v1890 = vcombine.high %v1886, %v1886
      %1899 = vmatprep.subr.mxu0 0.0
      %1900 = vmatpush1.xpose.msra.mxu0 %v1833
      %1901 = vmatprep.subr.mxu0 0.0
      %1902 = vmatpush1.xpose.msra.mxu0 0.0
      %1903 = vmatprep.subr.mxu0 0.0
      %1904 = vmatpush1.xpose.msra.mxu0 0.0
      %1905 = vmatprep.subr.mxu0 0.0
      %1906 = vmatpush1.xpose.msra.mxu0 0.0
      %1907 = vmatprep.subr.mxu0 0.0
      %1908 = vmatpush1.xpose.msra.mxu0 0.0
      %1909 = vmatprep.subr.mxu0 0.0
      %1910 = vmatpush1.xpose.msra.mxu0 0.0
      %1911 = vmatprep.subr.mxu0 0.0
      %1912 = vmatpush1.xpose.msra.mxu0 0.0
      %1913 = vmatprep.subr.mxu0 0.0
      %1914 = vmatpush1.xpose.msra.mxu0 0.0
      %1915 = vmatprep.subr.mxu0 0.0
      %1916 = vmatpush1.xpose.msra.mxu0 0.0
      %1917 = vmatprep.subr.mxu0 0.0
      %1918 = vmatpush1.xpose.msra.mxu0 0.0
      %1919 = vmatprep.subr.mxu0 0.0
      %1920 = vmatpush1.xpose.msra.mxu0 0.0
      %1921 = vmatprep.subr.mxu0 0.0
      %1922 = vmatpush1.xpose.msra.mxu0 0.0
      %1923 = vmatprep.subr.mxu0 0.0
      %1924 = vmatpush1.xpose.msra.mxu0 0.0
      %1925 = vmatprep.subr.mxu0 0.0
      %1926 = vmatpush1.xpose.msra.mxu0 0.0
      %1927 = vmatprep.subr.mxu0 0.0
      %1928 = vmatpush1.xpose.msra.mxu0 0.0
      %1929 = vmatprep.subr.mxu0 0.0
      %1930 = vmatpush1.xpose.msra.mxu0 0.0
      %1931 = vmatprep.subr.mxu0 0.0
      %1932 = vmatpush1.xpose.msra.mxu0 0.0
      %1933 = vmatprep.subr.mxu0 0.0
      %1934 = vmatpush1.xpose.msra.mxu0 0.0
      %1935 = vmatprep.subr.mxu0 0.0
      %1936 = vmatpush1.xpose.msra.mxu0 0.0
      %1937 = vmatprep.subr.mxu0 0.0
      %1938 = vmatpush1.xpose.msra.mxu0 0.0
      %1939 = vmatprep.subr.mxu0 0.0
      %1940 = vmatpush1.xpose.msra.mxu0 0.0
      %1941 = vmatprep.subr.mxu0 0.0
      %1942 = vmatpush1.xpose.msra.mxu0 0.0
      %1943 = vmatprep.subr.mxu0 0.0
      %1944 = vmatpush1.xpose.msra.mxu0 0.0
      %1945 = vmatprep.subr.mxu0 0.0
      %1946 = vmatpush1.xpose.msra.mxu0 0.0
      %1947 = vmatprep.subr.mxu0 0.0
      %1948 = vmatpush1.xpose.msra.mxu0 0.0
      %1949 = vmatprep.subr.mxu0 0.0
      %1950 = vmatpush1.xpose.msra.mxu0 0.0
      %1951 = vmatprep.subr.mxu0 0.0
      %1952 = vmatpush1.xpose.msra.mxu0 0.0
      %1953 = vmatprep.subr.mxu0 0.0
      %1954 = vmatpush1.xpose.msra.mxu0 0.0
      %1955 = vmatprep.subr.mxu0 0.0
      %1956 = vmatpush1.xpose.msra.mxu0 0.0
      %1957 = vmatprep.subr.mxu0 0.0
      %1958 = vmatpush1.xpose.msra.mxu0 0.0
      %1959 = vmatprep.subr.mxu0 0.0
      %1960 = vmatpush1.xpose.msra.mxu0 0.0
      %1961 = vmatprep.subr.mxu0 0.0
      %1962 = vmatpush1.xpose.msra.mxu0 0.0
      %1963 = vmatprep.mubr.f32.mxu0 0.0
      %1964 = vmatmul.mubr.f32.gmra.mrb[0].mxu0 %v1865
      %v1965 = vpop.f32.mrb[0].mxu0
      %v1966 = vadd.f32 0.0, %v1965
      %v1967 = vpop.f32.mrb[0].mxu0
      %1968 = vdwg.mxu0
      %1969 = vmatprep.subr.mxu0 0.0
      %1970 = vmatpush1.xpose.msra.mxu0 %v1834
      %1971 = vmatprep.subr.mxu0 0.0
      %1972 = vmatpush1.xpose.msra.mxu0 0.0
      %1973 = vmatprep.subr.mxu0 0.0
      %1974 = vmatpush1.xpose.msra.mxu0 0.0
      %1975 = vmatprep.subr.mxu0 0.0
      %1976 = vmatpush1.xpose.msra.mxu0 0.0
      %1977 = vmatprep.subr.mxu0 0.0
      %1978 = vmatpush1.xpose.msra.mxu0 0.0
      %1979 = vmatprep.subr.mxu0 0.0
      %1980 = vmatpush1.xpose.msra.mxu0 0.0
      %1981 = vmatprep.subr.mxu0 0.0
      %1982 = vmatpush1.xpose.msra.mxu0 0.0
      %1983 = vmatprep.subr.mxu0 0.0
      %1984 = vmatpush1.xpose.msra.mxu0 0.0
      %1985 = vmatprep.subr.mxu0 0.0
      %1986 = vmatpush1.xpose.msra.mxu0 0.0
      %1987 = vmatprep.subr.mxu0 0.0
      %1988 = vmatpush1.xpose.msra.mxu0 0.0
      %1989 = vmatprep.subr.mxu0 0.0
      %1990 = vmatpush1.xpose.msra.mxu0 0.0
      %1991 = vmatprep.subr.mxu0 0.0
      %1992 = vmatpush1.xpose.msra.mxu0 0.0
      %1993 = vmatprep.subr.mxu0 0.0
      %1994 = vmatpush1.xpose.msra.mxu0 0.0
      %1995 = vmatprep.subr.mxu0 0.0
      %1996 = vmatpush1.xpose.msra.mxu0 0.0
      %1997 = vmatprep.subr.mxu0 0.0
      %1998 = vmatpush1.xpose.msra.mxu0 0.0
      %1999 = vmatprep.subr.mxu0 0.0
      %2000 = vmatpush1.xpose.msra.mxu0 0.0
      %2001 = vmatprep.subr.mxu0 0.0
      %2002 = vmatpush1.xpose.msra.mxu0 0.0
      %2003 = vmatprep.subr.mxu0 0.0
      %2004 = vmatpush1.xpose.msra.mxu0 0.0
      %2005 = vmatprep.subr.mxu0 0.0
      %2006 = vmatpush1.xpose.msra.mxu0 0.0
      %2007 = vmatprep.subr.mxu0 0.0
      %2008 = vmatpush1.xpose.msra.mxu0 0.0
      %2009 = vmatprep.subr.mxu0 0.0
      %2010 = vmatpush1.xpose.msra.mxu0 0.0
      %2011 = vmatprep.subr.mxu0 0.0
      %2012 = vmatpush1.xpose.msra.mxu0 0.0
      %2013 = vmatprep.subr.mxu0 0.0
      %2014 = vmatpush1.xpose.msra.mxu0 0.0
      %2015 = vmatprep.subr.mxu0 0.0
      %2016 = vmatpush1.xpose.msra.mxu0 0.0
      %2017 = vmatprep.subr.mxu0 0.0
      %2018 = vmatpush1.xpose.msra.mxu0 0.0
      %2019 = vmatprep.subr.mxu0 0.0
      %2020 = vmatpush1.xpose.msra.mxu0 0.0
      %2021 = vmatprep.subr.mxu0 0.0
      %2022 = vmatpush1.xpose.msra.mxu0 0.0
      %2023 = vmatprep.subr.mxu0 0.0
      %2024 = vmatpush1.xpose.msra.mxu0 0.0
      %2025 = vmatprep.subr.mxu0 0.0
      %2026 = vmatpush1.xpose.msra.mxu0 0.0
      %2027 = vmatprep.subr.mxu0 0.0
      %2028 = vmatpush1.xpose.msra.mxu0 0.0
      %2029 = vmatprep.subr.mxu0 0.0
      %2030 = vmatpush1.xpose.msra.mxu0 0.0
      %2031 = vmatprep.subr.mxu0 0.0
      %2032 = vmatpush1.xpose.msra.mxu0 0.0
      %2033 = vmatprep.mubr.f32.mxu0 0.0
      %2034 = vmatmul.mubr.f32.gmra.mrb[0].mxu0 %v1879
      %v2035 = vpop.f32.mrb[0].mxu0
      %v2036 = vadd.f32 0.0, %v2035
      %v2037 = vpop.f32.mrb[0].mxu0
      %2038 = vdwg.mxu0
      %2039 = vmatprep.subr.mxu0 0.0
      %2040 = vmatpush1.xpose.msra.mxu0 %v1835
      %2041 = vmatprep.subr.mxu0 0.0
      %2042 = vmatpush1.xpose.msra.mxu0 0.0
      %2043 = vmatprep.subr.mxu0 0.0
      %2044 = vmatpush1.xpose.msra.mxu0 0.0
      %2045 = vmatprep.subr.mxu0 0.0
      %2046 = vmatpush1.xpose.msra.mxu0 0.0
      %2047 = vmatprep.subr.mxu0 0.0
      %2048 = vmatpush1.xpose.msra.mxu0 0.0
      %2049 = vmatprep.subr.mxu0 0.0
      %2050 = vmatpush1.xpose.msra.mxu0 0.0
      %2051 = vmatprep.subr.mxu0 0.0
      %2052 = vmatpush1.xpose.msra.mxu0 0.0
      %2053 = vmatprep.subr.mxu0 0.0
      %2054 = vmatpush1.xpose.msra.mxu0 0.0
      %2055 = vmatprep.subr.mxu0 0.0
      %2056 = vmatpush1.xpose.msra.mxu0 0.0
      %2057 = vmatprep.subr.mxu0 0.0
      %2058 = vmatpush1.xpose.msra.mxu0 0.0
      %2059 = vmatprep.subr.mxu0 0.0
      %2060 = vmatpush1.xpose.msra.mxu0 0.0
      %2061 = vmatprep.subr.mxu0 0.0
      %2062 = vmatpush1.xpose.msra.mxu0 0.0
      %2063 = vmatprep.subr.mxu0 0.0
      %2064 = vmatpush1.xpose.msra.mxu0 0.0
      %2065 = vmatprep.subr.mxu0 0.0
      %2066 = vmatpush1.xpose.msra.mxu0 0.0
      %2067 = vmatprep.subr.mxu0 0.0
      %2068 = vmatpush1.xpose.msra.mxu0 0.0
      %2069 = vmatprep.subr.mxu0 0.0
      %2070 = vmatpush1.xpose.msra.mxu0 0.0
      %2071 = vmatprep.subr.mxu0 0.0
      %2072 = vmatpush1.xpose.msra.mxu0 0.0
      %2073 = vmatprep.subr.mxu0 0.0
      %2074 = vmatpush1.xpose.msra.mxu0 0.0
      %2075 = vmatprep.subr.mxu0 0.0
      %2076 = vmatpush1.xpose.msra.mxu0 0.0
      %2077 = vmatprep.subr.mxu0 0.0
      %2078 = vmatpush1.xpose.msra.mxu0 0.0
      %2079 = vmatprep.subr.mxu0 0.0
      %2080 = vmatpush1.xpose.msra.mxu0 0.0
      %2081 = vmatprep.subr.mxu0 0.0
      %2082 = vmatpush1.xpose.msra.mxu0 0.0
      %2083 = vmatprep.subr.mxu0 0.0
      %2084 = vmatpush1.xpose.msra.mxu0 0.0
      %2085 = vmatprep.subr.mxu0 0.0
      %2086 = vmatpush1.xpose.msra.mxu0 0.0
      %2087 = vmatprep.subr.mxu0 0.0
      %2088 = vmatpush1.xpose.msra.mxu0 0.0
      %2089 = vmatprep.subr.mxu0 0.0
      %2090 = vmatpush1.xpose.msra.mxu0 0.0
      %2091 = vmatprep.subr.mxu0 0.0
      %2092 = vmatpush1.xpose.msra.mxu0 0.0
      %2093 = vmatprep.subr.mxu0 0.0
      %2094 = vmatpush1.xpose.msra.mxu0 0.0
      %2095 = vmatprep.subr.mxu0 0.0
      %2096 = vmatpush1.xpose.msra.mxu0 0.0
      %2097 = vmatprep.subr.mxu0 0.0
      %2098 = vmatpush1.xpose.msra.mxu0 0.0
      %2099 = vmatprep.subr.mxu0 0.0
      %2100 = vmatpush1.xpose.msra.mxu0 0.0
      %2101 = vmatprep.subr.mxu0 0.0
      %2102 = vmatpush1.xpose.msra.mxu0 0.0
      %2103 = vmatprep.mubr.f32.mxu0 0.0
      %2104 = vmatmul.mubr.f32.gmra.mrb[0].mxu0 %v1887
      %v2105 = vpop.f32.mrb[0].mxu0
      %v2106 = vadd.f32 0.0, %v2105
      %v2107 = vpop.f32.mrb[0].mxu0
      %2108 = vdwg.mxu0
      %2109 = vmatprep.subr.mxu0 0.0
      %2110 = vmatpush1.xpose.msra.mxu0 %v1836
      %2111 = vmatprep.subr.mxu0 0.0
      %2112 = vmatpush1.xpose.msra.mxu0 0.0
      %2113 = vmatprep.subr.mxu0 0.0
      %2114 = vmatpush1.xpose.msra.mxu0 0.0
      %2115 = vmatprep.subr.mxu0 0.0
      %2116 = vmatpush1.xpose.msra.mxu0 0.0
      %2117 = vmatprep.subr.mxu0 0.0
      %2118 = vmatpush1.xpose.msra.mxu0 0.0
      %2119 = vmatprep.subr.mxu0 0.0
      %2120 = vmatpush1.xpose.msra.mxu0 0.0
      %2121 = vmatprep.subr.mxu0 0.0
      %2122 = vmatpush1.xpose.msra.mxu0 0.0
      %2123 = vmatprep.subr.mxu0 0.0
      %2124 = vmatpush1.xpose.msra.mxu0 0.0
      %2125 = vmatprep.subr.mxu0 0.0
      %2126 = vmatpush1.xpose.msra.mxu0 0.0
      %2127 = vmatprep.subr.mxu0 0.0
      %2128 = vmatpush1.xpose.msra.mxu0 0.0
      %2129 = vmatprep.subr.mxu0 0.0
      %2130 = vmatpush1.xpose.msra.mxu0 0.0
      %2131 = vmatprep.subr.mxu0 0.0
      %2132 = vmatpush1.xpose.msra.mxu0 0.0
      %2133 = vmatprep.subr.mxu0 0.0
      %2134 = vmatpush1.xpose.msra.mxu0 0.0
      %2135 = vmatprep.subr.mxu0 0.0
      %2136 = vmatpush1.xpose.msra.mxu0 0.0
      %2137 = vmatprep.subr.mxu0 0.0
      %2138 = vmatpush1.xpose.msra.mxu0 0.0
      %2139 = vmatprep.subr.mxu0 0.0
      %2140 = vmatpush1.xpose.msra.mxu0 0.0
      %2141 = vmatprep.subr.mxu0 0.0
      %2142 = vmatpush1.xpose.msra.mxu0 0.0
      %2143 = vmatprep.subr.mxu0 0.0
      %2144 = vmatpush1.xpose.msra.mxu0 0.0
      %2145 = vmatprep.subr.mxu0 0.0
      %2146 = vmatpush1.xpose.msra.mxu0 0.0
      %2147 = vmatprep.subr.mxu0 0.0
      %2148 = vmatpush1.xpose.msra.mxu0 0.0
      %2149 = vmatprep.subr.mxu0 0.0
      %2150 = vmatpush1.xpose.msra.mxu0 0.0
      %2151 = vmatprep.subr.mxu0 0.0
      %2152 = vmatpush1.xpose.msra.mxu0 0.0
      %2153 = vmatprep.subr.mxu0 0.0
      %2154 = vmatpush1.xpose.msra.mxu0 0.0
      %2155 = vmatprep.subr.mxu0 0.0
      %2156 = vmatpush1.xpose.msra.mxu0 0.0
      %2157 = vmatprep.subr.mxu0 0.0
      %2158 = vmatpush1.xpose.msra.mxu0 0.0
      %2159 = vmatprep.subr.mxu0 0.0
      %2160 = vmatpush1.xpose.msra.mxu0 0.0
      %2161 = vmatprep.subr.mxu0 0.0
      %2162 = vmatpush1.xpose.msra.mxu0 0.0
      %2163 = vmatprep.subr.mxu0 0.0
      %2164 = vmatpush1.xpose.msra.mxu0 0.0
      %2165 = vmatprep.subr.mxu0 0.0
      %2166 = vmatpush1.xpose.msra.mxu0 0.0
      %2167 = vmatprep.subr.mxu0 0.0
      %2168 = vmatpush1.xpose.msra.mxu0 0.0
      %2169 = vmatprep.subr.mxu0 0.0
      %2170 = vmatpush1.xpose.msra.mxu0 0.0
      %2171 = vmatprep.subr.mxu0 0.0
      %2172 = vmatpush1.xpose.msra.mxu0 0.0
      %2173 = vmatprep.mubr.f32.mxu0 0.0
      %2174 = vmatmul.mubr.f32.gmra.mrb[0].mxu0 %v1889
      %v2175 = vpop.f32.mrb[0].mxu0
      %v2176 = vadd.f32 0.0, %v2175
      %v2177 = vpop.f32.mrb[0].mxu0
      %2178 = vdwg.mxu0
      %2179 = vmatprep.subr.mxu0 0.0
      %2180 = vmatpush1.xpose.msra.mxu0 %v1837
      %2181 = vmatprep.subr.mxu0 0.0
      %2182 = vmatpush1.xpose.msra.mxu0 0.0
      %2183 = vmatprep.subr.mxu0 0.0
      %2184 = vmatpush1.xpose.msra.mxu0 0.0
      %2185 = vmatprep.subr.mxu0 0.0
      %2186 = vmatpush1.xpose.msra.mxu0 0.0
      %2187 = vmatprep.subr.mxu0 0.0
      %2188 = vmatpush1.xpose.msra.mxu0 0.0
      %2189 = vmatprep.subr.mxu0 0.0
      %2190 = vmatpush1.xpose.msra.mxu0 0.0
      %2191 = vmatprep.subr.mxu0 0.0
      %2192 = vmatpush1.xpose.msra.mxu0 0.0
      %2193 = vmatprep.subr.mxu0 0.0
      %2194 = vmatpush1.xpose.msra.mxu0 0.0
      %2195 = vmatprep.subr.mxu0 0.0
      %2196 = vmatpush1.xpose.msra.mxu0 0.0
      %2197 = vmatprep.subr.mxu0 0.0
      %2198 = vmatpush1.xpose.msra.mxu0 0.0
      %2199 = vmatprep.subr.mxu0 0.0
      %2200 = vmatpush1.xpose.msra.mxu0 0.0
      %2201 = vmatprep.subr.mxu0 0.0
      %2202 = vmatpush1.xpose.msra.mxu0 0.0
      %2203 = vmatprep.subr.mxu0 0.0
      %2204 = vmatpush1.xpose.msra.mxu0 0.0
      %2205 = vmatprep.subr.mxu0 0.0
      %2206 = vmatpush1.xpose.msra.mxu0 0.0
      %2207 = vmatprep.subr.mxu0 0.0
      %2208 = vmatpush1.xpose.msra.mxu0 0.0
      %2209 = vmatprep.subr.mxu0 0.0
      %2210 = vmatpush1.xpose.msra.mxu0 0.0
      %2211 = vmatprep.subr.mxu0 0.0
      %2212 = vmatpush1.xpose.msra.mxu0 0.0
      %2213 = vmatprep.subr.mxu0 0.0
      %2214 = vmatpush1.xpose.msra.mxu0 0.0
      %2215 = vmatprep.subr.mxu0 0.0
      %2216 = vmatpush1.xpose.msra.mxu0 0.0
      %2217 = vmatprep.subr.mxu0 0.0
      %2218 = vmatpush1.xpose.msra.mxu0 0.0
      %2219 = vmatprep.subr.mxu0 0.0
      %2220 = vmatpush1.xpose.msra.mxu0 0.0
      %2221 = vmatprep.subr.mxu0 0.0
      %2222 = vmatpush1.xpose.msra.mxu0 0.0
      %2223 = vmatprep.subr.mxu0 0.0
      %2224 = vmatpush1.xpose.msra.mxu0 0.0
      %2225 = vmatprep.subr.mxu0 0.0
      %2226 = vmatpush1.xpose.msra.mxu0 0.0
      %2227 = vmatprep.subr.mxu0 0.0
      %2228 = vmatpush1.xpose.msra.mxu0 0.0
      %2229 = vmatprep.subr.mxu0 0.0
      %2230 = vmatpush1.xpose.msra.mxu0 0.0
      %2231 = vmatprep.subr.mxu0 0.0
      %2232 = vmatpush1.xpose.msra.mxu0 0.0
      %2233 = vmatprep.subr.mxu0 0.0
      %2234 = vmatpush1.xpose.msra.mxu0 0.0
      %2235 = vmatprep.subr.mxu0 0.0
      %2236 = vmatpush1.xpose.msra.mxu0 0.0
      %2237 = vmatprep.subr.mxu0 0.0
      %2238 = vmatpush1.xpose.msra.mxu0 0.0
      %2239 = vmatprep.subr.mxu0 0.0
      %2240 = vmatpush1.xpose.msra.mxu0 0.0
      %2241 = vmatprep.subr.mxu0 0.0
      %2242 = vmatpush1.xpose.msra.mxu0 0.0
      %2243 = vmatprep.mubr.f32.mxu0 0.0
      %2244 = vmatmul.mubr.f32.gmra.mrb[0].mxu0 %v1872
      %v2245 = vpop.f32.mrb[0].mxu0
      %v2246 = vadd.f32 0.0, %v2245
      %v2247 = vpop.f32.mrb[0].mxu0
      %2248 = vdwg.mxu0
      %2249 = vmatprep.subr.mxu0 0.0
      %2250 = vmatpush1.xpose.msra.mxu0 %v1838
      %2251 = vmatprep.subr.mxu0 0.0
      %2252 = vmatpush1.xpose.msra.mxu0 0.0
      %2253 = vmatprep.subr.mxu0 0.0
      %2254 = vmatpush1.xpose.msra.mxu0 0.0
      %2255 = vmatprep.subr.mxu0 0.0
      %2256 = vmatpush1.xpose.msra.mxu0 0.0
      %2257 = vmatprep.subr.mxu0 0.0
      %2258 = vmatpush1.xpose.msra.mxu0 0.0
      %2259 = vmatprep.subr.mxu0 0.0
      %2260 = vmatpush1.xpose.msra.mxu0 0.0
      %2261 = vmatprep.subr.mxu0 0.0
      %2262 = vmatpush1.xpose.msra.mxu0 0.0
      %2263 = vmatprep.subr.mxu0 0.0
      %2264 = vmatpush1.xpose.msra.mxu0 0.0
      %2265 = vmatprep.subr.mxu0 0.0
      %2266 = vmatpush1.xpose.msra.mxu0 0.0
      %2267 = vmatprep.subr.mxu0 0.0
      %2268 = vmatpush1.xpose.msra.mxu0 0.0
      %2269 = vmatprep.subr.mxu0 0.0
      %2270 = vmatpush1.xpose.msra.mxu0 0.0
      %2271 = vmatprep.subr.mxu0 0.0
      %2272 = vmatpush1.xpose.msra.mxu0 0.0
      %2273 = vmatprep.subr.mxu0 0.0
      %2274 = vmatpush1.xpose.msra.mxu0 0.0
      %2275 = vmatprep.subr.mxu0 0.0
      %2276 = vmatpush1.xpose.msra.mxu0 0.0
      %2277 = vmatprep.subr.mxu0 0.0
      %2278 = vmatpush1.xpose.msra.mxu0 0.0
      %2279 = vmatprep.subr.mxu0 0.0
      %2280 = vmatpush1.xpose.msra.mxu0 0.0
      %2281 = vmatprep.subr.mxu0 0.0
      %2282 = vmatpush1.xpose.msra.mxu0 0.0
      %2283 = vmatprep.subr.mxu0 0.0
      %2284 = vmatpush1.xpose.msra.mxu0 0.0
      %2285 = vmatprep.subr.mxu0 0.0
      %2286 = vmatpush1.xpose.msra.mxu0 0.0
      %2287 = vmatprep.subr.mxu0 0.0
      %2288 = vmatpush1.xpose.msra.mxu0 0.0
      %2289 = vmatprep.subr.mxu0 0.0
      %2290 = vmatpush1.xpose.msra.mxu0 0.0
      %2291 = vmatprep.subr.mxu0 0.0
      %2292 = vmatpush1.xpose.msra.mxu0 0.0
      %2293 = vmatprep.subr.mxu0 0.0
      %2294 = vmatpush1.xpose.msra.mxu0 0.0
      %2295 = vmatprep.subr.mxu0 0.0
      %2296 = vmatpush1.xpose.msra.mxu0 0.0
      %2297 = vmatprep.subr.mxu0 0.0
      %2298 = vmatpush1.xpose.msra.mxu0 0.0
      %2299 = vmatprep.subr.mxu0 0.0
      %2300 = vmatpush1.xpose.msra.mxu0 0.0
      %2301 = vmatprep.subr.mxu0 0.0
      %2302 = vmatpush1.xpose.msra.mxu0 0.0
      %2303 = vmatprep.subr.mxu0 0.0
      %2304 = vmatpush1.xpose.msra.mxu0 0.0
      %2305 = vmatprep.subr.mxu0 0.0
      %2306 = vmatpush1.xpose.msra.mxu0 0.0
      %2307 = vmatprep.subr.mxu0 0.0
      %2308 = vmatpush1.xpose.msra.mxu0 0.0
      %2309 = vmatprep.subr.mxu0 0.0
      %2310 = vmatpush1.xpose.msra.mxu0 0.0
      %2311 = vmatprep.subr.mxu0 0.0
      %2312 = vmatpush1.xpose.msra.mxu0 0.0
      %2313 = vmatprep.mubr.f32.mxu0 0.0
      %2314 = vmatmul.mubr.f32.gmra.mrb[0].mxu0 %v1886
      %v2315 = vpop.f32.mrb[0].mxu0
      %v2316 = vadd.f32 0.0, %v2315
      %v2317 = vpop.f32.mrb[0].mxu0
      %2318 = vdwg.mxu0
      %2319 = vmatprep.subr.mxu0 0.0
      %2320 = vmatpush1.xpose.msra.mxu0 %v1839
      %2321 = vmatprep.subr.mxu0 0.0
      %2322 = vmatpush1.xpose.msra.mxu0 0.0
      %2323 = vmatprep.subr.mxu0 0.0
      %2324 = vmatpush1.xpose.msra.mxu0 0.0
      %2325 = vmatprep.subr.mxu0 0.0
      %2326 = vmatpush1.xpose.msra.mxu0 0.0
      %2327 = vmatprep.subr.mxu0 0.0
      %2328 = vmatpush1.xpose.msra.mxu0 0.0
      %2329 = vmatprep.subr.mxu0 0.0
      %2330 = vmatpush1.xpose.msra.mxu0 0.0
      %2331 = vmatprep.subr.mxu0 0.0
      %2332 = vmatpush1.xpose.msra.mxu0 0.0
      %2333 = vmatprep.subr.mxu0 0.0
      %2334 = vmatpush1.xpose.msra.mxu0 0.0
      %2335 = vmatprep.subr.mxu0 0.0
      %2336 = vmatpush1.xpose.msra.mxu0 0.0
      %2337 = vmatprep.subr.mxu0 0.0
      %2338 = vmatpush1.xpose.msra.mxu0 0.0
      %2339 = vmatprep.subr.mxu0 0.0
      %2340 = vmatpush1.xpose.msra.mxu0 0.0
      %2341 = vmatprep.subr.mxu0 0.0
      %2342 = vmatpush1.xpose.msra.mxu0 0.0
      %2343 = vmatprep.subr.mxu0 0.0
      %2344 = vmatpush1.xpose.msra.mxu0 0.0
      %2345 = vmatprep.subr.mxu0 0.0
      %2346 = vmatpush1.xpose.msra.mxu0 0.0
      %2347 = vmatprep.subr.mxu0 0.0
      %2348 = vmatpush1.xpose.msra.mxu0 0.0
      %2349 = vmatprep.subr.mxu0 0.0
      %2350 = vmatpush1.xpose.msra.mxu0 0.0
      %2351 = vmatprep.subr.mxu0 0.0
      %2352 = vmatpush1.xpose.msra.mxu0 0.0
      %2353 = vmatprep.subr.mxu0 0.0
      %2354 = vmatpush1.xpose.msra.mxu0 0.0
      %2355 = vmatprep.subr.mxu0 0.0
      %2356 = vmatpush1.xpose.msra.mxu0 0.0
      %2357 = vmatprep.subr.mxu0 0.0
      %2358 = vmatpush1.xpose.msra.mxu0 0.0
      %2359 = vmatprep.subr.mxu0 0.0
      %2360 = vmatpush1.xpose.msra.mxu0 0.0
      %2361 = vmatprep.subr.mxu0 0.0
      %2362 = vmatpush1.xpose.msra.mxu0 0.0
      %2363 = vmatprep.subr.mxu0 0.0
      %2364 = vmatpush1.xpose.msra.mxu0 0.0
      %2365 = vmatprep.subr.mxu0 0.0
      %2366 = vmatpush1.xpose.msra.mxu0 0.0
      %2367 = vmatprep.subr.mxu0 0.0
      %2368 = vmatpush1.xpose.msra.mxu0 0.0
      %2369 = vmatprep.subr.mxu0 0.0
      %2370 = vmatpush1.xpose.msra.mxu0 0.0
      %2371 = vmatprep.subr.mxu0 0.0
      %2372 = vmatpush1.xpose.msra.mxu0 0.0
      %2373 = vmatprep.subr.mxu0 0.0
      %2374 = vmatpush1.xpose.msra.mxu0 0.0
      %2375 = vmatprep.subr.mxu0 0.0
      %2376 = vmatpush1.xpose.msra.mxu0 0.0
      %2377 = vmatprep.subr.mxu0 0.0
      %2378 = vmatpush1.xpose.msra.mxu0 0.0
      %2379 = vmatprep.subr.mxu0 0.0
      %2380 = vmatpush1.xpose.msra.mxu0 0.0
      %2381 = vmatprep.subr.mxu0 0.0
      %2382 = vmatpush1.xpose.msra.mxu0 0.0
      %2383 = vmatprep.mubr.f32.mxu0 0.0
      %2384 = vmatmul.mubr.f32.gmra.mrb[0].mxu0 %v1888
      %v2385 = vpop.f32.mrb[0].mxu0
      %v2386 = vadd.f32 0.0, %v2385
      %v2387 = vpop.f32.mrb[0].mxu0
      %2388 = vdwg.mxu0
      %2389 = vmatprep.subr.mxu0 0.0
      %2390 = vmatpush1.xpose.msra.mxu0 %v1840
      %2391 = vmatprep.subr.mxu0 0.0
      %2392 = vmatpush1.xpose.msra.mxu0 0.0
      %2393 = vmatprep.subr.mxu0 0.0
      %2394 = vmatpush1.xpose.msra.mxu0 0.0
      %2395 = vmatprep.subr.mxu0 0.0
      %2396 = vmatpush1.xpose.msra.mxu0 0.0
      %2397 = vmatprep.subr.mxu0 0.0
      %2398 = vmatpush1.xpose.msra.mxu0 0.0
      %2399 = vmatprep.subr.mxu0 0.0
      %2400 = vmatpush1.xpose.msra.mxu0 0.0
      %2401 = vmatprep.subr.mxu0 0.0
      %2402 = vmatpush1.xpose.msra.mxu0 0.0
      %2403 = vmatprep.subr.mxu0 0.0
      %2404 = vmatpush1.xpose.msra.mxu0 0.0
      %2405 = vmatprep.subr.mxu0 0.0
      %2406 = vmatpush1.xpose.msra.mxu0 0.0
      %2407 = vmatprep.subr.mxu0 0.0
      %2408 = vmatpush1.xpose.msra.mxu0 0.0
      %2409 = vmatprep.subr.mxu0 0.0
      %2410 = vmatpush1.xpose.msra.mxu0 0.0
      %2411 = vmatprep.subr.mxu0 0.0
      %2412 = vmatpush1.xpose.msra.mxu0 0.0
      %2413 = vmatprep.subr.mxu0 0.0
      %2414 = vmatpush1.xpose.msra.mxu0 0.0
      %2415 = vmatprep.subr.mxu0 0.0
      %2416 = vmatpush1.xpose.msra.mxu0 0.0
      %2417 = vmatprep.subr.mxu0 0.0
      %2418 = vmatpush1.xpose.msra.mxu0 0.0
      %2419 = vmatprep.subr.mxu0 0.0
      %2420 = vmatpush1.xpose.msra.mxu0 0.0
      %2421 = vmatprep.subr.mxu0 0.0
      %2422 = vmatpush1.xpose.msra.mxu0 0.0
      %2423 = vmatprep.subr.mxu0 0.0
      %2424 = vmatpush1.xpose.msra.mxu0 0.0
      %2425 = vmatprep.subr.mxu0 0.0
      %2426 = vmatpush1.xpose.msra.mxu0 0.0
      %2427 = vmatprep.subr.mxu0 0.0
      %2428 = vmatpush1.xpose.msra.mxu0 0.0
      %2429 = vmatprep.subr.mxu0 0.0
      %2430 = vmatpush1.xpose.msra.mxu0 0.0
      %2431 = vmatprep.subr.mxu0 0.0
      %2432 = vmatpush1.xpose.msra.mxu0 0.0
      %2433 = vmatprep.subr.mxu0 0.0
      %2434 = vmatpush1.xpose.msra.mxu0 0.0
      %2435 = vmatprep.subr.mxu0 0.0
      %2436 = vmatpush1.xpose.msra.mxu0 0.0
      %2437 = vmatprep.subr.mxu0 0.0
      %2438 = vmatpush1.xpose.msra.mxu0 0.0
      %2439 = vmatprep.subr.mxu0 0.0
      %2440 = vmatpush1.xpose.msra.mxu0 0.0
      %2441 = vmatprep.subr.mxu0 0.0
      %2442 = vmatpush1.xpose.msra.mxu0 0.0
      %2443 = vmatprep.subr.mxu0 0.0
      %2444 = vmatpush1.xpose.msra.mxu0 0.0
      %2445 = vmatprep.subr.mxu0 0.0
      %2446 = vmatpush1.xpose.msra.mxu0 0.0
      %2447 = vmatprep.subr.mxu0 0.0
      %2448 = vmatpush1.xpose.msra.mxu0 0.0
      %2449 = vmatprep.subr.mxu0 0.0
      %2450 = vmatpush1.xpose.msra.mxu0 0.0
      %2451 = vmatprep.subr.mxu0 0.0
      %2452 = vmatpush1.xpose.msra.mxu0 0.0
      %2453 = vmatprep.mubr.f32.mxu0 0.0
      %2454 = vmatmul.mubr.f32.gmra.mrb[0].mxu0 %v1890
      %v2455 = vpop.f32.mrb[0].mxu0
      %v2456 = vadd.f32 0.0, %v2455
      %v2457 = vpop.f32.mrb[0].mxu0
      %2458 = vdwg.mxu0
      %vm2459 = vcmask 57344
      %v2460 = vsel %vm2459, %v1966, -inf
      %2461 = vmax.xlane.f32.xlu0 %v2460
      %v2462 = vpop.xlane.xlu0 %2461
      %v2463 = vsel %vm2459, %v2036, -inf
      %2464 = vmax.xlane.f32.xlu0 %v2463
      %v2465 = vpop.xlane.xlu0 %2464
      %v2466 = vsel %vm2459, %v2106, -inf
      %2467 = vmax.xlane.f32.xlu0 %v2466
      %v2468 = vpop.xlane.xlu0 %2467
      %v2469 = vsel %vm2459, %v2176, -inf
      %2470 = vmax.xlane.f32.xlu0 %v2469
      %v2471 = vpop.xlane.xlu0 %2470
      %v2472 = vsel %vm2459, %v2246, -inf
      %2473 = vmax.xlane.f32.xlu0 %v2472
      %v2474 = vpop.xlane.xlu0 %2473
      %v2475 = vsel %vm2459, %v2316, -inf
      %2476 = vmax.xlane.f32.xlu0 %v2475
      %v2477 = vpop.xlane.xlu0 %2476
      %v2478 = vsel %vm2459, %v2386, -inf
      %2479 = vmax.xlane.f32.xlu0 %v2478
      %v2480 = vpop.xlane.xlu0 %2479
      %v2481 = vsel %vm2459, %v2456, -inf
      %2482 = vmax.xlane.f32.xlu0 %v2481
      %v2483 = vpop.xlane.xlu0 %2482
      %v2484 = vsub.f32 %v1966, %v2462
      %v2485 = vsub.f32 %v2036, %v2465
      %v2486 = vsub.f32 %v2106, %v2468
      %v2487 = vsub.f32 %v2176, %v2471
      %v2488 = vsub.f32 %v2246, %v2474
      %v2489 = vsub.f32 %v2316, %v2477
      %v2490 = vsub.f32 %v2386, %v2480
      %v2491 = vsub.f32 %v2456, %v2483
      %v2492 = vmul.f32 %v2484, 1.442695
      %v2493 = vpow.pop %v2492
      %v2494 = vmul.f32 %v2485, 1.442695
      %v2495 = vpow.pop %v2494
      %v2496 = vmul.f32 %v2486, 1.442695
      %v2497 = vpow.pop %v2496
      %v2498 = vmul.f32 %v2487, 1.442695
      %v2499 = vpow.pop %v2498
      %v2500 = vmul.f32 %v2488, 1.442695
      %v2501 = vpow.pop %v2500
      %v2502 = vmul.f32 %v2489, 1.442695
      %v2503 = vpow.pop %v2502
      %v2504 = vmul.f32 %v2490, 1.442695
      %v2505 = vpow.pop %v2504
      %v2506 = vmul.f32 %v2491, 1.442695
      %v2507 = vpow.pop %v2506
      %v2508 = vsel %vm2459, %v2493, 0.0
      %2509 = vadd.xlane.f32.xlu0 %v2508
      %v2510 = vpop.xlane.xlu0 %2509
      %v2511 = vsel %vm2459, %v2495, 0.0
      %2512 = vadd.xlane.f32.xlu0 %v2511
      %v2513 = vpop.xlane.xlu0 %2512
      %v2514 = vsel %vm2459, %v2497, 0.0
      %2515 = vadd.xlane.f32.xlu0 %v2514
      %v2516 = vpop.xlane.xlu0 %2515
      %v2517 = vsel %vm2459, %v2499, 0.0
      %2518 = vadd.xlane.f32.xlu0 %v2517
      %v2519 = vpop.xlane.xlu0 %2518
      %v2520 = vsel %vm2459, %v2501, 0.0
      %2521 = vadd.xlane.f32.xlu0 %v2520
      %v2522 = vpop.xlane.xlu0 %2521
      %v2523 = vsel %vm2459, %v2503, 0.0
      %2524 = vadd.xlane.f32.xlu0 %v2523
      %v2525 = vpop.xlane.xlu0 %2524
      %v2526 = vsel %vm2459, %v2505, 0.0
      %2527 = vadd.xlane.f32.xlu0 %v2526
      %v2528 = vpop.xlane.xlu0 %2527
      %v2529 = vsel %vm2459, %v2507, 0.0
      %2530 = vadd.xlane.f32.xlu0 %v2529
      %v2531 = vpop.xlane.xlu0 %2530
      %v2532 = vrcp.pop %v2510
      %v2533 = vrcp.pop %v2513
      %v2534 = vrcp.pop %v2516
      %v2535 = vrcp.pop %v2519
      %v2536 = vrcp.pop %v2522
      %v2537 = vrcp.pop %v2525
      %v2538 = vrcp.pop %v2528
      %v2539 = vrcp.pop %v2531
      %v2540 = vmul.f32 %v2493, %v2532
      %v2541 = vmul.f32 %v2495, %v2533
      %v2542 = vmul.f32 %v2497, %v2534
      %v2543 = vmul.f32 %v2499, %v2535
      %v2544 = vmul.f32 %v2501, %v2536
      %v2545 = vmul.f32 %v2503, %v2537
      %v2546 = vmul.f32 %v2505, %v2538
      %v2547 = vmul.f32 %v2507, %v2539
      %vm2548 = vcmask 64512
      %v2550 = vsel %vm2548, %v2540, 0
      %2552 = vmatprep.subr.mxu0 0.0
      %2553 = vmatpush1.msra.mxu0 %v1833
      %2554 = vmatprep.subr.mxu0 0.0
      %2555 = vmatpush1.msra.mxu0 0.0
      %2556 = vmatprep.subr.mxu0 0.0
      %2557 = vmatpush1.msra.mxu0 0.0
      %2558 = vmatprep.subr.mxu0 0.0
      %2559 = vmatpush1.msra.mxu0 0.0
      %2560 = vmatprep.subr.mxu0 0.0
      %2561 = vmatpush1.msra.mxu0 0.0
      %2562 = vmatprep.subr.mxu0 0.0
      %2563 = vmatpush1.msra.mxu0 0.0
      %2564 = vmatprep.subr.mxu0 0.0
      %2565 = vmatpush1.msra.mxu0 0.0
      %2566 = vmatprep.subr.mxu0 0.0
      %2567 = vmatpush1.msra.mxu0 0.0
      %2568 = vmatprep.subr.mxu0 0.0
      %2569 = vmatpush1.msra.mxu0 0.0
      %2570 = vmatprep.subr.mxu0 0.0
      %2571 = vmatpush1.msra.mxu0 0.0
      %2572 = vmatprep.subr.mxu0 0.0
      %2573 = vmatpush1.msra.mxu0 0.0
      %2574 = vmatprep.subr.mxu0 0.0
      %2575 = vmatpush1.msra.mxu0 0.0
      %2576 = vmatprep.subr.mxu0 0.0
      %2577 = vmatpush1.msra.mxu0 0.0
      %2578 = vmatprep.subr.mxu0 0.0
      %2579 = vmatpush1.msra.mxu0 0.0
      %2580 = vmatprep.subr.mxu0 0.0
      %2581 = vmatpush1.msra.mxu0 0.0
      %2582 = vmatprep.subr.mxu0 0.0
      %2583 = vmatpush1.msra.mxu0 0.0
      %2584 = vmatprep.subr.mxu0 0.0
      %2585 = vmatpush1.msra.mxu0 0.0
      %2586 = vmatprep.subr.mxu0 0.0
      %2587 = vmatpush1.msra.mxu0 0.0
      %2588 = vmatprep.subr.mxu0 0.0
      %2589 = vmatpush1.msra.mxu0 0.0
      %2590 = vmatprep.subr.mxu0 0.0
      %2591 = vmatpush1.msra.mxu0 0.0
      %2592 = vmatprep.subr.mxu0 0.0
      %2593 = vmatpush1.msra.mxu0 0.0
      %2594 = vmatprep.subr.mxu0 0.0
      %2595 = vmatpush1.msra.mxu0 0.0
      %2596 = vmatprep.subr.mxu0 0.0
      %2597 = vmatpush1.msra.mxu0 0.0
      %2598 = vmatprep.subr.mxu0 0.0
      %2599 = vmatpush1.msra.mxu0 0.0
      %2600 = vmatprep.subr.mxu0 0.0
      %2601 = vmatpush1.msra.mxu0 0.0
      %2602 = vmatprep.subr.mxu0 0.0
      %2603 = vmatpush1.msra.mxu0 0.0
      %2604 = vmatprep.subr.mxu0 0.0
      %2605 = vmatpush1.msra.mxu0 0.0
      %2606 = vmatprep.subr.mxu0 0.0
      %2607 = vmatpush1.msra.mxu0 0.0
      %2608 = vmatprep.subr.mxu0 0.0
      %2609 = vmatpush1.msra.mxu0 0.0
      %2610 = vmatprep.subr.mxu0 0.0
      %2611 = vmatpush1.msra.mxu0 0.0
      %2612 = vmatprep.subr.mxu0 0.0
      %2613 = vmatpush1.msra.mxu0 0.0
      %2614 = vmatprep.subr.mxu0 0.0
      %2615 = vmatpush1.msra.mxu0 0.0
      %2616 = vmatprep.mubr.f32.mxu0 0.0
      %2617 = vmatmul.mubr.f32.gmra.mrb[0].mxu0 %v2550
      %v2618 = vpop.f32.mrb[0].mxu0
      %v2619 = vadd.f32 0.0, %v2618
      %v2620 = vpop.f32.mrb[0].mxu0
      %2621 = vdwg.mxu0
      %v2623 = vsel %vm2548, %v2541, 0
      %2625 = vmatprep.subr.mxu0 0.0
      %2626 = vmatpush1.msra.mxu0 %v1834
      %2627 = vmatprep.subr.mxu0 0.0
      %2628 = vmatpush1.msra.mxu0 0.0
      %2629 = vmatprep.subr.mxu0 0.0
      %2630 = vmatpush1.msra.mxu0 0.0
      %2631 = vmatprep.subr.mxu0 0.0
      %2632 = vmatpush1.msra.mxu0 0.0
      %2633 = vmatprep.subr.mxu0 0.0
      %2634 = vmatpush1.msra.mxu0 0.0
      %2635 = vmatprep.subr.mxu0 0.0
      %2636 = vmatpush1.msra.mxu0 0.0
      %2637 = vmatprep.subr.mxu0 0.0
      %2638 = vmatpush1.msra.mxu0 0.0
      %2639 = vmatprep.subr.mxu0 0.0
      %2640 = vmatpush1.msra.mxu0 0.0
      %2641 = vmatprep.subr.mxu0 0.0
      %2642 = vmatpush1.msra.mxu0 0.0
      %2643 = vmatprep.subr.mxu0 0.0
      %2644 = vmatpush1.msra.mxu0 0.0
      %2645 = vmatprep.subr.mxu0 0.0
      %2646 = vmatpush1.msra.mxu0 0.0
      %2647 = vmatprep.subr.mxu0 0.0
      %2648 = vmatpush1.msra.mxu0 0.0
      %2649 = vmatprep.subr.mxu0 0.0
      %2650 = vmatpush1.msra.mxu0 0.0
      %2651 = vmatprep.subr.mxu0 0.0
      %2652 = vmatpush1.msra.mxu0 0.0
      %2653 = vmatprep.subr.mxu0 0.0
      %2654 = vmatpush1.msra.mxu0 0.0
      %2655 = vmatprep.subr.mxu0 0.0
      %2656 = vmatpush1.msra.mxu0 0.0
      %2657 = vmatprep.subr.mxu0 0.0
      %2658 = vmatpush1.msra.mxu0 0.0
      %2659 = vmatprep.subr.mxu0 0.0
      %2660 = vmatpush1.msra.mxu0 0.0
      %2661 = vmatprep.subr.mxu0 0.0
      %2662 = vmatpush1.msra.mxu0 0.0
      %2663 = vmatprep.subr.mxu0 0.0
      %2664 = vmatpush1.msra.mxu0 0.0
      %2665 = vmatprep.subr.mxu0 0.0
      %2666 = vmatpush1.msra.mxu0 0.0
      %2667 = vmatprep.subr.mxu0 0.0
      %2668 = vmatpush1.msra.mxu0 0.0
      %2669 = vmatprep.subr.mxu0 0.0
      %2670 = vmatpush1.msra.mxu0 0.0
      %2671 = vmatprep.subr.mxu0 0.0
      %2672 = vmatpush1.msra.mxu0 0.0
      %2673 = vmatprep.subr.mxu0 0.0
      %2674 = vmatpush1.msra.mxu0 0.0
      %2675 = vmatprep.subr.mxu0 0.0
      %2676 = vmatpush1.msra.mxu0 0.0
      %2677 = vmatprep.subr.mxu0 0.0
      %2678 = vmatpush1.msra.mxu0 0.0
      %2679 = vmatprep.subr.mxu0 0.0
      %2680 = vmatpush1.msra.mxu0 0.0
      %2681 = vmatprep.subr.mxu0 0.0
      %2682 = vmatpush1.msra.mxu0 0.0
      %2683 = vmatprep.subr.mxu0 0.0
      %2684 = vmatpush1.msra.mxu0 0.0
      %2685 = vmatprep.subr.mxu0 0.0
      %2686 = vmatpush1.msra.mxu0 0.0
      %2687 = vmatprep.subr.mxu0 0.0
      %2688 = vmatpush1.msra.mxu0 0.0
      %2689 = vmatprep.mubr.f32.mxu0 0.0
      %2690 = vmatmul.mubr.f32.gmra.mrb[0].mxu0 %v2623
      %v2691 = vpop.f32.mrb[0].mxu0
      %v2692 = vadd.f32 0.0, %v2691
      %v2693 = vpop.f32.mrb[0].mxu0
      %2694 = vdwg.mxu0
      %v2696 = vsel %vm2548, %v2542, 0
      %2698 = vmatprep.subr.mxu0 0.0
      %2699 = vmatpush1.msra.mxu0 %v1835
      %2700 = vmatprep.subr.mxu0 0.0
      %2701 = vmatpush1.msra.mxu0 0.0
      %2702 = vmatprep.subr.mxu0 0.0
      %2703 = vmatpush1.msra.mxu0 0.0
      %2704 = vmatprep.subr.mxu0 0.0
      %2705 = vmatpush1.msra.mxu0 0.0
      %2706 = vmatprep.subr.mxu0 0.0
      %2707 = vmatpush1.msra.mxu0 0.0
      %2708 = vmatprep.subr.mxu0 0.0
      %2709 = vmatpush1.msra.mxu0 0.0
      %2710 = vmatprep.subr.mxu0 0.0
      %2711 = vmatpush1.msra.mxu0 0.0
      %2712 = vmatprep.subr.mxu0 0.0
      %2713 = vmatpush1.msra.mxu0 0.0
      %2714 = vmatprep.subr.mxu0 0.0
      %2715 = vmatpush1.msra.mxu0 0.0
      %2716 = vmatprep.subr.mxu0 0.0
      %2717 = vmatpush1.msra.mxu0 0.0
      %2718 = vmatprep.subr.mxu0 0.0
      %2719 = vmatpush1.msra.mxu0 0.0
      %2720 = vmatprep.subr.mxu0 0.0
      %2721 = vmatpush1.msra.mxu0 0.0
      %2722 = vmatprep.subr.mxu0 0.0
      %2723 = vmatpush1.msra.mxu0 0.0
      %2724 = vmatprep.subr.mxu0 0.0
      %2725 = vmatpush1.msra.mxu0 0.0
      %2726 = vmatprep.subr.mxu0 0.0
      %2727 = vmatpush1.msra.mxu0 0.0
      %2728 = vmatprep.subr.mxu0 0.0
      %2729 = vmatpush1.msra.mxu0 0.0
      %2730 = vmatprep.subr.mxu0 0.0
      %2731 = vmatpush1.msra.mxu0 0.0
      %2732 = vmatprep.subr.mxu0 0.0
      %2733 = vmatpush1.msra.mxu0 0.0
      %2734 = vmatprep.subr.mxu0 0.0
      %2735 = vmatpush1.msra.mxu0 0.0
      %2736 = vmatprep.subr.mxu0 0.0
      %2737 = vmatpush1.msra.mxu0 0.0
      %2738 = vmatprep.subr.mxu0 0.0
      %2739 = vmatpush1.msra.mxu0 0.0
      %2740 = vmatprep.subr.mxu0 0.0
      %2741 = vmatpush1.msra.mxu0 0.0
      %2742 = vmatprep.subr.mxu0 0.0
      %2743 = vmatpush1.msra.mxu0 0.0
      %2744 = vmatprep.subr.mxu0 0.0
      %2745 = vmatpush1.msra.mxu0 0.0
      %2746 = vmatprep.subr.mxu0 0.0
      %2747 = vmatpush1.msra.mxu0 0.0
      %2748 = vmatprep.subr.mxu0 0.0
      %2749 = vmatpush1.msra.mxu0 0.0
      %2750 = vmatprep.subr.mxu0 0.0
      %2751 = vmatpush1.msra.mxu0 0.0
      %2752 = vmatprep.subr.mxu0 0.0
      %2753 = vmatpush1.msra.mxu0 0.0
      %2754 = vmatprep.subr.mxu0 0.0
      %2755 = vmatpush1.msra.mxu0 0.0
      %2756 = vmatprep.subr.mxu0 0.0
      %2757 = vmatpush1.msra.mxu0 0.0
      %2758 = vmatprep.subr.mxu0 0.0
      %2759 = vmatpush1.msra.mxu0 0.0
      %2760 = vmatprep.subr.mxu0 0.0
      %2761 = vmatpush1.msra.mxu0 0.0
      %2762 = vmatprep.mubr.f32.mxu0 0.0
      %2763 = vmatmul.mubr.f32.gmra.mrb[0].mxu0 %v2696
      %v2764 = vpop.f32.mrb[0].mxu0
      %v2765 = vadd.f32 0.0, %v2764
      %v2766 = vpop.f32.mrb[0].mxu0
      %2767 = vdwg.mxu0
      %v2769 = vsel %vm2548, %v2543, 0
      %2771 = vmatprep.subr.mxu0 0.0
      %2772 = vmatpush1.msra.mxu0 %v1836
      %2773 = vmatprep.subr.mxu0 0.0
      %2774 = vmatpush1.msra.mxu0 0.0
      %2775 = vmatprep.subr.mxu0 0.0
      %2776 = vmatpush1.msra.mxu0 0.0
      %2777 = vmatprep.subr.mxu0 0.0
      %2778 = vmatpush1.msra.mxu0 0.0
      %2779 = vmatprep.subr.mxu0 0.0
      %2780 = vmatpush1.msra.mxu0 0.0
      %2781 = vmatprep.subr.mxu0 0.0
      %2782 = vmatpush1.msra.mxu0 0.0
      %2783 = vmatprep.subr.mxu0 0.0
      %2784 = vmatpush1.msra.mxu0 0.0
      %2785 = vmatprep.subr.mxu0 0.0
      %2786 = vmatpush1.msra.mxu0 0.0
      %2787 = vmatprep.subr.mxu0 0.0
      %2788 = vmatpush1.msra.mxu0 0.0
      %2789 = vmatprep.subr.mxu0 0.0
      %2790 = vmatpush1.msra.mxu0 0.0
      %2791 = vmatprep.subr.mxu0 0.0
      %2792 = vmatpush1.msra.mxu0 0.0
      %2793 = vmatprep.subr.mxu0 0.0
      %2794 = vmatpush1.msra.mxu0 0.0
      %2795 = vmatprep.subr.mxu0 0.0
      %2796 = vmatpush1.msra.mxu0 0.0
      %2797 = vmatprep.subr.mxu0 0.0
      %2798 = vmatpush1.msra.mxu0 0.0
      %2799 = vmatprep.subr.mxu0 0.0
      %2800 = vmatpush1.msra.mxu0 0.0
      %2801 = vmatprep.subr.mxu0 0.0
      %2802 = vmatpush1.msra.mxu0 0.0
      %2803 = vmatprep.subr.mxu0 0.0
      %2804 = vmatpush1.msra.mxu0 0.0
      %2805 = vmatprep.subr.mxu0 0.0
      %2806 = vmatpush1.msra.mxu0 0.0
      %2807 = vmatprep.subr.mxu0 0.0
      %2808 = vmatpush1.msra.mxu0 0.0
      %2809 = vmatprep.subr.mxu0 0.0
      %2810 = vmatpush1.msra.mxu0 0.0
      %2811 = vmatprep.subr.mxu0 0.0
      %2812 = vmatpush1.msra.mxu0 0.0
      %2813 = vmatprep.subr.mxu0 0.0
      %2814 = vmatpush1.msra.mxu0 0.0
      %2815 = vmatprep.subr.mxu0 0.0
      %2816 = vmatpush1.msra.mxu0 0.0
      %2817 = vmatprep.subr.mxu0 0.0
      %2818 = vmatpush1.msra.mxu0 0.0
      %2819 = vmatprep.subr.mxu0 0.0
      %2820 = vmatpush1.msra.mxu0 0.0
      %2821 = vmatprep.subr.mxu0 0.0
      %2822 = vmatpush1.msra.mxu0 0.0
      %2823 = vmatprep.subr.mxu0 0.0
      %2824 = vmatpush1.msra.mxu0 0.0
      %2825 = vmatprep.subr.mxu0 0.0
      %2826 = vmatpush1.msra.mxu0 0.0
      %2827 = vmatprep.subr.mxu0 0.0
      %2828 = vmatpush1.msra.mxu0 0.0
      %2829 = vmatprep.subr.mxu0 0.0
      %2830 = vmatpush1.msra.mxu0 0.0
      %2831 = vmatprep.subr.mxu0 0.0
      %2832 = vmatpush1.msra.mxu0 0.0
      %2833 = vmatprep.subr.mxu0 0.0
      %2834 = vmatpush1.msra.mxu0 0.0
      %2835 = vmatprep.mubr.f32.mxu0 0.0
      %2836 = vmatmul.mubr.f32.gmra.mrb[0].mxu0 %v2769
      %v2837 = vpop.f32.mrb[0].mxu0
      %v2838 = vadd.f32 0.0, %v2837
      %v2839 = vpop.f32.mrb[0].mxu0
      %2840 = vdwg.mxu0
      %v2842 = vsel %vm2548, %v2544, 0
      %2844 = vmatprep.subr.mxu0 0.0
      %2845 = vmatpush1.msra.mxu0 %v1837
      %2846 = vmatprep.subr.mxu0 0.0
      %2847 = vmatpush1.msra.mxu0 0.0
      %2848 = vmatprep.subr.mxu0 0.0
      %2849 = vmatpush1.msra.mxu0 0.0
      %2850 = vmatprep.subr.mxu0 0.0
      %2851 = vmatpush1.msra.mxu0 0.0
      %2852 = vmatprep.subr.mxu0 0.0
      %2853 = vmatpush1.msra.mxu0 0.0
      %2854 = vmatprep.subr.mxu0 0.0
      %2855 = vmatpush1.msra.mxu0 0.0
      %2856 = vmatprep.subr.mxu0 0.0
      %2857 = vmatpush1.msra.mxu0 0.0
      %2858 = vmatprep.subr.mxu0 0.0
      %2859 = vmatpush1.msra.mxu0 0.0
      %2860 = vmatprep.subr.mxu0 0.0
      %2861 = vmatpush1.msra.mxu0 0.0
      %2862 = vmatprep.subr.mxu0 0.0
      %2863 = vmatpush1.msra.mxu0 0.0
      %2864 = vmatprep.subr.mxu0 0.0
      %2865 = vmatpush1.msra.mxu0 0.0
      %2866 = vmatprep.subr.mxu0 0.0
      %2867 = vmatpush1.msra.mxu0 0.0
      %2868 = vmatprep.subr.mxu0 0.0
      %2869 = vmatpush1.msra.mxu0 0.0
      %2870 = vmatprep.subr.mxu0 0.0
      %2871 = vmatpush1.msra.mxu0 0.0
      %2872 = vmatprep.subr.mxu0 0.0
      %2873 = vmatpush1.msra.mxu0 0.0
      %2874 = vmatprep.subr.mxu0 0.0
      %2875 = vmatpush1.msra.mxu0 0.0
      %2876 = vmatprep.subr.mxu0 0.0
      %2877 = vmatpush1.msra.mxu0 0.0
      %2878 = vmatprep.subr.mxu0 0.0
      %2879 = vmatpush1.msra.mxu0 0.0
      %2880 = vmatprep.subr.mxu0 0.0
      %2881 = vmatpush1.msra.mxu0 0.0
      %2882 = vmatprep.subr.mxu0 0.0
      %2883 = vmatpush1.msra.mxu0 0.0
      %2884 = vmatprep.subr.mxu0 0.0
      %2885 = vmatpush1.msra.mxu0 0.0
      %2886 = vmatprep.subr.mxu0 0.0
      %2887 = vmatpush1.msra.mxu0 0.0
      %2888 = vmatprep.subr.mxu0 0.0
      %2889 = vmatpush1.msra.mxu0 0.0
      %2890 = vmatprep.subr.mxu0 0.0
      %2891 = vmatpush1.msra.mxu0 0.0
      %2892 = vmatprep.subr.mxu0 0.0
      %2893 = vmatpush1.msra.mxu0 0.0
      %2894 = vmatprep.subr.mxu0 0.0
      %2895 = vmatpush1.msra.mxu0 0.0
      %2896 = vmatprep.subr.mxu0 0.0
      %2897 = vmatpush1.msra.mxu0 0.0
      %2898 = vmatprep.subr.mxu0 0.0
      %2899 = vmatpush1.msra.mxu0 0.0
      %2900 = vmatprep.subr.mxu0 0.0
      %2901 = vmatpush1.msra.mxu0 0.0
      %2902 = vmatprep.subr.mxu0 0.0
      %2903 = vmatpush1.msra.mxu0 0.0
      %2904 = vmatprep.subr.mxu0 0.0
      %2905 = vmatpush1.msra.mxu0 0.0
      %2906 = vmatprep.subr.mxu0 0.0
      %2907 = vmatpush1.msra.mxu0 0.0
      %2908 = vmatprep.mubr.f32.mxu0 0.0
      %2909 = vmatmul.mubr.f32.gmra.mrb[0].mxu0 %v2842
      %v2910 = vpop.f32.mrb[0].mxu0
      %v2911 = vadd.f32 0.0, %v2910
      %v2912 = vpop.f32.mrb[0].mxu0
      %2913 = vdwg.mxu0
      %v2915 = vsel %vm2548, %v2545, 0
      %2917 = vmatprep.subr.mxu0 0.0
      %2918 = vmatpush1.msra.mxu0 %v1838
      %2919 = vmatprep.subr.mxu0 0.0
      %2920 = vmatpush1.msra.mxu0 0.0
      %2921 = vmatprep.subr.mxu0 0.0
      %2922 = vmatpush1.msra.mxu0 0.0
      %2923 = vmatprep.subr.mxu0 0.0
      %2924 = vmatpush1.msra.mxu0 0.0
      %2925 = vmatprep.subr.mxu0 0.0
      %2926 = vmatpush1.msra.mxu0 0.0
      %2927 = vmatprep.subr.mxu0 0.0
      %2928 = vmatpush1.msra.mxu0 0.0
      %2929 = vmatprep.subr.mxu0 0.0
      %2930 = vmatpush1.msra.mxu0 0.0
      %2931 = vmatprep.subr.mxu0 0.0
      %2932 = vmatpush1.msra.mxu0 0.0
      %2933 = vmatprep.subr.mxu0 0.0
      %2934 = vmatpush1.msra.mxu0 0.0
      %2935 = vmatprep.subr.mxu0 0.0
      %2936 = vmatpush1.msra.mxu0 0.0
      %2937 = vmatprep.subr.mxu0 0.0
      %2938 = vmatpush1.msra.mxu0 0.0
      %2939 = vmatprep.subr.mxu0 0.0
      %2940 = vmatpush1.msra.mxu0 0.0
      %2941 = vmatprep.subr.mxu0 0.0
      %2942 = vmatpush1.msra.mxu0 0.0
      %2943 = vmatprep.subr.mxu0 0.0
      %2944 = vmatpush1.msra.mxu0 0.0
      %2945 = vmatprep.subr.mxu0 0.0
      %2946 = vmatpush1.msra.mxu0 0.0
      %2947 = vmatprep.subr.mxu0 0.0
      %2948 = vmatpush1.msra.mxu0 0.0
      %2949 = vmatprep.subr.mxu0 0.0
      %2950 = vmatpush1.msra.mxu0 0.0
      %2951 = vmatprep.subr.mxu0 0.0
      %2952 = vmatpush1.msra.mxu0 0.0
      %2953 = vmatprep.subr.mxu0 0.0
      %2954 = vmatpush1.msra.mxu0 0.0
      %2955 = vmatprep.subr.mxu0 0.0
      %2956 = vmatpush1.msra.mxu0 0.0
      %2957 = vmatprep.subr.mxu0 0.0
      %2958 = vmatpush1.msra.mxu0 0.0
      %2959 = vmatprep.subr.mxu0 0.0
      %2960 = vmatpush1.msra.mxu0 0.0
      %2961 = vmatprep.subr.mxu0 0.0
      %2962 = vmatpush1.msra.mxu0 0.0
      %2963 = vmatprep.subr.mxu0 0.0
      %2964 = vmatpush1.msra.mxu0 0.0
      %2965 = vmatprep.subr.mxu0 0.0
      %2966 = vmatpush1.msra.mxu0 0.0
      %2967 = vmatprep.subr.mxu0 0.0
      %2968 = vmatpush1.msra.mxu0 0.0
      %2969 = vmatprep.subr.mxu0 0.0
      %2970 = vmatpush1.msra.mxu0 0.0
      %2971 = vmatprep.subr.mxu0 0.0
      %2972 = vmatpush1.msra.mxu0 0.0
      %2973 = vmatprep.subr.mxu0 0.0
      %2974 = vmatpush1.msra.mxu0 0.0
      %2975 = vmatprep.subr.mxu0 0.0
      %2976 = vmatpush1.msra.mxu0 0.0
      %2977 = vmatprep.subr.mxu0 0.0
      %2978 = vmatpush1.msra.mxu0 0.0
      %2979 = vmatprep.subr.mxu0 0.0
      %2980 = vmatpush1.msra.mxu0 0.0
      %2981 = vmatprep.mubr.f32.mxu0 0.0
      %2982 = vmatmul.mubr.f32.gmra.mrb[0].mxu0 %v2915
      %v2983 = vpop.f32.mrb[0].mxu0
      %v2984 = vadd.f32 0.0, %v2983
      %v2985 = vpop.f32.mrb[0].mxu0
      %2986 = vdwg.mxu0
      %v2988 = vsel %vm2548, %v2546, 0
      %2990 = vmatprep.subr.mxu0 0.0
      %2991 = vmatpush1.msra.mxu0 %v1839
      %2992 = vmatprep.subr.mxu0 0.0
      %2993 = vmatpush1.msra.mxu0 0.0
      %2994 = vmatprep.subr.mxu0 0.0
      %2995 = vmatpush1.msra.mxu0 0.0
      %2996 = vmatprep.subr.mxu0 0.0
      %2997 = vmatpush1.msra.mxu0 0.0
      %2998 = vmatprep.subr.mxu0 0.0
      %2999 = vmatpush1.msra.mxu0 0.0
      %3000 = vmatprep.subr.mxu0 0.0
      %3001 = vmatpush1.msra.mxu0 0.0
      %3002 = vmatprep.subr.mxu0 0.0
      %3003 = vmatpush1.msra.mxu0 0.0
      %3004 = vmatprep.subr.mxu0 0.0
      %3005 = vmatpush1.msra.mxu0 0.0
      %3006 = vmatprep.subr.mxu0 0.0
      %3007 = vmatpush1.msra.mxu0 0.0
      %3008 = vmatprep.subr.mxu0 0.0
      %3009 = vmatpush1.msra.mxu0 0.0
      %3010 = vmatprep.subr.mxu0 0.0
      %3011 = vmatpush1.msra.mxu0 0.0
      %3012 = vmatprep.subr.mxu0 0.0
      %3013 = vmatpush1.msra.mxu0 0.0
      %3014 = vmatprep.subr.mxu0 0.0
      %3015 = vmatpush1.msra.mxu0 0.0
      %3016 = vmatprep.subr.mxu0 0.0
      %3017 = vmatpush1.msra.mxu0 0.0
      %3018 = vmatprep.subr.mxu0 0.0
      %3019 = vmatpush1.msra.mxu0 0.0
      %3020 = vmatprep.subr.mxu0 0.0
      %3021 = vmatpush1.msra.mxu0 0.0
      %3022 = vmatprep.subr.mxu0 0.0
      %3023 = vmatpush1.msra.mxu0 0.0
      %3024 = vmatprep.subr.mxu0 0.0
      %3025 = vmatpush1.msra.mxu0 0.0
      %3026 = vmatprep.subr.mxu0 0.0
      %3027 = vmatpush1.msra.mxu0 0.0
      %3028 = vmatprep.subr.mxu0 0.0
      %3029 = vmatpush1.msra.mxu0 0.0
      %3030 = vmatprep.subr.mxu0 0.0
      %3031 = vmatpush1.msra.mxu0 0.0
      %3032 = vmatprep.subr.mxu0 0.0
      %3033 = vmatpush1.msra.mxu0 0.0
      %3034 = vmatprep.subr.mxu0 0.0
      %3035 = vmatpush1.msra.mxu0 0.0
      %3036 = vmatprep.subr.mxu0 0.0
      %3037 = vmatpush1.msra.mxu0 0.0
      %3038 = vmatprep.subr.mxu0 0.0
      %3039 = vmatpush1.msra.mxu0 0.0
      %3040 = vmatprep.subr.mxu0 0.0
      %3041 = vmatpush1.msra.mxu0 0.0
      %3042 = vmatprep.subr.mxu0 0.0
      %3043 = vmatpush1.msra.mxu0 0.0
      %3044 = vmatprep.subr.mxu0 0.0
      %3045 = vmatpush1.msra.mxu0 0.0
      %3046 = vmatprep.subr.mxu0 0.0
      %3047 = vmatpush1.msra.mxu0 0.0
      %3048 = vmatprep.subr.mxu0 0.0
      %3049 = vmatpush1.msra.mxu0 0.0
      %3050 = vmatprep.subr.mxu0 0.0
      %3051 = vmatpush1.msra.mxu0 0.0
      %3052 = vmatprep.subr.mxu0 0.0
      %3053 = vmatpush1.msra.mxu0 0.0
      %3054 = vmatprep.mubr.f32.mxu0 0.0
      %3055 = vmatmul.mubr.f32.gmra.mrb[0].mxu0 %v2988
      %v3056 = vpop.f32.mrb[0].mxu0
      %v3057 = vadd.f32 0.0, %v3056
      %v3058 = vpop.f32.mrb[0].mxu0
      %3059 = vdwg.mxu0
      %v3061 = vsel %vm2548, %v2547, 0
      %3063 = vmatprep.subr.mxu0 0.0
      %3064 = vmatpush1.msra.mxu0 %v1840
      %3065 = vmatprep.subr.mxu0 0.0
      %3066 = vmatpush1.msra.mxu0 0.0
      %3067 = vmatprep.subr.mxu0 0.0
      %3068 = vmatpush1.msra.mxu0 0.0
      %3069 = vmatprep.subr.mxu0 0.0
      %3070 = vmatpush1.msra.mxu0 0.0
      %3071 = vmatprep.subr.mxu0 0.0
      %3072 = vmatpush1.msra.mxu0 0.0
      %3073 = vmatprep.subr.mxu0 0.0
      %3074 = vmatpush1.msra.mxu0 0.0
      %3075 = vmatprep.subr.mxu0 0.0
      %3076 = vmatpush1.msra.mxu0 0.0
      %3077 = vmatprep.subr.mxu0 0.0
      %3078 = vmatpush1.msra.mxu0 0.0
      %3079 = vmatprep.subr.mxu0 0.0
      %3080 = vmatpush1.msra.mxu0 0.0
      %3081 = vmatprep.subr.mxu0 0.0
      %3082 = vmatpush1.msra.mxu0 0.0
      %3083 = vmatprep.subr.mxu0 0.0
      %3084 = vmatpush1.msra.mxu0 0.0
      %3085 = vmatprep.subr.mxu0 0.0
      %3086 = vmatpush1.msra.mxu0 0.0
      %3087 = vmatprep.subr.mxu0 0.0
      %3088 = vmatpush1.msra.mxu0 0.0
      %3089 = vmatprep.subr.mxu0 0.0
      %3090 = vmatpush1.msra.mxu0 0.0
      %3091 = vmatprep.subr.mxu0 0.0
      %3092 = vmatpush1.msra.mxu0 0.0
      %3093 = vmatprep.subr.mxu0 0.0
      %3094 = vmatpush1.msra.mxu0 0.0
      %3095 = vmatprep.subr.mxu0 0.0
      %3096 = vmatpush1.msra.mxu0 0.0
      %3097 = vmatprep.subr.mxu0 0.0
      %3098 = vmatpush1.msra.mxu0 0.0
      %3099 = vmatprep.subr.mxu0 0.0
      %3100 = vmatpush1.msra.mxu0 0.0
      %3101 = vmatprep.subr.mxu0 0.0
      %3102 = vmatpush1.msra.mxu0 0.0
      %3103 = vmatprep.subr.mxu0 0.0
      %3104 = vmatpush1.msra.mxu0 0.0
      %3105 = vmatprep.subr.mxu0 0.0
      %3106 = vmatpush1.msra.mxu0 0.0
      %3107 = vmatprep.subr.mxu0 0.0
      %3108 = vmatpush1.msra.mxu0 0.0
      %3109 = vmatprep.subr.mxu0 0.0
      %3110 = vmatpush1.msra.mxu0 0.0
      %3111 = vmatprep.subr.mxu0 0.0
      %3112 = vmatpush1.msra.mxu0 0.0
      %3113 = vmatprep.subr.mxu0 0.0
      %3114 = vmatpush1.msra.mxu0 0.0
      %3115 = vmatprep.subr.mxu0 0.0
      %3116 = vmatpush1.msra.mxu0 0.0
      %3117 = vmatprep.subr.mxu0 0.0
      %3118 = vmatpush1.msra.mxu0 0.0
      %3119 = vmatprep.subr.mxu0 0.0
      %3120 = vmatpush1.msra.mxu0 0.0
      %3121 = vmatprep.subr.mxu0 0.0
      %3122 = vmatpush1.msra.mxu0 0.0
      %3123 = vmatprep.subr.mxu0 0.0
      %3124 = vmatpush1.msra.mxu0 0.0
      %3125 = vmatprep.subr.mxu0 0.0
      %3126 = vmatpush1.msra.mxu0 0.0
      %3127 = vmatprep.mubr.f32.mxu0 0.0
      %3128 = vmatmul.mubr.f32.gmra.mrb[0].mxu0 %v3061
      %v3129 = vpop.f32.mrb[0].mxu0
      %v3130 = vadd.f32 0.0, %v3129
      %v3131 = vpop.f32.mrb[0].mxu0
      %3132 = vdwg.mxu0
      %v3133 = vrot.slane %v2541, 7
      %vm3134 = vcmask 1041409
      %v3135 = vsel %vm3134, %v3133, %v2540
      %v3136 = vrot.slane %v2542, 6
      %vm3137 = vcmask 1042434
      %v3138 = vsel %vm3137, %v3136, %v3135
      %v3139 = vrot.slane %v2543, 5
      %vm3140 = vcmask 1043459
      %v3141 = vsel %vm3140, %v3139, %v3138
      %v3142 = vrot.slane %v2544, 4
      %vm3143 = vcmask 1044484
      %v3144 = vsel %vm3143, %v3142, %v3141
      %v3145 = vrot.slane %v2545, 3
      %vm3146 = vcmask 1045509
      %v3147 = vsel %vm3146, %v3145, %v3144
      %v3148 = vrot.slane %v2546, 2
      %vm3149 = vcmask 1046534
      %v3150 = vsel %vm3149, %v3148, %v3147
      %v3151 = vrot.slane %v2547, 1
      %vm3152 = vcmask 1047559
      %v3153 = vsel %vm3152, %v3151, %v3150
      %3155 = vst.msk [vmem:[%s534] sm:$0xff] %vm2548, %v3153
      %v3164 = vrot.slane %v2692, 7
      %v3165 = vsel %vm3134, %v3164, %v2619
      %v3166 = vrot.slane %v2765, 6
      %v3167 = vsel %vm3137, %v3166, %v3165
      %v3168 = vrot.slane %v2838, 5
      %v3169 = vsel %vm3140, %v3168, %v3167
      %v3170 = vrot.slane %v2911, 4
      %v3171 = vsel %vm3143, %v3170, %v3169
      %v3172 = vrot.slane %v2984, 3
      %v3173 = vsel %vm3146, %v3172, %v3171
      %v3174 = vrot.slane %v3057, 2
      %v3175 = vsel %vm3149, %v3174, %v3173
      %v3176 = vrot.slane %v3130, 1
      %v3177 = vsel %vm3152, %v3176, %v3175
      %3179 = vst [vmem:[#allocation6] sm:$0xff] %v3177
      %v3180 = vld [vmem:[%s13] sm:$0xff]
      %v3181 = vld [vmem:[%s13 + $0x8] sm:$0xff]
      %v3182 = vld [vmem:[%s13 + $0x10] sm:$0xff]
      %v3183 = vld [vmem:[%s13 + $0x18] sm:$0xff]
      %v3184 = vld [vmem:[%s13 + $0x20] sm:$0xff]
      %v3185 = vld [vmem:[%s13 + $0x28] sm:$0xff]
      %v3186 = vld [vmem:[%s13 + $0x30] sm:$0xff]
      %v3187 = vld [vmem:[%s13 + $0x38] sm:$0xff]
      %v3188 = vld [vmem:[%s13 + $0x40] sm:$0xff]
      %v3189 = vld [vmem:[%s13 + $0x48] sm:$0xff]
      %v3190 = vld [vmem:[%s13 + $0x50] sm:$0xff]
      %v3191 = vld [vmem:[%s13 + $0x58] sm:$0xff]
      %v3192 = vld [vmem:[%s13 + $0x60] sm:$0xff]
      %v3193 = vld [vmem:[%s13 + $0x68] sm:$0xff]
      %v3194 = vld [vmem:[%s13 + $0x70] sm:$0xff]
      %v3195 = vld [vmem:[%s13 + $0x78] sm:$0xff]
      %v3196 = vld [vmem:[%s14] sm:$0xff]
      %v3197 = vld [vmem:[%s14 + $0x8] sm:$0xff]
      %v3198 = vld [vmem:[%s14 + $0x10] sm:$0xff]
      %v3199 = vld [vmem:[%s14 + $0x18] sm:$0xff]
      %v3200 = vld [vmem:[%s14 + $0x20] sm:$0xff]
      %v3201 = vld [vmem:[%s14 + $0x28] sm:$0xff]
      %v3202 = vld [vmem:[%s14 + $0x30] sm:$0xff]
      %v3203 = vld [vmem:[%s14 + $0x38] sm:$0xff]
      %v3204 = vld [vmem:[%s14 + $0x40] sm:$0xff]
      %v3205 = vld [vmem:[%s14 + $0x48] sm:$0xff]
      %v3206 = vld [vmem:[%s14 + $0x50] sm:$0xff]
      %v3207 = vld [vmem:[%s14 + $0x58] sm:$0xff]
      %v3208 = vld [vmem:[%s14 + $0x60] sm:$0xff]
      %v3209 = vld [vmem:[%s14 + $0x68] sm:$0xff]
      %v3210 = vld [vmem:[%s14 + $0x70] sm:$0xff]
      %v3211 = vld [vmem:[%s14 + $0x78] sm:$0xff]
      %3212 = vmatprep.subr.mxu0 0.0
      %3213 = vmatpush1.msra.mxu0 %v3196
      %3214 = vmatprep.subr.mxu0 0.0
      %3215 = vmatpush1.msra.mxu0 %v3197
      %3216 = vmatprep.subr.mxu0 0.0
      %3217 = vmatpush1.msra.mxu0 %v3198
      %3218 = vmatprep.subr.mxu0 0.0
      %3219 = vmatpush1.msra.mxu0 %v3199
      %3220 = vmatprep.subr.mxu0 0.0
      %3221 = vmatpush1.msra.mxu0 %v3200
      %3222 = vmatprep.subr.mxu0 0.0
      %3223 = vmatpush1.msra.mxu0 %v3201
      %3224 = vmatprep.subr.mxu0 0.0
      %3225 = vmatpush1.msra.mxu0 %v3202
      %3226 = vmatprep.subr.mxu0 0.0
      %3227 = vmatpush1.msra.mxu0 %v3203
      %3228 = vmatprep.subr.mxu0 0.0
      %3229 = vmatpush1.msra.mxu0 %v3204
      %3230 = vmatprep.subr.mxu0 0.0
      %3231 = vmatpush1.msra.mxu0 %v3205
      %3232 = vmatprep.subr.mxu0 0.0
      %3233 = vmatpush1.msra.mxu0 %v3206
      %3234 = vmatprep.subr.mxu0 0.0
      %3235 = vmatpush1.msra.mxu0 %v3207
      %3236 = vmatprep.subr.mxu0 0.0
      %3237 = vmatpush1.msra.mxu0 %v3208
      %3238 = vmatprep.subr.mxu0 0.0
      %3239 = vmatpush1.msra.mxu0 %v3209
      %3240 = vmatprep.subr.mxu0 0.0
      %3241 = vmatpush1.msra.mxu0 %v3210
      %3242 = vmatprep.subr.mxu0 0.0
      %3243 = vmatpush1.msra.mxu0 %v3211
      %3244 = vmatprep.subr.mxu0 0.0
      %3245 = vmatpush1.msra.mxu0 0.0
      %3246 = vmatprep.subr.mxu0 0.0
      %3247 = vmatpush1.msra.mxu0 0.0
      %3248 = vmatprep.subr.mxu0 0.0
      %3249 = vmatpush1.msra.mxu0 0.0
      %3250 = vmatprep.subr.mxu0 0.0
      %3251 = vmatpush1.msra.mxu0 0.0
      %3252 = vmatprep.subr.mxu0 0.0
      %3253 = vmatpush1.msra.mxu0 0.0
      %3254 = vmatprep.subr.mxu0 0.0
      %3255 = vmatpush1.msra.mxu0 0.0
      %3256 = vmatprep.subr.mxu0 0.0
      %3257 = vmatpush1.msra.mxu0 0.0
      %3258 = vmatprep.subr.mxu0 0.0
      %3259 = vmatpush1.msra.mxu0 0.0
      %3260 = vmatprep.subr.mxu0 0.0
      %3261 = vmatpush1.msra.mxu0 0.0
      %3262 = vmatprep.subr.mxu0 0.0
      %3263 = vmatpush1.msra.mxu0 0.0
      %3264 = vmatprep.subr.mxu0 0.0
      %3265 = vmatpush1.msra.mxu0 0.0
      %3266 = vmatprep.subr.mxu0 0.0
      %3267 = vmatpush1.msra.mxu0 0.0
      %3268 = vmatprep.subr.mxu0 0.0
      %3269 = vmatpush1.msra.mxu0 0.0
      %3270 = vmatprep.subr.mxu0 0.0
      %3271 = vmatpush1.msra.mxu0 0.0
      %3272 = vmatprep.subr.mxu0 0.0
      %3273 = vmatpush1.msra.mxu0 0.0
      %3274 = vmatprep.subr.mxu0 0.0
      %3275 = vmatpush1.msra.mxu0 0.0
      %3276 = vmatprep.mubr.f32.mxu0 0.0
      %3277 = vmatmul.mubr.f32.gmra.mrb[0].mxu0 %v3177
      %v3278 = vpop.f32.mrb[0].mxu0
      %v3279 = vadd.f32 0.0, %v3278
      %v3280 = vpop.f32.mrb[0].mxu0
      %3281 = vdwg.mxu0
      %3282 = vmatprep.subr.mxu0 0.0
      %3283 = vmatpush1.msra.mxu0 %v3180
      %3284 = vmatprep.subr.mxu0 0.0
      %3285 = vmatpush1.msra.mxu0 %v3181
      %3286 = vmatprep.subr.mxu0 0.0
      %3287 = vmatpush1.msra.mxu0 %v3182
      %3288 = vmatprep.subr.mxu0 0.0
      %3289 = vmatpush1.msra.mxu0 %v3183
      %3290 = vmatprep.subr.mxu0 0.0
      %3291 = vmatpush1.msra.mxu0 %v3184
      %3292 = vmatprep.subr.mxu0 0.0
      %3293 = vmatpush1.msra.mxu0 %v3185
      %3294 = vmatprep.subr.mxu0 0.0
      %3295 = vmatpush1.msra.mxu0 %v3186
      %3296 = vmatprep.subr.mxu0 0.0
      %3297 = vmatpush1.msra.mxu0 %v3187
      %3298 = vmatprep.subr.mxu0 0.0
      %3299 = vmatpush1.msra.mxu0 %v3188
      %3300 = vmatprep.subr.mxu0 0.0
      %3301 = vmatpush1.msra.mxu0 %v3189
      %3302 = vmatprep.subr.mxu0 0.0
      %3303 = vmatpush1.msra.mxu0 %v3190
      %3304 = vmatprep.subr.mxu0 0.0
      %3305 = vmatpush1.msra.mxu0 %v3191
      %3306 = vmatprep.subr.mxu0 0.0
      %3307 = vmatpush1.msra.mxu0 %v3192
      %3308 = vmatprep.subr.mxu0 0.0
      %3309 = vmatpush1.msra.mxu0 %v3193
      %3310 = vmatprep.subr.mxu0 0.0
      %3311 = vmatpush1.msra.mxu0 %v3194
      %3312 = vmatprep.subr.mxu0 0.0
      %3313 = vmatpush1.msra.mxu0 %v3195
      %3314 = vmatprep.subr.mxu0 0.0
      %3315 = vmatpush1.msra.mxu0 0.0
      %3316 = vmatprep.subr.mxu0 0.0
      %3317 = vmatpush1.msra.mxu0 0.0
      %3318 = vmatprep.subr.mxu0 0.0
      %3319 = vmatpush1.msra.mxu0 0.0
      %3320 = vmatprep.subr.mxu0 0.0
      %3321 = vmatpush1.msra.mxu0 0.0
      %3322 = vmatprep.subr.mxu0 0.0
      %3323 = vmatpush1.msra.mxu0 0.0
      %3324 = vmatprep.subr.mxu0 0.0
      %3325 = vmatpush1.msra.mxu0 0.0
      %3326 = vmatprep.subr.mxu0 0.0
      %3327 = vmatpush1.msra.mxu0 0.0
      %3328 = vmatprep.subr.mxu0 0.0
      %3329 = vmatpush1.msra.mxu0 0.0
      %3330 = vmatprep.subr.mxu0 0.0
      %3331 = vmatpush1.msra.mxu0 0.0
      %3332 = vmatprep.subr.mxu0 0.0
      %3333 = vmatpush1.msra.mxu0 0.0
      %3334 = vmatprep.subr.mxu0 0.0
      %3335 = vmatpush1.msra.mxu0 0.0
      %3336 = vmatprep.subr.mxu0 0.0
      %3337 = vmatpush1.msra.mxu0 0.0
      %3338 = vmatprep.subr.mxu0 0.0
      %3339 = vmatpush1.msra.mxu0 0.0
      %3340 = vmatprep.subr.mxu0 0.0
      %3341 = vmatpush1.msra.mxu0 0.0
      %3342 = vmatprep.subr.mxu0 0.0
      %3343 = vmatpush1.msra.mxu0 0.0
      %3344 = vmatprep.subr.mxu0 0.0
      %3345 = vmatpush1.msra.mxu0 0.0
      %3346 = vmatprep.mubr.f32.mxu0 0.0
      %3347 = vmatmul.mubr.f32.gmra.mrb[0].mxu0 %v1737
      %v3348 = vpop.f32.mrb[0].mxu0
      %v3349 = vadd.f32 %v3279, %v3348
      %v3350 = vpop.f32.mrb[0].mxu0
      %3351 = vdwg.mxu0
      %v3352 = vld [vmem:[%s15] sm:$0x1]
      %v3354 = vlaneseq
      %v3355 = vshrl.u32 %v3354, 7
      %v3356 = vsub.s32 0, %v3355
      %v3357 = vrot.slane %v3352, %v3356
      %v3359 = vadd.f32 %v3349, %v3357
      %3360 = vst [vmem:[%s530] sm:$0xff] %v3359
      %3361 = vmax.xlane.f32.xlu0 %v3359
      %v3362 = vpop.xlane.xlu0 %3361
      %vm3363 = vcmp.eq.f32.partialorder %v3359, %v3362
      %v3364 = vsel %vm3363, %v547, 128
      %v3365 = vand.u32 %v3364, 65535
      %v3366 = vshra.s32 %v3364, 16
      %v3367 = vcvt.s32.f32 %v3365
      %v3368 = vcvt.s32.f32 %v3366
      %3369 = vmin.xlane.f32.xlu0 %v3368
      %v3370 = vpop.xlane.xlu0 %3369
      %vm3371 = vcmp.eq.f32.partialorder %v3368, %v3370
      %v3372 = vsel %vm3371, %v3367, inf
      %3373 = vmin.xlane.f32.xlu0 %v3372
      %v3374 = vpop.xlane.xlu0 %3373
      %v3375 = vcvt.f32.s32 %v3374
      %v3376 = vcvt.f32.s32 %v3370
      %v3377 = vshll.u32 %v3376, 16
      %v3378 = vadd.s32 %v3377, %v3375
      %s3379 = sld [smem:[#allocation9 + %s35]]
      %p3380 = scmp.eq.s32.totalorder %s3379, 1
      %v3381 = vld [vmem:[%s526] sm:$0xff]
      %s3382 = scalar_select %p3380, 1, 0
      %v3383 = vstv %s3382
      %vm3384 = vcmp.eq.s32.totalorder %v3383, 1
      %v3385 = vsel %vm3384, %v3381, %v3378
      %vm3386 = vcmask 7168
      %3387 = vst.msk [vmem:[#allocation7] sm:$0xff] %vm3386, %v3385
      %p3388 = scmp.lt.s32.totalorder %s35, 5
      %s3389 = scalar_select %p3388, %s35, 5
      %s3390 = smul.addr %s3389, 8
      %s3391 = scalar_lea.vmem %s16, %s3390
      %p3392 = scmp.lt.s32.totalorder %s35, 5
      %s3393 = scalar_select %p3392, %s35, 5
      %s3394 = smul.addr %s3393, 8
      %s3395 = scalar_lea.vmem %s17, %s3394
      // Predicated region
      $region85: #{seq2seq_forward.5} parent=79 // pred_check
        %p3396 = pneg %p373
      $region86: #{seq2seq_forward.5} parent=79 // pred_check_branch
        %3398 = sbr.rel (%p3396) target = $region88
      $region87: #{seq2seq_forward.5} parent=79 // pred_region
        _
      $region88: #{seq2seq_forward.5} parent=79 // pred_fallthru
        _
      // Predicated region
      $region89: #{seq2seq_forward.5} parent=79 // pred_check
        %p3399 = pneg %p399
      $region90: #{seq2seq_forward.5} parent=79 // pred_check_branch
        %3401 = sbr.rel (%p3399) target = $region92
      $region91: #{seq2seq_forward.5} parent=79 // pred_region
        _
      $region92: #{seq2seq_forward.5} parent=79 // pred_fallthru
        _
    $region80: #{seq2seq_forward.5} parent=5 // pred_fallthru
      _
    %p3402 = scmp.le.s32.totalorder 2, %s30
    // Predicated region
    $region93: #{seq2seq_forward.5} parent=5 // pred_check
      %p3403 = pneg %p3402
    $region94: #{seq2seq_forward.5} parent=5 // pred_check_branch
      %3405 = sbr.rel (%p3403) target = $region96
    $region95: #{seq2seq_forward.5} parent=5 // pred_region
      %s3406 = ssub.s32 %s30, 2
      // Predicated region
      $region97: #{seq2seq_forward.5} parent=95 // pred_check
        %p3407 = pneg %p379
      $region98: #{seq2seq_forward.5} parent=95 // pred_check_branch
        %3409 = sbr.rel (%p3407) target = $region100
      $region99: #{seq2seq_forward.5} parent=95 // pred_region
        %p3410 = scmp.lt.s32.totalorder %s36, 5
        %s3411 = scalar_select %p3410, %s36, 5
        %s3412 = smul.addr %s3411, 8
        %s3413 = scalar_lea.vmem %s16, %s3412
      $region100: #{seq2seq_forward.5} parent=95 // pred_fallthru
        _
      // Predicated region
      $region101: #{seq2seq_forward.5} parent=95 // pred_check
        %p3414 = pneg %p405
      $region102: #{seq2seq_forward.5} parent=95 // pred_check_branch
        %3416 = sbr.rel (%p3414) target = $region104
      $region103: #{seq2seq_forward.5} parent=95 // pred_region
        %p3417 = scmp.lt.s32.totalorder %s36, 5
        %s3418 = scalar_select %p3417, %s36, 5
        %s3419 = smul.addr %s3418, 8
        %s3420 = scalar_lea.vmem %s17, %s3419
      $region104: #{seq2seq_forward.5} parent=95 // pred_fallthru
        _
    $region96: #{seq2seq_forward.5} parent=5 // pred_fallthru
      _
  $region6: #{seq2seq_forward.5} parent=0 // loop_footer
    %s34 = sadd.s32 1, %s30
  $region7: #{seq2seq_forward.5} parent=0 // loop_footer_branch
    %29 = sbr.rel target = $region3
  $region8: #{seq2seq_forward.5} parent=0 // loop_exit
    _

</llo_original>
